<compile_context>
chip_gen: v7x
topology: tpu7x:2x2x1
jax: 0.10.0
libtpu: 0.0.40
codegen_flags: <defaults>
</compile_context>

<pallas_src>
import math

import jax
import jax.numpy as jnp
from jax.experimental import pallas as pl
from jax.experimental.pallas import tpu as pltpu

D = 4                  # number of feature_out Linear layers (module default 8; small demo)
W = 128                # hidden width (module default 256; small, lane aligned)
IN_PTS = 27            # input_ch
IN_SCL = 7
IN_ROT = 8
IN_OP = 1
IN_TIME = 9            # input_ch_time
PACK = 16              # fused head output lanes: pts(3) scl(3) rot(4) op(1) pad(5)
HEAD_DIMS = (3, 3, 4, 1)
HEAD_OFFS = (0, 3, 6, 10)
NH = len(HEAD_DIMS)
TM_MAX = 4096          # rows per grid step (fits ~20 MB live intermediates; OK on v7x 64 MiB VMEM)
VMEM_LIMIT = 48 * 1024 * 1024


def _round_up(x, m):
    return (x + m - 1) // m * m


def _choose_tile(n):
    """>=4 grid steps when N permits (>=2 per v7x TensorCore); rows multiple of 8 (sublane)."""
    target = pl.cdiv(max(n, 1), 4)
    gran = 256 if n >= 1024 else 8
    return min(TM_MAX, max(gran, _round_up(target, gran)))


# -------------------- kernel --------------------
def _deformation_kernel(pts_ref, scl_ref, rot_ref, op_ref, time_ref,
                        w0x_ref, w0t_ref, b0_ref, wmid_ref, bmid_ref,
                        hw1_ref, hb1_ref, hw2_ref, hb2_ref,
                        pts_out_ref, scl_out_ref, rot_out_ref, op_out_ref):
    pts = pts_ref[...]                                     # (TM, 27) f32
    tvec = time_ref[...]                                   # (TM, 9)  f32

    # ---- first layer Linear(4, W) on the MXU via zero-padded weights (f32 operands so the
    #      first-layer numerics match the reference exactly up to dot-sum order) ----
    h = (jnp.dot(pts, w0x_ref[...], preferred_element_type=jnp.float32)
         + jnp.dot(tvec, w0t_ref[...], preferred_element_type=jnp.float32)
         + b0_ref[...])                                    # (TM, W) f32

    # ---- trunk: (ReLU, Linear(W, W)) x (D-1); bf16 MXU operands, f32 accumulation ----
    for l in range(D - 1):
        h = jnp.maximum(h, 0.0)
        h = jnp.dot(h.astype(jnp.bfloat16), wmid_ref[l],
                    preferred_element_type=jnp.float32) + bmid_ref[l]

    # ---- heads, fused: ReLU -> one (W, 4W) matmul -> ReLU -> one block-diag (4W, 16) matmul ----
    hr = jnp.maximum(h, 0.0)
    t = jnp.dot(hr.astype(jnp.bfloat16), hw1_ref[...],
                preferred_element_type=jnp.float32) + hb1_ref[...]      # (TM, 4W)
    t = jnp.maximum(t, 0.0)
    delta = jnp.dot(t.astype(jnp.bfloat16), hw2_ref[...],
                    preferred_element_type=jnp.float32) + hb2_ref[...]  # (TM, 16)

    # ---- residual adds, one narrow store per head ----
    pts_out_ref[...] = pts[:, 0:3] + delta[:, 0:3]
    scl_out_ref[...] = scl_ref[:, 0:3] + delta[:, 3:6]
    rot_out_ref[...] = rot_ref[:, 0:4] + delta[:, 6:10]
    op_out_ref[...] = op_ref[...] + delta[:, 10:11]


# -------------------- parameter construction (module-style, f32) --------------------
def _linear(key, fan_in, fan_out):
    kw, kb = jax.random.split(key)
    bound = 1.0 / math.sqrt(fan_in)
    w = jax.random.uniform(kw, (fan_in, fan_out), jnp.float32, -bound, bound)
    b = jax.random.uniform(kb, (1, fan_out), jnp.float32, -bound, bound)
    return w, b


def make_params(key):
    keys = jax.random.split(key, 1 + (D - 1) + 2 * NH)
    ki = iter(keys)
    w0, b0 = _linear(next(ki), 4, W)
    wm, bm = [], []
    for _ in range(D - 1):
        w, b = _linear(next(ki), W, W)
        wm.append(w); bm.append(b)
    hw1, hb1, hw2, hb2 = [], [], [], []
    for od in HEAD_DIMS:
        w1, b1 = _linear(next(ki), W, W)
        w2, b2 = _linear(next(ki), W, od)
        hw1.append(w1); hb1.append(b1); hw2.append(w2); hb2.append(b2)
    return dict(w0=w0, b0=b0, wmid=jnp.stack(wm), bmid=jnp.stack(bm),
                hw1=hw1, hb1=hb1, hw2=hw2, hb2=hb2)


def pack_kernel_params(p):
    """Fuse/pad/cast the weights for the kernel. Call ONCE at parameter-load time (hoisted)."""
    # zero-padded first-layer weights so full-width inputs can feed the MXU directly
    w0x = jnp.zeros((IN_PTS, W), jnp.float32).at[0:3, :].set(p["w0"][0:3])
    w0t = jnp.zeros((IN_TIME, W), jnp.float32).at[0:1, :].set(p["w0"][3:4])
    # fused head layer-1: (W, 4W)
    hw1_f = jnp.concatenate(p["hw1"], axis=1).astype(jnp.bfloat16)
    hb1_f = jnp.concatenate(p["hb1"], axis=1)
    # block-diagonal head layer-2: (4W, 16)
    hw2_bd = jnp.zeros((NH * W, PACK), jnp.float32)
    hb2_pk = jnp.zeros((1, PACK), jnp.float32)
    for i, (od, off) in enumerate(zip(HEAD_DIMS, HEAD_OFFS)):
        hw2_bd = hw2_bd.at[i * W:(i + 1) * W, off:off + od].set(p["hw2"][i])
        hb2_pk = hb2_pk.at[:, off:off + od].set(p["hb2"][i])
    return (w0x, w0t, p["b0"],
            p["wmid"].astype(jnp.bfloat16), p["bmid"],
            hw1_f, hb1_f, hw2_bd.astype(jnp.bfloat16), hb2_pk)


# -------------------- Pallas wrapper --------------------
def deformation_forward(rays_pts_emb, scales_emb, rotations_emb, opacity_emb,
                        time_emb, kparams, tm=None):
    N = rays_pts_emb.shape[0]
    if tm is None:
        tm = _choose_tile(N)
    grid = (pl.cdiv(N, tm),)            # ragged tail: OOB output rows are dropped by Pallas

    (w0x, w0t, b0, wmid, bmid, hw1, hb1, hw2, hb2) = kparams

    row = lambda c: pl.BlockSpec((tm, c), lambda i: (i, 0))
    full2 = lambda a, b: pl.BlockSpec((a, b), lambda i: (0, 0))
    full3 = lambda a, b, c: pl.BlockSpec((a, b, c), lambda i: (0, 0, 0))

    flops = 2 * N * (IN_PTS * W + IN_TIME * W + (D - 1) * W * W
                     + W * (NH * W) + (NH * W) * PACK)
    io_bytes = 4 * N * (IN_PTS + IN_SCL + IN_ROT + IN_OP + IN_TIME + 3 + 3 + 4 + 1)
    w_bytes = sum(int(a.size) * a.dtype.itemsize for a in kparams)

    return pl.pallas_call(
        _deformation_kernel,
        out_shape=(jax.ShapeDtypeStruct((N, 3), jnp.float32),
                   jax.ShapeDtypeStruct((N, 3), jnp.float32),
                   jax.ShapeDtypeStruct((N, 4), jnp.float32),
                   jax.ShapeDtypeStruct((N, 1), jnp.float32)),
        grid_spec=pltpu.PrefetchScalarGridSpec(
            num_scalar_prefetch=0,
            grid=grid,
            in_specs=[
                row(IN_PTS), row(IN_SCL), row(IN_ROT), row(IN_OP), row(IN_TIME),
                full2(IN_PTS, W), full2(IN_TIME, W), full2(1, W),     # first layer (f32)
                full3(D - 1, W, W), full3(D - 1, 1, W),               # trunk (bf16 w / f32 b)
                full2(W, NH * W), full2(1, NH * W),                   # fused head layer-1
                full2(NH * W, PACK), full2(1, PACK),                  # block-diag head layer-2
            ],
            out_specs=[row(3), row(3), row(4), row(1)],
        ),
        compiler_params=pltpu.CompilerParams(
            dimension_semantics=("parallel",),
            vmem_limit_bytes=VMEM_LIMIT),
        cost_estimate=pl.CostEstimate(flops=flops, transcendentals=0,
                                      bytes_accessed=io_bytes + w_bytes),
    )(rays_pts_emb, scales_emb, rotations_emb, opacity_emb, time_emb,
      w0x, w0t, b0, wmid, bmid, hw1, hb1, hw2, hb2)


# -------------------- pure-JAX reference (unfused per-head weights) --------------------
def reference_forward(rays_pts_emb, scales_emb, rotations_emb, opacity_emb, time_emb, p):
    def bdot(a, w):   # same precision choice as the kernel: bf16 operands, f32 accumulation
        return jnp.dot(a.astype(jnp.bfloat16), w.astype(jnp.bfloat16),
                       preferred_element_type=jnp.float32)

    x4 = jnp.concatenate([rays_pts_emb[:, :3], time_emb[:, :1]], axis=-1)
    h = x4 @ p["w0"] + p["b0"]                      # first layer in f32, like the kernel
    for l in range(D - 1):
        h = bdot(jax.nn.relu(h), p["wmid"][l]) + p["bmid"][l]
    hr = jax.nn.relu(h)
    deltas = []
    for i in range(NH):
        t = jax.nn.relu(bdot(hr, p["hw1"][i]) + p["hb1"][i])
        deltas.append(bdot(t, p["hw2"][i]) + p["hb2"][i])
    pts = rays_pts_emb[:, :3] + deltas[0]
    scl = scales_emb[:, :3] + deltas[1]
    rot = rotations_emb[:, :4] + deltas[2]
    op = opacity_emb[:, :1] + deltas[3]
    return pts, scl, rot, op


if __name__ == "__main__":
    key = jax.random.PRNGKey(0)
    kp, k1, k2, k3, k4, k5 = jax.random.split(key, 6)

    N = 300                                                       # non-multiple of tile: ragged tail
    rays_pts_emb  = jax.random.normal(k1, (N, IN_PTS), jnp.float32)    # input_ch = 27
    scales_emb    = jax.random.normal(k2, (N, IN_SCL), jnp.float32)
    rotations_emb = jax.random.normal(k3, (N, IN_ROT), jnp.float32)
    opacity_emb   = jax.random.normal(k4, (N, IN_OP), jnp.float32)
    time_emb      = jax.random.normal(k5, (N, IN_TIME), jnp.float32)   # input_ch_time = 9

    params = make_params(kp)
    kparams = pack_kernel_params(params)       # hoisted: done once at parameter-load time

    outs = deformation_forward(rays_pts_emb, scales_emb, rotations_emb,
                               opacity_emb, time_emb, kparams)
    outs = jax.block_until_ready(outs)

    refs = reference_forward(rays_pts_emb, scales_emb, rotations_emb,
                             opacity_emb, time_emb, params)
    for o, r in zip(outs, refs):
        assert o.shape == r.shape, (o.shape, r.shape)
        if not jnp.allclose(o, r, atol=1e-2, rtol=1e-2):
            err = float(jnp.max(jnp.abs(o - r)))
            raise AssertionError(f"Pallas kernel mismatch vs JAX reference (max abs err {err})")

    print("KERNEL_OK")
</pallas_src>

<mosaic_0001>
module attributes {stable_mosaic.version = 11 : i64} {
  func.func @_deformation_kernel(%arg0: i32, %arg1: memref<80x27xf32, #tpu.memory_space<vmem>>, %arg2: memref<80x7xf32, #tpu.memory_space<vmem>>, %arg3: memref<80x8xf32, #tpu.memory_space<vmem>>, %arg4: memref<80x1xf32, #tpu.memory_space<vmem>>, %arg5: memref<80x9xf32, #tpu.memory_space<vmem>>, %arg6: memref<27x128xf32, #tpu.memory_space<vmem>>, %arg7: memref<9x128xf32, #tpu.memory_space<vmem>>, %arg8: memref<1x128xf32, #tpu.memory_space<vmem>>, %arg9: memref<3x128x128xbf16, #tpu.memory_space<vmem>>, %arg10: memref<3x1x128xf32, #tpu.memory_space<vmem>>, %arg11: memref<128x512xbf16, #tpu.memory_space<vmem>>, %arg12: memref<1x512xf32, #tpu.memory_space<vmem>>, %arg13: memref<512x16xbf16, #tpu.memory_space<vmem>>, %arg14: memref<1x16xf32, #tpu.memory_space<vmem>>, %arg15: memref<80x3xf32, #tpu.memory_space<vmem>>, %arg16: memref<80x3xf32, #tpu.memory_space<vmem>>, %arg17: memref<80x4xf32, #tpu.memory_space<vmem>>, %arg18: memref<80x1xf32, #tpu.memory_space<vmem>>) attributes {dimension_semantics = [#tpu.dimension_semantics<parallel>], iteration_bounds = array<i64: 4>, scalar_prefetch = 0 : i64, scratch_operands = 0 : i64, tpu.core_type = #tpu.core_type<tc>, window_params = [{transform_indices = @transform_0, window_bounds = array<i64: 80, 27>}, {transform_indices = @transform_1, window_bounds = array<i64: 80, 7>}, {transform_indices = @transform_2, window_bounds = array<i64: 80, 8>}, {transform_indices = @transform_3, window_bounds = array<i64: 80, 1>}, {transform_indices = @transform_4, window_bounds = array<i64: 80, 9>}, {pipeline_mode = #tpu.pipeline_mode<synchronous>, transform_indices = @transform_5, window_bounds = array<i64: 27, 128>}, {pipeline_mode = #tpu.pipeline_mode<synchronous>, transform_indices = @transform_6, window_bounds = array<i64: 9, 128>}, {pipeline_mode = #tpu.pipeline_mode<synchronous>, transform_indices = @transform_7, window_bounds = array<i64: 1, 128>}, {pipeline_mode = #tpu.pipeline_mode<synchronous>, transform_indices = @transform_8, window_bounds = array<i64: 3, 128, 128>}, {pipeline_mode = #tpu.pipeline_mode<synchronous>, transform_indices = @transform_9, window_bounds = array<i64: 3, 1, 128>}, {pipeline_mode = #tpu.pipeline_mode<synchronous>, transform_indices = @transform_10, window_bounds = array<i64: 128, 512>}, {pipeline_mode = #tpu.pipeline_mode<synchronous>, transform_indices = @transform_11, window_bounds = array<i64: 1, 512>}, {pipeline_mode = #tpu.pipeline_mode<synchronous>, transform_indices = @transform_12, window_bounds = array<i64: 512, 16>}, {pipeline_mode = #tpu.pipeline_mode<synchronous>, transform_indices = @transform_13, window_bounds = array<i64: 1, 16>}, {transform_indices = @transform_14, window_bounds = array<i64: 80, 3>}, {transform_indices = @transform_15, window_bounds = array<i64: 80, 3>}, {transform_indices = @transform_16, window_bounds = array<i64: 80, 4>}, {transform_indices = @transform_17, window_bounds = array<i64: 80, 1>}]} {
    %c0 = arith.constant 0 : index
    %c0_0 = arith.constant 0 : index
    %0 = vector.load %arg1[%c0, %c0_0] : memref<80x27xf32, #tpu.memory_space<vmem>>, vector<80x27xf32>
    %c0_1 = arith.constant 0 : index
    %c0_2 = arith.constant 0 : index
    %1 = vector.load %arg5[%c0_1, %c0_2] : memref<80x9xf32, #tpu.memory_space<vmem>>, vector<80x9xf32>
    %c0_3 = arith.constant 0 : index
    %c0_4 = arith.constant 0 : index
    %2 = vector.load %arg6[%c0_3, %c0_4] : memref<27x128xf32, #tpu.memory_space<vmem>>, vector<27x128xf32>
    %cst = arith.constant dense<0.000000e+00> : vector<80x128xf32>
    %3 = tpu.matmul %0, %2, %cst {dimension_numbers = #tpu.dot_dimension_numbers<[1], [0], [0], [1], [0, 0, 1, 1], [], []>} : vector<80x27xf32>, vector<27x128xf32>, vector<80x128xf32> -> vector<80x128xf32>
    %c0_5 = arith.constant 0 : index
    %c0_6 = arith.constant 0 : index
    %4 = vector.load %arg7[%c0_5, %c0_6] : memref<9x128xf32, #tpu.memory_space<vmem>>, vector<9x128xf32>
    %cst_7 = arith.constant dense<0.000000e+00> : vector<80x128xf32>
    %5 = tpu.matmul %1, %4, %cst_7 {dimension_numbers = #tpu.dot_dimension_numbers<[1], [0], [0], [1], [0, 0, 1, 1], [], []>} : vector<80x9xf32>, vector<9x128xf32>, vector<80x128xf32> -> vector<80x128xf32>
    %6 = arith.addf %3, %5 : vector<80x128xf32>
    %c0_8 = arith.constant 0 : index
    %c0_9 = arith.constant 0 : index
    %7 = vector.load %arg8[%c0_8, %c0_9] : memref<1x128xf32, #tpu.memory_space<vmem>>, vector<1x128xf32>
    %8 = vector.broadcast %7 : vector<1x128xf32> to vector<80x128xf32>
    %9 = arith.addf %6, %8 : vector<80x128xf32>
    %cst_10 = arith.constant 0.000000e+00 : f32
    %10 = vector.broadcast %cst_10 : f32 to vector<80x128xf32>
    %11 = arith.maximumf %9, %10 : vector<80x128xf32>
    %12 = arith.truncf %11 : vector<80x128xf32> to vector<80x128xbf16>
    %c0_11 = arith.constant 0 : index
    %c0_12 = arith.constant 0 : index
    %c0_13 = arith.constant 0 : index
    %13 = vector.load %arg9[%c0_11, %c0_12, %c0_13] : memref<3x128x128xbf16, #tpu.memory_space<vmem>>, vector<1x128x128xbf16>
    %14 = vector.shape_cast %13 : vector<1x128x128xbf16> to vector<128x128xbf16>
    %cst_14 = arith.constant dense<0.000000e+00> : vector<80x128xf32>
    %15 = tpu.matmul %12, %14, %cst_14 {dimension_numbers = #tpu.dot_dimension_numbers<[1], [0], [0], [1], [0, 0, 1, 1], [], []>} : vector<80x128xbf16>, vector<128x128xbf16>, vector<80x128xf32> -> vector<80x128xf32>
    %c0_15 = arith.constant 0 : index
    %c0_16 = arith.constant 0 : index
    %c0_17 = arith.constant 0 : index
    %16 = vector.load %arg10[%c0_15, %c0_16, %c0_17] : memref<3x1x128xf32, #tpu.memory_space<vmem>>, vector<1x1x128xf32>
    %17 = vector.shape_cast %16 : vector<1x1x128xf32> to vector<1x128xf32>
    %18 = vector.broadcast %17 : vector<1x128xf32> to vector<80x128xf32>
    %19 = arith.addf %15, %18 : vector<80x128xf32>
    %cst_18 = arith.constant 0.000000e+00 : f32
    %20 = vector.broadcast %cst_18 : f32 to vector<80x128xf32>
    %21 = arith.maximumf %19, %20 : vector<80x128xf32>
    %22 = arith.truncf %21 : vector<80x128xf32> to vector<80x128xbf16>
    %c1 = arith.constant 1 : index
    %c0_19 = arith.constant 0 : index
    %c0_20 = arith.constant 0 : index
    %23 = vector.load %arg9[%c1, %c0_19, %c0_20] : memref<3x128x128xbf16, #tpu.memory_space<vmem>>, vector<1x128x128xbf16>
    %24 = vector.shape_cast %23 : vector<1x128x128xbf16> to vector<128x128xbf16>
    %cst_21 = arith.constant dense<0.000000e+00> : vector<80x128xf32>
    %25 = tpu.matmul %22, %24, %cst_21 {dimension_numbers = #tpu.dot_dimension_numbers<[1], [0], [0], [1], [0, 0, 1, 1], [], []>} : vector<80x128xbf16>, vector<128x128xbf16>, vector<80x128xf32> -> vector<80x128xf32>
    %c1_22 = arith.constant 1 : index
    %c0_23 = arith.constant 0 : index
    %c0_24 = arith.constant 0 : index
    %26 = vector.load %arg10[%c1_22, %c0_23, %c0_24] : memref<3x1x128xf32, #tpu.memory_space<vmem>>, vector<1x1x128xf32>
    %27 = vector.shape_cast %26 : vector<1x1x128xf32> to vector<1x128xf32>
    %28 = vector.broadcast %27 : vector<1x128xf32> to vector<80x128xf32>
    %29 = arith.addf %25, %28 : vector<80x128xf32>
    %cst_25 = arith.constant 0.000000e+00 : f32
    %30 = vector.broadcast %cst_25 : f32 to vector<80x128xf32>
    %31 = arith.maximumf %29, %30 : vector<80x128xf32>
    %32 = arith.truncf %31 : vector<80x128xf32> to vector<80x128xbf16>
    %c2 = arith.constant 2 : index
    %c0_26 = arith.constant 0 : index
    %c0_27 = arith.constant 0 : index
    %33 = vector.load %arg9[%c2, %c0_26, %c0_27] : memref<3x128x128xbf16, #tpu.memory_space<vmem>>, vector<1x128x128xbf16>
    %34 = vector.shape_cast %33 : vector<1x128x128xbf16> to vector<128x128xbf16>
    %cst_28 = arith.constant dense<0.000000e+00> : vector<80x128xf32>
    %35 = tpu.matmul %32, %34, %cst_28 {dimension_numbers = #tpu.dot_dimension_numbers<[1], [0], [0], [1], [0, 0, 1, 1], [], []>} : vector<80x128xbf16>, vector<128x128xbf16>, vector<80x128xf32> -> vector<80x128xf32>
    %c2_29 = arith.constant 2 : index
    %c0_30 = arith.constant 0 : index
    %c0_31 = arith.constant 0 : index
    %36 = vector.load %arg10[%c2_29, %c0_30, %c0_31] : memref<3x1x128xf32, #tpu.memory_space<vmem>>, vector<1x1x128xf32>
    %37 = vector.shape_cast %36 : vector<1x1x128xf32> to vector<1x128xf32>
    %38 = vector.broadcast %37 : vector<1x128xf32> to vector<80x128xf32>
    %39 = arith.addf %35, %38 : vector<80x128xf32>
    %cst_32 = arith.constant 0.000000e+00 : f32
    %40 = vector.broadcast %cst_32 : f32 to vector<80x128xf32>
    %41 = arith.maximumf %39, %40 : vector<80x128xf32>
    %42 = arith.truncf %41 : vector<80x128xf32> to vector<80x128xbf16>
    %c0_33 = arith.constant 0 : index
    %c0_34 = arith.constant 0 : index
    %43 = vector.load %arg11[%c0_33, %c0_34] : memref<128x512xbf16, #tpu.memory_space<vmem>>, vector<128x512xbf16>
    %cst_35 = arith.constant dense<0.000000e+00> : vector<80x512xf32>
    %44 = tpu.matmul %42, %43, %cst_35 {dimension_numbers = #tpu.dot_dimension_numbers<[1], [0], [0], [1], [0, 0, 1, 1], [], []>} : vector<80x128xbf16>, vector<128x512xbf16>, vector<80x512xf32> -> vector<80x512xf32>
    %c0_36 = arith.constant 0 : index
    %c0_37 = arith.constant 0 : index
    %45 = vector.load %arg12[%c0_36, %c0_37] : memref<1x512xf32, #tpu.memory_space<vmem>>, vector<1x512xf32>
    %46 = vector.broadcast %45 : vector<1x512xf32> to vector<80x512xf32>
    %47 = arith.addf %44, %46 : vector<80x512xf32>
    %cst_38 = arith.constant 0.000000e+00 : f32
    %48 = vector.broadcast %cst_38 : f32 to vector<80x512xf32>
    %49 = arith.maximumf %47, %48 : vector<80x512xf32>
    %50 = arith.truncf %49 : vector<80x512xf32> to vector<80x512xbf16>
    %c0_39 = arith.constant 0 : index
    %c0_40 = arith.constant 0 : index
    %51 = vector.load %arg13[%c0_39, %c0_40] : memref<512x16xbf16, #tpu.memory_space<vmem>>, vector<512x16xbf16>
    %cst_41 = arith.constant dense<0.000000e+00> : vector<80x16xf32>
    %52 = tpu.matmul %50, %51, %cst_41 {dimension_numbers = #tpu.dot_dimension_numbers<[1], [0], [0], [1], [0, 0, 1, 1], [], []>} : vector<80x512xbf16>, vector<512x16xbf16>, vector<80x16xf32> -> vector<80x16xf32>
    %c0_42 = arith.constant 0 : index
    %c0_43 = arith.constant 0 : index
    %53 = vector.load %arg14[%c0_42, %c0_43] : memref<1x16xf32, #tpu.memory_space<vmem>>, vector<1x16xf32>
    %54 = vector.broadcast %53 : vector<1x16xf32> to vector<80x16xf32>
    %55 = arith.addf %52, %54 : vector<80x16xf32>
    %56 = vector.extract_strided_slice %0 {offsets = [0, 0], sizes = [80, 3], strides = [1, 1]} : vector<80x27xf32> to vector<80x3xf32>
    %57 = vector.extract_strided_slice %55 {offsets = [0, 0], sizes = [80, 3], strides = [1, 1]} : vector<80x16xf32> to vector<80x3xf32>
    %58 = arith.addf %56, %57 : vector<80x3xf32>
    %c0_44 = arith.constant 0 : index
    %c0_45 = arith.constant 0 : index
    %59 = vector.load %arg15[%c0_44, %c0_45] : memref<80x3xf32, #tpu.memory_space<vmem>>, vector<80x3xf32>
    tpu.vector_store %arg15[%c0_44, %c0_45], %58 {strides = array<i32>} : memref<80x3xf32, #tpu.memory_space<vmem>>, vector<80x3xf32>,
    %c0_46 = arith.constant 0 : index
    %c0_47 = arith.constant 0 : index
    %60 = vector.load %arg2[%c0_46, %c0_47] : memref<80x7xf32, #tpu.memory_space<vmem>>, vector<80x3xf32>
    %61 = vector.extract_strided_slice %55 {offsets = [0, 3], sizes = [80, 3], strides = [1, 1]} : vector<80x16xf32> to vector<80x3xf32>
    %62 = arith.addf %60, %61 : vector<80x3xf32>
    %c0_48 = arith.constant 0 : index
    %c0_49 = arith.constant 0 : index
    %63 = vector.load %arg16[%c0_48, %c0_49] : memref<80x3xf32, #tpu.memory_space<vmem>>, vector<80x3xf32>
    tpu.vector_store %arg16[%c0_48, %c0_49], %62 {strides = array<i32>} : memref<80x3xf32, #tpu.memory_space<vmem>>, vector<80x3xf32>,
    %c0_50 = arith.constant 0 : index
    %c0_51 = arith.constant 0 : index
    %64 = vector.load %arg3[%c0_50, %c0_51] : memref<80x8xf32, #tpu.memory_space<vmem>>, vector<80x4xf32>
    %65 = vector.extract_strided_slice %55 {offsets = [0, 6], sizes = [80, 4], strides = [1, 1]} : vector<80x16xf32> to vector<80x4xf32>
    %66 = arith.addf %64, %65 : vector<80x4xf32>
    %c0_52 = arith.constant 0 : index
    %c0_53 = arith.constant 0 : index
    %67 = vector.load %arg17[%c0_52, %c0_53] : memref<80x4xf32, #tpu.memory_space<vmem>>, vector<80x4xf32>
    tpu.vector_store %arg17[%c0_52, %c0_53], %66 {strides = array<i32>} : memref<80x4xf32, #tpu.memory_space<vmem>>, vector<80x4xf32>,
    %c0_54 = arith.constant 0 : index
    %c0_55 = arith.constant 0 : index
    %68 = vector.load %arg4[%c0_54, %c0_55] : memref<80x1xf32, #tpu.memory_space<vmem>>, vector<80x1xf32>
    %69 = vector.extract_strided_slice %55 {offsets = [0, 10], sizes = [80, 1], strides = [1, 1]} : vector<80x16xf32> to vector<80x1xf32>
    %70 = arith.addf %68, %69 : vector<80x1xf32>
    %c0_56 = arith.constant 0 : index
    %c0_57 = arith.constant 0 : index
    %71 = vector.load %arg18[%c0_56, %c0_57] : memref<80x1xf32, #tpu.memory_space<vmem>>, vector<80x1xf32>
    tpu.vector_store %arg18[%c0_56, %c0_57], %70 {strides = array<i32>} : memref<80x1xf32, #tpu.memory_space<vmem>>, vector<80x1xf32>,
    return
  }
  func.func @transform_0(%arg0: i32) -> (i32, i32) {
    %c0_i32 = arith.constant 0 : i32
    %c0_i32_0 = arith.constant 0 : i32
    return %arg0, %c0_i32 : i32, i32
  }
  func.func @transform_1(%arg0: i32) -> (i32, i32) {
    %c0_i32 = arith.constant 0 : i32
    %c0_i32_0 = arith.constant 0 : i32
    return %arg0, %c0_i32 : i32, i32
  }
  func.func @transform_2(%arg0: i32) -> (i32, i32) {
    %c0_i32 = arith.constant 0 : i32
    %c0_i32_0 = arith.constant 0 : i32
    return %arg0, %c0_i32 : i32, i32
  }
  func.func @transform_3(%arg0: i32) -> (i32, i32) {
    %c0_i32 = arith.constant 0 : i32
    %c0_i32_0 = arith.constant 0 : i32
    return %arg0, %c0_i32 : i32, i32
  }
  func.func @transform_4(%arg0: i32) -> (i32, i32) {
    %c0_i32 = arith.constant 0 : i32
    %c0_i32_0 = arith.constant 0 : i32
    return %arg0, %c0_i32 : i32, i32
  }
  func.func @transform_5(%arg0: i32) -> (i32, i32) {
    %c0_i32 = arith.constant 0 : i32
    %c0_i32_0 = arith.constant 0 : i32
    %c0_i32_1 = arith.constant 0 : i32
    return %c0_i32, %c0_i32_0 : i32, i32
  }
  func.func @transform_6(%arg0: i32) -> (i32, i32) {
    %c0_i32 = arith.constant 0 : i32
    %c0_i32_0 = arith.constant 0 : i32
    %c0_i32_1 = arith.constant 0 : i32
    return %c0_i32, %c0_i32_0 : i32, i32
  }
  func.func @transform_7(%arg0: i32) -> (i32, i32) {
    %c0_i32 = arith.constant 0 : i32
    %c0_i32_0 = arith.constant 0 : i32
    %c0_i32_1 = arith.constant 0 : i32
    return %c0_i32, %c0_i32_0 : i32, i32
  }
  func.func @transform_8(%arg0: i32) -> (i32, i32, i32) {
    %c0_i32 = arith.constant 0 : i32
    %c0_i32_0 = arith.constant 0 : i32
    %c0_i32_1 = arith.constant 0 : i32
    %c0_i32_2 = arith.constant 0 : i32
    return %c0_i32, %c0_i32_0, %c0_i32_1 : i32, i32, i32
  }
  func.func @transform_9(%arg0: i32) -> (i32, i32, i32) {
    %c0_i32 = arith.constant 0 : i32
    %c0_i32_0 = arith.constant 0 : i32
    %c0_i32_1 = arith.constant 0 : i32
    %c0_i32_2 = arith.constant 0 : i32
    return %c0_i32, %c0_i32_0, %c0_i32_1 : i32, i32, i32
  }
  func.func @transform_10(%arg0: i32) -> (i32, i32) {
    %c0_i32 = arith.constant 0 : i32
    %c0_i32_0 = arith.constant 0 : i32
    %c0_i32_1 = arith.constant 0 : i32
    return %c0_i32, %c0_i32_0 : i32, i32
  }
  func.func @transform_11(%arg0: i32) -> (i32, i32) {
    %c0_i32 = arith.constant 0 : i32
    %c0_i32_0 = arith.constant 0 : i32
    %c0_i32_1 = arith.constant 0 : i32
    return %c0_i32, %c0_i32_0 : i32, i32
  }
  func.func @transform_12(%arg0: i32) -> (i32, i32) {
    %c0_i32 = arith.constant 0 : i32
    %c0_i32_0 = arith.constant 0 : i32
    %c0_i32_1 = arith.constant 0 : i32
    return %c0_i32, %c0_i32_0 : i32, i32
  }
  func.func @transform_13(%arg0: i32) -> (i32, i32) {
    %c0_i32 = arith.constant 0 : i32
    %c0_i32_0 = arith.constant 0 : i32
    %c0_i32_1 = arith.constant 0 : i32
    return %c0_i32, %c0_i32_0 : i32, i32
  }
  func.func @transform_14(%arg0: i32) -> (i32, i32) {
    %c0_i32 = arith.constant 0 : i32
    %c0_i32_0 = arith.constant 0 : i32
    return %arg0, %c0_i32 : i32, i32
  }
  func.func @transform_15(%arg0: i32) -> (i32, i32) {
    %c0_i32 = arith.constant 0 : i32
    %c0_i32_0 = arith.constant 0 : i32
    return %arg0, %c0_i32 : i32, i32
  }
  func.func @transform_16(%arg0: i32) -> (i32, i32) {
    %c0_i32 = arith.constant 0 : i32
    %c0_i32_0 = arith.constant 0 : i32
    return %arg0, %c0_i32 : i32, i32
  }
  func.func @transform_17(%arg0: i32) -> (i32, i32) {
    %c0_i32 = arith.constant 0 : i32
    %c0_i32_0 = arith.constant 0 : i32
    return %arg0, %c0_i32 : i32, i32
  }
}

</mosaic_0001>

<llo_original>
// kernel: tpu_custom_call.1
$region0: #{tpu_custom_call.1}
  #allocation0 [shape = 'u32[]', space=smem, size = 0x4, offset = 0x4, fixed_abs, tag = 'smem constant byte address 0x4 - core index']
  #allocation1 [shape = 'u32[144,128]{1,0:T(1,128)}', space=vmem, size = 0x12000, scoped, tag = 'internal scratch']
  %s0 = inlined_call_operand.vmem [shape: f32[300,27], index: 0, kind: input, shape index: {}]
  %s1 = inlined_call_operand.vmem [shape: f32[300,7], index: 1, kind: input, shape index: {}]
  %s2 = inlined_call_operand.vmem [shape: f32[300,8], index: 2, kind: input, shape index: {}]
  %s3 = inlined_call_operand.vmem [shape: f32[300,1], index: 3, kind: input, shape index: {}]
  %s4 = inlined_call_operand.vmem [shape: f32[300,9], index: 4, kind: input, shape index: {}]
  %s5 = inlined_call_operand.vmem [shape: f32[27,128], index: 5, kind: input, shape index: {}]
  %s6 = inlined_call_operand.vmem [shape: f32[9,128], index: 6, kind: input, shape index: {}]
  %s7 = inlined_call_operand.vmem [shape: f32[1,128], index: 7, kind: input, shape index: {}]
  %s8 = inlined_call_operand.vmem [shape: bf16[3,128,128], index: 8, kind: input, shape index: {}]
  %s9 = inlined_call_operand.vmem [shape: f32[3,1,128], index: 9, kind: input, shape index: {}]
  %s10 = inlined_call_operand.vmem [shape: bf16[128,512], index: 10, kind: input, shape index: {}]
  %s11 = inlined_call_operand.vmem [shape: f32[1,512], index: 11, kind: input, shape index: {}]
  %s12 = inlined_call_operand.vmem [shape: bf16[512,16], index: 12, kind: input, shape index: {}]
  %s13 = inlined_call_operand.vmem [shape: f32[1,16], index: 13, kind: input, shape index: {}]
  %s14 = inlined_call_operand.vmem [shape: f32[300,3], index: 14, kind: output, shape index: {0}]
  %s15 = inlined_call_operand.vmem [shape: f32[300,3], index: 15, kind: output, shape index: {1}]
  %s16 = inlined_call_operand.vmem [shape: f32[300,4], index: 16, kind: output, shape index: {2}]
  %s17 = inlined_call_operand.vmem [shape: f32[300,1], index: 17, kind: output, shape index: {3}]
  %18 = xla_tuple %s14, %s15, %s16, %s17
  %s19 = sld [smem:[#allocation0]]
  $region305: #{tpu_custom_call.1} parent=0
    _
  %s21 = ssub.s32 1, %s19
  %s22 = scalar_select 0, %s21, %s19
  $region1: #{tpu_custom_call.1} parent=0
    #allocation2 [shape = 'u8[81920]{0}', space=vmem, size = 0x14000, scoped, tag = 'output window, operand 0']
    #allocation3 [shape = 'u8[81920]{0}', space=vmem, size = 0x14000, scoped, tag = 'output window, operand 1']
    #allocation4 [shape = 'u8[81920]{0}', space=vmem, size = 0x14000, scoped, tag = 'output window, operand 2']
    #allocation5 [shape = 'u8[81920]{0}', space=vmem, size = 0x14000, scoped, tag = 'output window, operand 3']
    loop: start=0, step=1, limit=6
    $region2: #{tpu_custom_call.1} parent=1 // loop_pre_header
      _
    $region3: #{tpu_custom_call.1} parent=1 // loop_header
      %s24 = sphi 0, %s28
      %p25 = scmp.ge.s32.totalorder %s24, 6
      %s34 = sphi 0, %s36
      %s37 = sphi 0, %s34
      %s38 = sphi 0, %s37
      %s54 = sphi 0, %s38
      %s60 = sphi 0, %s62
      %s63 = sphi 0, %s60
      %s64 = sphi 0, %s63
      %s80 = sphi 0, %s64
      %s86 = sphi 0, %s88
      %s89 = sphi 0, %s86
      %s90 = sphi 0, %s89
      %s106 = sphi 0, %s90
      %s112 = sphi 0, %s114
      %s115 = sphi 0, %s112
      %s116 = sphi 0, %s115
      %s132 = sphi 0, %s116
      %s138 = sphi 0, %s140
      %s141 = sphi 0, %s138
      %s142 = sphi 0, %s141
      %s158 = sphi 0, %s142
      %s162 = sphi 0, %s162
      %s164 = sphi 0, %s162
      %s165 = sphi 0, %s164
      %s179 = sphi 0, %s165
      %s183 = sphi 0, %s183
      %s185 = sphi 0, %s183
      %s186 = sphi 0, %s185
      %s200 = sphi 0, %s186
      %s204 = sphi 0, %s204
      %s206 = sphi 0, %s204
      %s207 = sphi 0, %s206
      %s221 = sphi 0, %s207
      %s225 = sphi 0, %s225
      %s227 = sphi 0, %s225
      %s228 = sphi 0, %s227
      %s242 = sphi 0, %s228
      %s246 = sphi 0, %s246
      %s248 = sphi 0, %s246
      %s249 = sphi 0, %s248
      %s263 = sphi 0, %s249
      %s267 = sphi 0, %s267
      %s269 = sphi 0, %s267
      %s270 = sphi 0, %s269
      %s284 = sphi 0, %s270
      %s288 = sphi 0, %s288
      %s290 = sphi 0, %s288
      %s291 = sphi 0, %s290
      %s305 = sphi 0, %s291
      %s309 = sphi 0, %s309
      %s311 = sphi 0, %s309
      %s312 = sphi 0, %s311
      %s326 = sphi 0, %s312
      %s330 = sphi 0, %s330
      %s332 = sphi 0, %s330
      %s333 = sphi 0, %s332
      %s347 = sphi 0, %s333
      %s353 = sphi 0, %s355
      %s356 = sphi 0, %s353
      %s357 = sphi 0, %s356
      %s373 = sphi 0, %s357
      %s379 = sphi 0, %s381
      %s382 = sphi 0, %s379
      %s383 = sphi 0, %s382
      %s399 = sphi 0, %s383
      %s405 = sphi 0, %s407
      %s408 = sphi 0, %s405
      %s409 = sphi 0, %s408
      %s425 = sphi 0, %s409
      %s431 = sphi 0, %s433
      %s434 = sphi 0, %s431
      %s435 = sphi 0, %s434
      %s451 = sphi 0, %s435
    $region4: #{tpu_custom_call.1} parent=1 // loop_header_branch
      %27 = sbr.rel (%p25) target = $region8
    $region5: #{tpu_custom_call.1} parent=1 // loop_body
      %s29 = ssub.s32 %s24, 1
      %s30 = ssub.s32 %s24, 2
      %s31 = sadd.s32 %s24, 1
      %s32 = ssub.s32 %s24, %s31
      %p33 = scmp.eq.s32.totalorder %s32, 0
      %s35 = sadd.s32 %s34, 1
      %s36 = scalar_select %p33, %s34, %s35
      %p39 = pneg %p33
      %p40 = scmp.eq.s32.totalorder %s24, 3
      %p41 = por %p39, %p40
      %p42 = scmp.ne.s32.totalorder %s34, %s37
      %p43 = scmp.eq.s32.totalorder %s24, 0
      %p44 = por %p42, %p43
      %p45 = scmp.ne.s32.totalorder %s34, %s37
      %p46 = scmp.eq.s32.totalorder %s29, 3
      %p47 = por %p45, %p46
      %p48 = scmp.ne.s32.totalorder %s37, %s38
      %p49 = scmp.eq.s32.totalorder %s29, 0
      %p50 = por %p48, %p49
      %p51 = scmp.ne.s32.totalorder %s37, %s38
      %p52 = scmp.eq.s32.totalorder %s30, 3
      %p53 = por %p51, %p52
      %p55 = scmp.ne.s32.totalorder %s38, %s54
      %p56 = scmp.eq.s32.totalorder %s30, 0
      %p57 = por %p55, %p56
      %s58 = ssub.s32 %s24, %s31
      %p59 = scmp.eq.s32.totalorder %s58, 0
      %s61 = sadd.s32 %s60, 1
      %s62 = scalar_select %p59, %s60, %s61
      %p65 = pneg %p59
      %p66 = scmp.eq.s32.totalorder %s24, 3
      %p67 = por %p65, %p66
      %p68 = scmp.ne.s32.totalorder %s60, %s63
      %p69 = scmp.eq.s32.totalorder %s24, 0
      %p70 = por %p68, %p69
      %p71 = scmp.ne.s32.totalorder %s60, %s63
      %p72 = scmp.eq.s32.totalorder %s29, 3
      %p73 = por %p71, %p72
      %p74 = scmp.ne.s32.totalorder %s63, %s64
      %p75 = scmp.eq.s32.totalorder %s29, 0
      %p76 = por %p74, %p75
      %p77 = scmp.ne.s32.totalorder %s63, %s64
      %p78 = scmp.eq.s32.totalorder %s30, 3
      %p79 = por %p77, %p78
      %p81 = scmp.ne.s32.totalorder %s64, %s80
      %p82 = scmp.eq.s32.totalorder %s30, 0
      %p83 = por %p81, %p82
      %s84 = ssub.s32 %s24, %s31
      %p85 = scmp.eq.s32.totalorder %s84, 0
      %s87 = sadd.s32 %s86, 1
      %s88 = scalar_select %p85, %s86, %s87
      %p91 = pneg %p85
      %p92 = scmp.eq.s32.totalorder %s24, 3
      %p93 = por %p91, %p92
      %p94 = scmp.ne.s32.totalorder %s86, %s89
      %p95 = scmp.eq.s32.totalorder %s24, 0
      %p96 = por %p94, %p95
      %p97 = scmp.ne.s32.totalorder %s86, %s89
      %p98 = scmp.eq.s32.totalorder %s29, 3
      %p99 = por %p97, %p98
      %p100 = scmp.ne.s32.totalorder %s89, %s90
      %p101 = scmp.eq.s32.totalorder %s29, 0
      %p102 = por %p100, %p101
      %p103 = scmp.ne.s32.totalorder %s89, %s90
      %p104 = scmp.eq.s32.totalorder %s30, 3
      %p105 = por %p103, %p104
      %p107 = scmp.ne.s32.totalorder %s90, %s106
      %p108 = scmp.eq.s32.totalorder %s30, 0
      %p109 = por %p107, %p108
      %s110 = ssub.s32 %s24, %s31
      %p111 = scmp.eq.s32.totalorder %s110, 0
      %s113 = sadd.s32 %s112, 1
      %s114 = scalar_select %p111, %s112, %s113
      %p117 = pneg %p111
      %p118 = scmp.eq.s32.totalorder %s24, 3
      %p119 = por %p117, %p118
      %p120 = scmp.ne.s32.totalorder %s112, %s115
      %p121 = scmp.eq.s32.totalorder %s24, 0
      %p122 = por %p120, %p121
      %p123 = scmp.ne.s32.totalorder %s112, %s115
      %p124 = scmp.eq.s32.totalorder %s29, 3
      %p125 = por %p123, %p124
      %p126 = scmp.ne.s32.totalorder %s115, %s116
      %p127 = scmp.eq.s32.totalorder %s29, 0
      %p128 = por %p126, %p127
      %p129 = scmp.ne.s32.totalorder %s115, %s116
      %p130 = scmp.eq.s32.totalorder %s30, 3
      %p131 = por %p129, %p130
      %p133 = scmp.ne.s32.totalorder %s116, %s132
      %p134 = scmp.eq.s32.totalorder %s30, 0
      %p135 = por %p133, %p134
      %s136 = ssub.s32 %s24, %s31
      %p137 = scmp.eq.s32.totalorder %s136, 0
      %s139 = sadd.s32 %s138, 1
      %s140 = scalar_select %p137, %s138, %s139
      %p143 = pneg %p137
      %p144 = scmp.eq.s32.totalorder %s24, 3
      %p145 = por %p143, %p144
      %p146 = scmp.ne.s32.totalorder %s138, %s141
      %p147 = scmp.eq.s32.totalorder %s24, 0
      %p148 = por %p146, %p147
      %p149 = scmp.ne.s32.totalorder %s138, %s141
      %p150 = scmp.eq.s32.totalorder %s29, 3
      %p151 = por %p149, %p150
      %p152 = scmp.ne.s32.totalorder %s141, %s142
      %p153 = scmp.eq.s32.totalorder %s29, 0
      %p154 = por %p152, %p153
      %p155 = scmp.ne.s32.totalorder %s141, %s142
      %p156 = scmp.eq.s32.totalorder %s30, 3
      %p157 = por %p155, %p156
      %p159 = scmp.ne.s32.totalorder %s142, %s158
      %p160 = scmp.eq.s32.totalorder %s30, 0
      %p161 = por %p159, %p160
      %s163 = sadd.s32 %s162, 1
      %p166 = scmp.eq.s32.totalorder %s24, 3
      %p167 = scmp.ne.s32.totalorder %s162, %s164
      %p168 = scmp.eq.s32.totalorder %s24, 0
      %p169 = por %p167, %p168
      %p170 = scmp.ne.s32.totalorder %s162, %s164
      %p171 = scmp.eq.s32.totalorder %s29, 3
      %p172 = por %p170, %p171
      %p173 = scmp.ne.s32.totalorder %s164, %s165
      %p174 = scmp.eq.s32.totalorder %s29, 0
      %p175 = por %p173, %p174
      %p176 = scmp.ne.s32.totalorder %s164, %s165
      %p177 = scmp.eq.s32.totalorder %s30, 3
      %p178 = por %p176, %p177
      %p180 = scmp.ne.s32.totalorder %s165, %s179
      %p181 = scmp.eq.s32.totalorder %s30, 0
      %p182 = por %p180, %p181
      %s184 = sadd.s32 %s183, 1
      %p187 = scmp.eq.s32.totalorder %s24, 3
      %p188 = scmp.ne.s32.totalorder %s183, %s185
      %p189 = scmp.eq.s32.totalorder %s24, 0
      %p190 = por %p188, %p189
      %p191 = scmp.ne.s32.totalorder %s183, %s185
      %p192 = scmp.eq.s32.totalorder %s29, 3
      %p193 = por %p191, %p192
      %p194 = scmp.ne.s32.totalorder %s185, %s186
      %p195 = scmp.eq.s32.totalorder %s29, 0
      %p196 = por %p194, %p195
      %p197 = scmp.ne.s32.totalorder %s185, %s186
      %p198 = scmp.eq.s32.totalorder %s30, 3
      %p199 = por %p197, %p198
      %p201 = scmp.ne.s32.totalorder %s186, %s200
      %p202 = scmp.eq.s32.totalorder %s30, 0
      %p203 = por %p201, %p202
      %s205 = sadd.s32 %s204, 1
      %p208 = scmp.eq.s32.totalorder %s24, 3
      %p209 = scmp.ne.s32.totalorder %s204, %s206
      %p210 = scmp.eq.s32.totalorder %s24, 0
      %p211 = por %p209, %p210
      %p212 = scmp.ne.s32.totalorder %s204, %s206
      %p213 = scmp.eq.s32.totalorder %s29, 3
      %p214 = por %p212, %p213
      %p215 = scmp.ne.s32.totalorder %s206, %s207
      %p216 = scmp.eq.s32.totalorder %s29, 0
      %p217 = por %p215, %p216
      %p218 = scmp.ne.s32.totalorder %s206, %s207
      %p219 = scmp.eq.s32.totalorder %s30, 3
      %p220 = por %p218, %p219
      %p222 = scmp.ne.s32.totalorder %s207, %s221
      %p223 = scmp.eq.s32.totalorder %s30, 0
      %p224 = por %p222, %p223
      %s226 = sadd.s32 %s225, 1
      %p229 = scmp.eq.s32.totalorder %s24, 3
      %p230 = scmp.ne.s32.totalorder %s225, %s227
      %p231 = scmp.eq.s32.totalorder %s24, 0
      %p232 = por %p230, %p231
      %p233 = scmp.ne.s32.totalorder %s225, %s227
      %p234 = scmp.eq.s32.totalorder %s29, 3
      %p235 = por %p233, %p234
      %p236 = scmp.ne.s32.totalorder %s227, %s228
      %p237 = scmp.eq.s32.totalorder %s29, 0
      %p238 = por %p236, %p237
      %p239 = scmp.ne.s32.totalorder %s227, %s228
      %p240 = scmp.eq.s32.totalorder %s30, 3
      %p241 = por %p239, %p240
      %p243 = scmp.ne.s32.totalorder %s228, %s242
      %p244 = scmp.eq.s32.totalorder %s30, 0
      %p245 = por %p243, %p244
      %s247 = sadd.s32 %s246, 1
      %p250 = scmp.eq.s32.totalorder %s24, 3
      %p251 = scmp.ne.s32.totalorder %s246, %s248
      %p252 = scmp.eq.s32.totalorder %s24, 0
      %p253 = por %p251, %p252
      %p254 = scmp.ne.s32.totalorder %s246, %s248
      %p255 = scmp.eq.s32.totalorder %s29, 3
      %p256 = por %p254, %p255
      %p257 = scmp.ne.s32.totalorder %s248, %s249
      %p258 = scmp.eq.s32.totalorder %s29, 0
      %p259 = por %p257, %p258
      %p260 = scmp.ne.s32.totalorder %s248, %s249
      %p261 = scmp.eq.s32.totalorder %s30, 3
      %p262 = por %p260, %p261
      %p264 = scmp.ne.s32.totalorder %s249, %s263
      %p265 = scmp.eq.s32.totalorder %s30, 0
      %p266 = por %p264, %p265
      %s268 = sadd.s32 %s267, 1
      %p271 = scmp.eq.s32.totalorder %s24, 3
      %p272 = scmp.ne.s32.totalorder %s267, %s269
      %p273 = scmp.eq.s32.totalorder %s24, 0
      %p274 = por %p272, %p273
      %p275 = scmp.ne.s32.totalorder %s267, %s269
      %p276 = scmp.eq.s32.totalorder %s29, 3
      %p277 = por %p275, %p276
      %p278 = scmp.ne.s32.totalorder %s269, %s270
      %p279 = scmp.eq.s32.totalorder %s29, 0
      %p280 = por %p278, %p279
      %p281 = scmp.ne.s32.totalorder %s269, %s270
      %p282 = scmp.eq.s32.totalorder %s30, 3
      %p283 = por %p281, %p282
      %p285 = scmp.ne.s32.totalorder %s270, %s284
      %p286 = scmp.eq.s32.totalorder %s30, 0
      %p287 = por %p285, %p286
      %s289 = sadd.s32 %s288, 1
      %p292 = scmp.eq.s32.totalorder %s24, 3
      %p293 = scmp.ne.s32.totalorder %s288, %s290
      %p294 = scmp.eq.s32.totalorder %s24, 0
      %p295 = por %p293, %p294
      %p296 = scmp.ne.s32.totalorder %s288, %s290
      %p297 = scmp.eq.s32.totalorder %s29, 3
      %p298 = por %p296, %p297
      %p299 = scmp.ne.s32.totalorder %s290, %s291
      %p300 = scmp.eq.s32.totalorder %s29, 0
      %p301 = por %p299, %p300
      %p302 = scmp.ne.s32.totalorder %s290, %s291
      %p303 = scmp.eq.s32.totalorder %s30, 3
      %p304 = por %p302, %p303
      %p306 = scmp.ne.s32.totalorder %s291, %s305
      %p307 = scmp.eq.s32.totalorder %s30, 0
      %p308 = por %p306, %p307
      %s310 = sadd.s32 %s309, 1
      %p313 = scmp.eq.s32.totalorder %s24, 3
      %p314 = scmp.ne.s32.totalorder %s309, %s311
      %p315 = scmp.eq.s32.totalorder %s24, 0
      %p316 = por %p314, %p315
      %p317 = scmp.ne.s32.totalorder %s309, %s311
      %p318 = scmp.eq.s32.totalorder %s29, 3
      %p319 = por %p317, %p318
      %p320 = scmp.ne.s32.totalorder %s311, %s312
      %p321 = scmp.eq.s32.totalorder %s29, 0
      %p322 = por %p320, %p321
      %p323 = scmp.ne.s32.totalorder %s311, %s312
      %p324 = scmp.eq.s32.totalorder %s30, 3
      %p325 = por %p323, %p324
      %p327 = scmp.ne.s32.totalorder %s312, %s326
      %p328 = scmp.eq.s32.totalorder %s30, 0
      %p329 = por %p327, %p328
      %s331 = sadd.s32 %s330, 1
      %p334 = scmp.eq.s32.totalorder %s24, 3
      %p335 = scmp.ne.s32.totalorder %s330, %s332
      %p336 = scmp.eq.s32.totalorder %s24, 0
      %p337 = por %p335, %p336
      %p338 = scmp.ne.s32.totalorder %s330, %s332
      %p339 = scmp.eq.s32.totalorder %s29, 3
      %p340 = por %p338, %p339
      %p341 = scmp.ne.s32.totalorder %s332, %s333
      %p342 = scmp.eq.s32.totalorder %s29, 0
      %p343 = por %p341, %p342
      %p344 = scmp.ne.s32.totalorder %s332, %s333
      %p345 = scmp.eq.s32.totalorder %s30, 3
      %p346 = por %p344, %p345
      %p348 = scmp.ne.s32.totalorder %s333, %s347
      %p349 = scmp.eq.s32.totalorder %s30, 0
      %p350 = por %p348, %p349
      %s351 = ssub.s32 %s24, %s31
      %p352 = scmp.eq.s32.totalorder %s351, 0
      %s354 = sadd.s32 %s353, 1
      %s355 = scalar_select %p352, %s353, %s354
      %p358 = pneg %p352
      %p359 = scmp.eq.s32.totalorder %s24, 3
      %p360 = por %p358, %p359
      %p361 = scmp.ne.s32.totalorder %s353, %s356
      %p362 = scmp.eq.s32.totalorder %s24, 0
      %p363 = por %p361, %p362
      %p364 = scmp.ne.s32.totalorder %s353, %s356
      %p365 = scmp.eq.s32.totalorder %s29, 3
      %p366 = por %p364, %p365
      %p367 = scmp.ne.s32.totalorder %s356, %s357
      %p368 = scmp.eq.s32.totalorder %s29, 0
      %p369 = por %p367, %p368
      %p370 = scmp.ne.s32.totalorder %s356, %s357
      %p371 = scmp.eq.s32.totalorder %s30, 3
      %p372 = por %p370, %p371
      %p374 = scmp.ne.s32.totalorder %s357, %s373
      %p375 = scmp.eq.s32.totalorder %s30, 0
      %p376 = por %p374, %p375
      %s377 = ssub.s32 %s24, %s31
      %p378 = scmp.eq.s32.totalorder %s377, 0
      %s380 = sadd.s32 %s379, 1
      %s381 = scalar_select %p378, %s379, %s380
      %p384 = pneg %p378
      %p385 = scmp.eq.s32.totalorder %s24, 3
      %p386 = por %p384, %p385
      %p387 = scmp.ne.s32.totalorder %s379, %s382
      %p388 = scmp.eq.s32.totalorder %s24, 0
      %p389 = por %p387, %p388
      %p390 = scmp.ne.s32.totalorder %s379, %s382
      %p391 = scmp.eq.s32.totalorder %s29, 3
      %p392 = por %p390, %p391
      %p393 = scmp.ne.s32.totalorder %s382, %s383
      %p394 = scmp.eq.s32.totalorder %s29, 0
      %p395 = por %p393, %p394
      %p396 = scmp.ne.s32.totalorder %s382, %s383
      %p397 = scmp.eq.s32.totalorder %s30, 3
      %p398 = por %p396, %p397
      %p400 = scmp.ne.s32.totalorder %s383, %s399
      %p401 = scmp.eq.s32.totalorder %s30, 0
      %p402 = por %p400, %p401
      %s403 = ssub.s32 %s24, %s31
      %p404 = scmp.eq.s32.totalorder %s403, 0
      %s406 = sadd.s32 %s405, 1
      %s407 = scalar_select %p404, %s405, %s406
      %p410 = pneg %p404
      %p411 = scmp.eq.s32.totalorder %s24, 3
      %p412 = por %p410, %p411
      %p413 = scmp.ne.s32.totalorder %s405, %s408
      %p414 = scmp.eq.s32.totalorder %s24, 0
      %p415 = por %p413, %p414
      %p416 = scmp.ne.s32.totalorder %s405, %s408
      %p417 = scmp.eq.s32.totalorder %s29, 3
      %p418 = por %p416, %p417
      %p419 = scmp.ne.s32.totalorder %s408, %s409
      %p420 = scmp.eq.s32.totalorder %s29, 0
      %p421 = por %p419, %p420
      %p422 = scmp.ne.s32.totalorder %s408, %s409
      %p423 = scmp.eq.s32.totalorder %s30, 3
      %p424 = por %p422, %p423
      %p426 = scmp.ne.s32.totalorder %s409, %s425
      %p427 = scmp.eq.s32.totalorder %s30, 0
      %p428 = por %p426, %p427
      %s429 = ssub.s32 %s24, %s31
      %p430 = scmp.eq.s32.totalorder %s429, 0
      %s432 = sadd.s32 %s431, 1
      %s433 = scalar_select %p430, %s431, %s432
      %p436 = pneg %p430
      %p437 = scmp.eq.s32.totalorder %s24, 3
      %p438 = por %p436, %p437
      %p439 = scmp.ne.s32.totalorder %s431, %s434
      %p440 = scmp.eq.s32.totalorder %s24, 0
      %p441 = por %p439, %p440
      %p442 = scmp.ne.s32.totalorder %s431, %s434
      %p443 = scmp.eq.s32.totalorder %s29, 3
      %p444 = por %p442, %p443
      %p445 = scmp.ne.s32.totalorder %s434, %s435
      %p446 = scmp.eq.s32.totalorder %s29, 0
      %p447 = por %p445, %p446
      %p448 = scmp.ne.s32.totalorder %s434, %s435
      %p449 = scmp.eq.s32.totalorder %s30, 3
      %p450 = por %p448, %p449
      %p452 = scmp.ne.s32.totalorder %s435, %s451
      %p453 = scmp.eq.s32.totalorder %s30, 0
      %p454 = por %p452, %p453
      %p455 = scmp.le.s32.totalorder 1, %s24
      %p456 = scmp.lt.s32.totalorder %s24, 5
      %p457 = pnand %p455, %p456
      %p458 = pneg %p457
      // Predicated region
      $region9: #{tpu_custom_call.1} parent=5 // pred_check
        _
      $region10: #{tpu_custom_call.1} parent=5 // pred_check_branch
        %460 = sbr.rel (%p457) target = $region12
      $region11: #{tpu_custom_call.1} parent=5 // pred_region
        %s461 = ssub.s32 %s24, 1
        // Predicated region
        $region13: #{tpu_custom_call.1} parent=11 // pred_check
          %p462 = pneg %p175
        $region14: #{tpu_custom_call.1} parent=11 // pred_check_branch
          %464 = sbr.rel (%p462) target = $region16
        $region15: #{tpu_custom_call.1} parent=11 // pred_region
          _
        $region16: #{tpu_custom_call.1} parent=11 // pred_fallthru
          _
        // Predicated region
        $region17: #{tpu_custom_call.1} parent=11 // pred_check
          %p465 = pneg %p196
        $region18: #{tpu_custom_call.1} parent=11 // pred_check_branch
          %467 = sbr.rel (%p465) target = $region20
        $region19: #{tpu_custom_call.1} parent=11 // pred_region
          _
        $region20: #{tpu_custom_call.1} parent=11 // pred_fallthru
          _
        // Predicated region
        $region21: #{tpu_custom_call.1} parent=11 // pred_check
          %p468 = pneg %p217
        $region22: #{tpu_custom_call.1} parent=11 // pred_check_branch
          %470 = sbr.rel (%p468) target = $region24
        $region23: #{tpu_custom_call.1} parent=11 // pred_region
          _
        $region24: #{tpu_custom_call.1} parent=11 // pred_fallthru
          _
        // Predicated region
        $region25: #{tpu_custom_call.1} parent=11 // pred_check
          %p471 = pneg %p238
        $region26: #{tpu_custom_call.1} parent=11 // pred_check_branch
          %473 = sbr.rel (%p471) target = $region28
        $region27: #{tpu_custom_call.1} parent=11 // pred_region
          _
        $region28: #{tpu_custom_call.1} parent=11 // pred_fallthru
          _
        // Predicated region
        $region29: #{tpu_custom_call.1} parent=11 // pred_check
          %p474 = pneg %p259
        $region30: #{tpu_custom_call.1} parent=11 // pred_check_branch
          %476 = sbr.rel (%p474) target = $region32
        $region31: #{tpu_custom_call.1} parent=11 // pred_region
          _
        $region32: #{tpu_custom_call.1} parent=11 // pred_fallthru
          _
        // Predicated region
        $region33: #{tpu_custom_call.1} parent=11 // pred_check
          %p477 = pneg %p280
        $region34: #{tpu_custom_call.1} parent=11 // pred_check_branch
          %479 = sbr.rel (%p477) target = $region36
        $region35: #{tpu_custom_call.1} parent=11 // pred_region
          _
        $region36: #{tpu_custom_call.1} parent=11 // pred_fallthru
          _
        // Predicated region
        $region37: #{tpu_custom_call.1} parent=11 // pred_check
          %p480 = pneg %p301
        $region38: #{tpu_custom_call.1} parent=11 // pred_check_branch
          %482 = sbr.rel (%p480) target = $region40
        $region39: #{tpu_custom_call.1} parent=11 // pred_region
          _
        $region40: #{tpu_custom_call.1} parent=11 // pred_fallthru
          _
        // Predicated region
        $region41: #{tpu_custom_call.1} parent=11 // pred_check
          %p483 = pneg %p322
        $region42: #{tpu_custom_call.1} parent=11 // pred_check_branch
          %485 = sbr.rel (%p483) target = $region44
        $region43: #{tpu_custom_call.1} parent=11 // pred_region
          _
        $region44: #{tpu_custom_call.1} parent=11 // pred_fallthru
          _
        // Predicated region
        $region45: #{tpu_custom_call.1} parent=11 // pred_check
          %p486 = pneg %p343
        $region46: #{tpu_custom_call.1} parent=11 // pred_check_branch
          %488 = sbr.rel (%p486) target = $region48
        $region47: #{tpu_custom_call.1} parent=11 // pred_region
          _
        $region48: #{tpu_custom_call.1} parent=11 // pred_fallthru
          _
      $region12: #{tpu_custom_call.1} parent=5 // pred_fallthru
        _
      %p489 = scmp.lt.s32.totalorder %s24, 4
      // Predicated region
      $region49: #{tpu_custom_call.1} parent=5 // pred_check
        %p490 = pneg %p489
      $region50: #{tpu_custom_call.1} parent=5 // pred_check_branch
        %492 = sbr.rel (%p490) target = $region52
      $region51: #{tpu_custom_call.1} parent=5 // pred_region
        // Predicated region
        $region53: #{tpu_custom_call.1} parent=51 // pred_check
          %p493 = pneg %p44
        $region54: #{tpu_custom_call.1} parent=51 // pred_check_branch
          %495 = sbr.rel (%p493) target = $region56
        $region55: #{tpu_custom_call.1} parent=51 // pred_region
          %s496 = smul.u32 10, %s24
          %s497 = ssub.s32 38, %s496
          %p498 = scmp.lt.s32.totalorder %s497, 10
          %s499 = scalar_select %p498, %s497, 10
          %s500 = smul.u32 128, %s499
          %p501 = scmp.lt.s32.totalorder %s496, 37
          %s502 = scalar_select %p501, %s496, 37
          %s503 = smul.addr %s502, 8
          %s504 = scalar_lea.vmem %s0, %s503
          %s505 = smul.u32 10, %s24
          %s506 = ssub.s32 38, %s505
          %p507 = scmp.lt.s32.totalorder %s506, 10
          %s508 = scalar_select %p507, %s506, 10
          %s509 = smul.u32 128, %s508
        $region56: #{tpu_custom_call.1} parent=51 // pred_fallthru
          _
        // Predicated region
        $region57: #{tpu_custom_call.1} parent=51 // pred_check
          %p510 = pneg %p70
        $region58: #{tpu_custom_call.1} parent=51 // pred_check_branch
          %512 = sbr.rel (%p510) target = $region60
        $region59: #{tpu_custom_call.1} parent=51 // pred_region
          %s513 = smul.u32 10, %s24
          %s514 = ssub.s32 38, %s513
          %p515 = scmp.lt.s32.totalorder %s514, 10
          %s516 = scalar_select %p515, %s514, 10
          %s517 = smul.u32 128, %s516
          %p518 = scmp.lt.s32.totalorder %s513, 37
          %s519 = scalar_select %p518, %s513, 37
          %s520 = smul.addr %s519, 8
          %s521 = scalar_lea.vmem %s1, %s520
          %s522 = smul.u32 10, %s24
          %s523 = ssub.s32 38, %s522
          %p524 = scmp.lt.s32.totalorder %s523, 10
          %s525 = scalar_select %p524, %s523, 10
          %s526 = smul.u32 128, %s525
        $region60: #{tpu_custom_call.1} parent=51 // pred_fallthru
          _
        // Predicated region
        $region61: #{tpu_custom_call.1} parent=51 // pred_check
          %p527 = pneg %p96
        $region62: #{tpu_custom_call.1} parent=51 // pred_check_branch
          %529 = sbr.rel (%p527) target = $region64
        $region63: #{tpu_custom_call.1} parent=51 // pred_region
          %s530 = smul.u32 10, %s24
          %s531 = ssub.s32 38, %s530
          %p532 = scmp.lt.s32.totalorder %s531, 10
          %s533 = scalar_select %p532, %s531, 10
          %s534 = smul.u32 128, %s533
          %p535 = scmp.lt.s32.totalorder %s530, 37
          %s536 = scalar_select %p535, %s530, 37
          %s537 = smul.addr %s536, 8
          %s538 = scalar_lea.vmem %s2, %s537
          %s539 = smul.u32 10, %s24
          %s540 = ssub.s32 38, %s539
          %p541 = scmp.lt.s32.totalorder %s540, 10
          %s542 = scalar_select %p541, %s540, 10
          %s543 = smul.u32 128, %s542
        $region64: #{tpu_custom_call.1} parent=51 // pred_fallthru
          _
        // Predicated region
        $region65: #{tpu_custom_call.1} parent=51 // pred_check
          %p544 = pneg %p122
        $region66: #{tpu_custom_call.1} parent=51 // pred_check_branch
          %546 = sbr.rel (%p544) target = $region68
        $region67: #{tpu_custom_call.1} parent=51 // pred_region
          %s547 = smul.u32 10, %s24
          %s548 = ssub.s32 38, %s547
          %p549 = scmp.lt.s32.totalorder %s548, 10
          %s550 = scalar_select %p549, %s548, 10
          %s551 = smul.u32 128, %s550
          %p552 = scmp.lt.s32.totalorder %s547, 37
          %s553 = scalar_select %p552, %s547, 37
          %s554 = smul.addr %s553, 8
          %s555 = scalar_lea.vmem %s3, %s554
          %s556 = smul.u32 10, %s24
          %s557 = ssub.s32 38, %s556
          %p558 = scmp.lt.s32.totalorder %s557, 10
          %s559 = scalar_select %p558, %s557, 10
          %s560 = smul.u32 128, %s559
        $region68: #{tpu_custom_call.1} parent=51 // pred_fallthru
          _
        // Predicated region
        $region69: #{tpu_custom_call.1} parent=51 // pred_check
          %p561 = pneg %p148
        $region70: #{tpu_custom_call.1} parent=51 // pred_check_branch
          %563 = sbr.rel (%p561) target = $region72
        $region71: #{tpu_custom_call.1} parent=51 // pred_region
          %s564 = smul.u32 10, %s24
          %s565 = ssub.s32 38, %s564
          %p566 = scmp.lt.s32.totalorder %s565, 10
          %s567 = scalar_select %p566, %s565, 10
          %s568 = smul.u32 128, %s567
          %p569 = scmp.lt.s32.totalorder %s564, 37
          %s570 = scalar_select %p569, %s564, 37
          %s571 = smul.addr %s570, 8
          %s572 = scalar_lea.vmem %s4, %s571
          %s573 = smul.u32 10, %s24
          %s574 = ssub.s32 38, %s573
          %p575 = scmp.lt.s32.totalorder %s574, 10
          %s576 = scalar_select %p575, %s574, 10
          %s577 = smul.u32 128, %s576
        $region72: #{tpu_custom_call.1} parent=51 // pred_fallthru
          _
      $region52: #{tpu_custom_call.1} parent=5 // pred_fallthru
        _
      %p578 = scmp.le.s32.totalorder 1, %s24
      %p579 = scmp.lt.s32.totalorder %s24, 5
      %p580 = pnand %p578, %p579
      %p581 = pneg %p580
      // Predicated region
      $region73: #{tpu_custom_call.1} parent=5 // pred_check
        _
      $region74: #{tpu_custom_call.1} parent=5 // pred_check_branch
        %583 = sbr.rel (%p580) target = $region76
      $region75: #{tpu_custom_call.1} parent=5 // pred_region
        %s584 = ssub.s32 %s24, 1
        %s585 = smul.u32 10, %s29
        %s586 = ssub.s32 38, %s585
        %p587 = scmp.lt.s32.totalorder %s586, 10
        %s588 = scalar_select %p587, %s586, 10
        %s589 = smul.u32 128, %s588
        %p590 = scmp.lt.s32.totalorder %s585, 37
        %s591 = scalar_select %p590, %s585, 37
        %s592 = smul.addr %s591, 8
        %s593 = scalar_lea.vmem %s0, %s592
        %p594 = pneg %p50
        %p595 = pneg %p47
        %s596 = smul.u32 10, %s29
        %s597 = ssub.s32 38, %s596
        %p598 = scmp.lt.s32.totalorder %s597, 10
        %s599 = scalar_select %p598, %s597, 10
        %s600 = smul.u32 128, %s599
        %p601 = scmp.lt.s32.totalorder %s596, 37
        %s602 = scalar_select %p601, %s596, 37
        %s603 = smul.addr %s602, 8
        %s604 = scalar_lea.vmem %s1, %s603
        %p605 = pneg %p76
        %p606 = pneg %p73
        %s607 = smul.u32 10, %s29
        %s608 = ssub.s32 38, %s607
        %p609 = scmp.lt.s32.totalorder %s608, 10
        %s610 = scalar_select %p609, %s608, 10
        %s611 = smul.u32 128, %s610
        %p612 = scmp.lt.s32.totalorder %s607, 37
        %s613 = scalar_select %p612, %s607, 37
        %s614 = smul.addr %s613, 8
        %s615 = scalar_lea.vmem %s2, %s614
        %p616 = pneg %p102
        %p617 = pneg %p99
        %s618 = smul.u32 10, %s29
        %s619 = ssub.s32 38, %s618
        %p620 = scmp.lt.s32.totalorder %s619, 10
        %s621 = scalar_select %p620, %s619, 10
        %s622 = smul.u32 128, %s621
        %p623 = scmp.lt.s32.totalorder %s618, 37
        %s624 = scalar_select %p623, %s618, 37
        %s625 = smul.addr %s624, 8
        %s626 = scalar_lea.vmem %s3, %s625
        %p627 = pneg %p128
        %p628 = pneg %p125
        %s629 = smul.u32 10, %s29
        %s630 = ssub.s32 38, %s629
        %p631 = scmp.lt.s32.totalorder %s630, 10
        %s632 = scalar_select %p631, %s630, 10
        %s633 = smul.u32 128, %s632
        %p634 = scmp.lt.s32.totalorder %s629, 37
        %s635 = scalar_select %p634, %s629, 37
        %s636 = smul.addr %s635, 8
        %s637 = scalar_lea.vmem %s4, %s636
        %p638 = pneg %p154
        %p639 = pneg %p151
        %p640 = pneg %p175
        %p641 = pneg %p172
        %p642 = pneg %p196
        %p643 = pneg %p193
        %p644 = pneg %p217
        %p645 = pneg %p214
        %p646 = pneg %p238
        %p647 = pneg %p235
        %p648 = pneg %p259
        %p649 = pneg %p256
        %p650 = pneg %p280
        %p651 = pneg %p277
        %p652 = pneg %p301
        %p653 = pneg %p298
        %p654 = pneg %p322
        %p655 = pneg %p319
        %p656 = pneg %p343
        %p657 = pneg %p340
        %p658 = pneg %p369
        %p659 = pneg %p366
        %s660 = sand.u32 %s356, 1
        %s661 = sand.u32 %s356, 1
        %s662 = smul.addr %s661, 80
        %s663 = scalar_lea.vmem [#allocation2], %s662
        %p664 = pneg %p395
        %p665 = pneg %p392
        %s666 = sand.u32 %s382, 1
        %s667 = sand.u32 %s382, 1
        %s668 = smul.addr %s667, 80
        %s669 = scalar_lea.vmem [#allocation3], %s668
        %p670 = pneg %p421
        %p671 = pneg %p418
        %s672 = sand.u32 %s408, 1
        %s673 = sand.u32 %s408, 1
        %s674 = smul.addr %s673, 80
        %s675 = scalar_lea.vmem [#allocation4], %s674
        %p676 = pneg %p447
        %p677 = pneg %p444
        %s678 = sand.u32 %s434, 1
        %s679 = sand.u32 %s434, 1
        %s680 = smul.addr %s679, 80
        %s681 = scalar_lea.vmem [#allocation5], %s680
        %s682 = smul.u32 10, %s29
        %s683 = ssub.s32 38, %s682
        %p684 = scmp.lt.s32.totalorder %s683, 10
        %s685 = scalar_select %p684, %s683, 10
        %s686 = smul.u32 128, %s685
        %p687 = scmp.lt.s32.totalorder %s682, 37
        %s688 = scalar_select %p687, %s682, 37
        %s689 = smul.addr %s688, 8
        %s690 = scalar_lea.vmem %s0, %s689
        %s691 = smul.u32 10, %s29
        %s692 = ssub.s32 38, %s691
        %p693 = scmp.lt.s32.totalorder %s692, 10
        %s694 = scalar_select %p693, %s692, 10
        %s695 = smul.u32 128, %s694
        %s696 = smul.u32 10, %s29
        %s697 = ssub.s32 38, %s696
        %p698 = scmp.lt.s32.totalorder %s697, 10
        %s699 = scalar_select %p698, %s697, 10
        %s700 = smul.u32 128, %s699
        %p701 = scmp.lt.s32.totalorder %s696, 37
        %s702 = scalar_select %p701, %s696, 37
        %s703 = smul.addr %s702, 8
        %s704 = scalar_lea.vmem %s1, %s703
        %s705 = smul.u32 10, %s29
        %s706 = ssub.s32 38, %s705
        %p707 = scmp.lt.s32.totalorder %s706, 10
        %s708 = scalar_select %p707, %s706, 10
        %s709 = smul.u32 128, %s708
        %s710 = smul.u32 10, %s29
        %s711 = ssub.s32 38, %s710
        %p712 = scmp.lt.s32.totalorder %s711, 10
        %s713 = scalar_select %p712, %s711, 10
        %s714 = smul.u32 128, %s713
        %p715 = scmp.lt.s32.totalorder %s710, 37
        %s716 = scalar_select %p715, %s710, 37
        %s717 = smul.addr %s716, 8
        %s718 = scalar_lea.vmem %s2, %s717
        %s719 = smul.u32 10, %s29
        %s720 = ssub.s32 38, %s719
        %p721 = scmp.lt.s32.totalorder %s720, 10
        %s722 = scalar_select %p721, %s720, 10
        %s723 = smul.u32 128, %s722
        %s724 = smul.u32 10, %s29
        %s725 = ssub.s32 38, %s724
        %p726 = scmp.lt.s32.totalorder %s725, 10
        %s727 = scalar_select %p726, %s725, 10
        %s728 = smul.u32 128, %s727
        %p729 = scmp.lt.s32.totalorder %s724, 37
        %s730 = scalar_select %p729, %s724, 37
        %s731 = smul.addr %s730, 8
        %s732 = scalar_lea.vmem %s3, %s731
        %s733 = smul.u32 10, %s29
        %s734 = ssub.s32 38, %s733
        %p735 = scmp.lt.s32.totalorder %s734, 10
        %s736 = scalar_select %p735, %s734, 10
        %s737 = smul.u32 128, %s736
        %s738 = smul.u32 10, %s29
        %s739 = ssub.s32 38, %s738
        %p740 = scmp.lt.s32.totalorder %s739, 10
        %s741 = scalar_select %p740, %s739, 10
        %s742 = smul.u32 128, %s741
        %p743 = scmp.lt.s32.totalorder %s738, 37
        %s744 = scalar_select %p743, %s738, 37
        %s745 = smul.addr %s744, 8
        %s746 = scalar_lea.vmem %s4, %s745
        %s747 = smul.u32 10, %s29
        %s748 = ssub.s32 38, %s747
        %p749 = scmp.lt.s32.totalorder %s748, 10
        %s750 = scalar_select %p749, %s748, 10
        %s751 = smul.u32 128, %s750
        %s752 = smul.u32 10, %s29
        %s753 = ssub.s32 38, %s752
        %p754 = scmp.lt.s32.totalorder %s753, 10
        %s755 = scalar_select %p754, %s753, 10
        %s756 = smul.u32 128, %s755
        %s757 = smul.u32 10, %s29
        %s758 = ssub.s32 38, %s757
        %p759 = scmp.lt.s32.totalorder %s758, 10
        %s760 = scalar_select %p759, %s758, 10
        %s761 = smul.u32 128, %s760
        %s762 = smul.u32 10, %s29
        %s763 = ssub.s32 38, %s762
        %p764 = scmp.lt.s32.totalorder %s763, 10
        %s765 = scalar_select %p764, %s763, 10
        %s766 = smul.u32 128, %s765
        %s767 = smul.u32 10, %s29
        %s768 = ssub.s32 38, %s767
        %p769 = scmp.lt.s32.totalorder %s768, 10
        %s770 = scalar_select %p769, %s768, 10
        %s771 = smul.u32 128, %s770
        %v773 = vld [vmem:[%s690] sm:$0xff]
        %v774 = vld [vmem:[%s690 + $0x8] sm:$0xff]
        %v775 = vld [vmem:[%s690 + $0x10] sm:$0xff]
        %v776 = vld [vmem:[%s690 + $0x18] sm:$0xff]
        %v777 = vld [vmem:[%s690 + $0x20] sm:$0xff]
        %v778 = vld [vmem:[%s690 + $0x28] sm:$0xff]
        %v779 = vld [vmem:[%s690 + $0x30] sm:$0xff]
        %v780 = vld [vmem:[%s690 + $0x38] sm:$0xff]
        %v781 = vld [vmem:[%s690 + $0x40] sm:$0xff]
        %v782 = vld [vmem:[%s690 + $0x48] sm:$0xff]
        %v783 = vld [vmem:[%s746] sm:$0xff]
        %v784 = vld [vmem:[%s746 + $0x8] sm:$0xff]
        %v785 = vld [vmem:[%s746 + $0x10] sm:$0xff]
        %v786 = vld [vmem:[%s746 + $0x18] sm:$0xff]
        %v787 = vld [vmem:[%s746 + $0x20] sm:$0xff]
        %v788 = vld [vmem:[%s746 + $0x28] sm:$0xff]
        %v789 = vld [vmem:[%s746 + $0x30] sm:$0xff]
        %v790 = vld [vmem:[%s746 + $0x38] sm:$0xff]
        %v791 = vld [vmem:[%s746 + $0x40] sm:$0xff]
        %v792 = vld [vmem:[%s746 + $0x48] sm:$0xff]
        %v793 = vld [vmem:[%s5] sm:$0xff]
        %v794 = vld [vmem:[%s5 + $0x8] sm:$0xff]
        %v795 = vld [vmem:[%s5 + $0x10] sm:$0xff]
        %v796 = vld [vmem:[%s5 + $0x18] sm:$0x7]
        %v797 = vld [vmem:[%s6] sm:$0xff]
        %v798 = vld [vmem:[%s6 + $0x8] sm:$0x1]
        %vm799 = vcmask 72704
        %v801 = vsel %vm799, %v783, 0
        %v804 = vsel %vm799, %v784, 0
        %v807 = vsel %vm799, %v785, 0
        %v810 = vsel %vm799, %v786, 0
        %v813 = vsel %vm799, %v787, 0
        %v816 = vsel %vm799, %v788, 0
        %v819 = vsel %vm799, %v789, 0
        %v822 = vsel %vm799, %v790, 0
        %v825 = vsel %vm799, %v791, 0
        %v828 = vsel %vm799, %v792, 0
        %vm830 = vcmask 1040384
        %v832 = vsel %vm830, %v798, 0
        %834 = vmatprep.subr.mxu0 0.0
        %835 = vmatpush1.msra.mxu0 %v797
        %836 = vmatprep.subr.mxu0 0.0
        %837 = vmatpush1.msra.mxu0 %v832
        %838 = vmatprep.subr.mxu0 0.0
        %839 = vmatpush1.msra.mxu0 0.0
        %840 = vmatprep.subr.mxu0 0.0
        %841 = vmatpush1.msra.mxu0 0.0
        %842 = vmatprep.subr.mxu0 0.0
        %843 = vmatpush1.msra.mxu0 0.0
        %844 = vmatprep.subr.mxu0 0.0
        %845 = vmatpush1.msra.mxu0 0.0
        %846 = vmatprep.subr.mxu0 0.0
        %847 = vmatpush1.msra.mxu0 0.0
        %848 = vmatprep.subr.mxu0 0.0
        %849 = vmatpush1.msra.mxu0 0.0
        %850 = vmatprep.subr.mxu0 0.0
        %851 = vmatpush1.msra.mxu0 0.0
        %852 = vmatprep.subr.mxu0 0.0
        %853 = vmatpush1.msra.mxu0 0.0
        %854 = vmatprep.subr.mxu0 0.0
        %855 = vmatpush1.msra.mxu0 0.0
        %856 = vmatprep.subr.mxu0 0.0
        %857 = vmatpush1.msra.mxu0 0.0
        %858 = vmatprep.subr.mxu0 0.0
        %859 = vmatpush1.msra.mxu0 0.0
        %860 = vmatprep.subr.mxu0 0.0
        %861 = vmatpush1.msra.mxu0 0.0
        %862 = vmatprep.subr.mxu0 0.0
        %863 = vmatpush1.msra.mxu0 0.0
        %864 = vmatprep.subr.mxu0 0.0
        %865 = vmatpush1.msra.mxu0 0.0
        %866 = vmatprep.subr.mxu0 0.0
        %867 = vmatpush1.msra.mxu0 0.0
        %868 = vmatprep.subr.mxu0 0.0
        %869 = vmatpush1.msra.mxu0 0.0
        %870 = vmatprep.subr.mxu0 0.0
        %871 = vmatpush1.msra.mxu0 0.0
        %872 = vmatprep.subr.mxu0 0.0
        %873 = vmatpush1.msra.mxu0 0.0
        %874 = vmatprep.subr.mxu0 0.0
        %875 = vmatpush1.msra.mxu0 0.0
        %876 = vmatprep.subr.mxu0 0.0
        %877 = vmatpush1.msra.mxu0 0.0
        %878 = vmatprep.subr.mxu0 0.0
        %879 = vmatpush1.msra.mxu0 0.0
        %880 = vmatprep.subr.mxu0 0.0
        %881 = vmatpush1.msra.mxu0 0.0
        %882 = vmatprep.subr.mxu0 0.0
        %883 = vmatpush1.msra.mxu0 0.0
        %884 = vmatprep.subr.mxu0 0.0
        %885 = vmatpush1.msra.mxu0 0.0
        %886 = vmatprep.subr.mxu0 0.0
        %887 = vmatpush1.msra.mxu0 0.0
        %888 = vmatprep.subr.mxu0 0.0
        %889 = vmatpush1.msra.mxu0 0.0
        %890 = vmatprep.subr.mxu0 0.0
        %891 = vmatpush1.msra.mxu0 0.0
        %892 = vmatprep.subr.mxu0 0.0
        %893 = vmatpush1.msra.mxu0 0.0
        %894 = vmatprep.subr.mxu0 0.0
        %895 = vmatpush1.msra.mxu0 0.0
        %896 = vmatprep.subr.mxu0 0.0
        %897 = vmatpush1.msra.mxu0 0.0
        %898 = vmatprep.mubr.f32.mxu0 0.0
        %899 = vmatmul.mubr.f32.gmra.mrb[0].mxu0 %v801
        %v900 = vpop.f32.mrb[0].mxu0
        %v901 = vadd.f32 0.0, %v900
        %v902 = vpop.f32.mrb[0].mxu0
        %903 = vmatprep.mubr.f32.mxu0 0.0
        %904 = vmatmul.mubr.f32.gmra.mrb[0].mxu0 %v804
        %v905 = vpop.f32.mrb[0].mxu0
        %v906 = vadd.f32 0.0, %v905
        %v907 = vpop.f32.mrb[0].mxu0
        %908 = vmatprep.mubr.f32.mxu0 0.0
        %909 = vmatmul.mubr.f32.gmra.mrb[0].mxu0 %v807
        %v910 = vpop.f32.mrb[0].mxu0
        %v911 = vadd.f32 0.0, %v910
        %v912 = vpop.f32.mrb[0].mxu0
        %913 = vmatprep.mubr.f32.mxu0 0.0
        %914 = vmatmul.mubr.f32.gmra.mrb[0].mxu0 %v810
        %v915 = vpop.f32.mrb[0].mxu0
        %v916 = vadd.f32 0.0, %v915
        %v917 = vpop.f32.mrb[0].mxu0
        %918 = vmatprep.mubr.f32.mxu0 0.0
        %919 = vmatmul.mubr.f32.gmra.mrb[0].mxu0 %v813
        %v920 = vpop.f32.mrb[0].mxu0
        %v921 = vadd.f32 0.0, %v920
        %v922 = vpop.f32.mrb[0].mxu0
        %923 = vmatprep.mubr.f32.mxu0 0.0
        %924 = vmatmul.mubr.f32.gmra.mrb[0].mxu0 %v816
        %v925 = vpop.f32.mrb[0].mxu0
        %v926 = vadd.f32 0.0, %v925
        %v927 = vpop.f32.mrb[0].mxu0
        %928 = vmatprep.mubr.f32.mxu0 0.0
        %929 = vmatmul.mubr.f32.gmra.mrb[0].mxu0 %v819
        %v930 = vpop.f32.mrb[0].mxu0
        %v931 = vadd.f32 0.0, %v930
        %v932 = vpop.f32.mrb[0].mxu0
        %933 = vmatprep.mubr.f32.mxu0 0.0
        %934 = vmatmul.mubr.f32.gmra.mrb[0].mxu0 %v822
        %v935 = vpop.f32.mrb[0].mxu0
        %v936 = vadd.f32 0.0, %v935
        %v937 = vpop.f32.mrb[0].mxu0
        %938 = vmatprep.mubr.f32.mxu0 0.0
        %939 = vmatmul.mubr.f32.gmra.mrb[0].mxu0 %v825
        %v940 = vpop.f32.mrb[0].mxu0
        %v941 = vadd.f32 0.0, %v940
        %v942 = vpop.f32.mrb[0].mxu0
        %943 = vmatprep.mubr.f32.mxu0 0.0
        %944 = vmatmul.mubr.f32.gmra.mrb[0].mxu0 %v828
        %v945 = vpop.f32.mrb[0].mxu0
        %v946 = vadd.f32 0.0, %v945
        %v947 = vpop.f32.mrb[0].mxu0
        %948 = vdwg.mxu0
        %vm949 = vcmask 220160
        %v951 = vsel %vm949, %v773, 0
        %v954 = vsel %vm949, %v774, 0
        %v957 = vsel %vm949, %v775, 0
        %v960 = vsel %vm949, %v776, 0
        %v963 = vsel %vm949, %v777, 0
        %v966 = vsel %vm949, %v778, 0
        %v969 = vsel %vm949, %v779, 0
        %v972 = vsel %vm949, %v780, 0
        %v975 = vsel %vm949, %v781, 0
        %v978 = vsel %vm949, %v782, 0
        %vm980 = vcmask 1042432
        %v982 = vsel %vm980, %v796, 0
        %984 = vmatprep.subr.mxu0 0.0
        %985 = vmatpush1.msra.mxu0 %v793
        %986 = vmatprep.subr.mxu0 0.0
        %987 = vmatpush1.msra.mxu0 %v794
        %988 = vmatprep.subr.mxu0 0.0
        %989 = vmatpush1.msra.mxu0 %v795
        %990 = vmatprep.subr.mxu0 0.0
        %991 = vmatpush1.msra.mxu0 %v982
        %992 = vmatprep.subr.mxu0 0.0
        %993 = vmatpush1.msra.mxu0 0.0
        %994 = vmatprep.subr.mxu0 0.0
        %995 = vmatpush1.msra.mxu0 0.0
        %996 = vmatprep.subr.mxu0 0.0
        %997 = vmatpush1.msra.mxu0 0.0
        %998 = vmatprep.subr.mxu0 0.0
        %999 = vmatpush1.msra.mxu0 0.0
        %1000 = vmatprep.subr.mxu0 0.0
        %1001 = vmatpush1.msra.mxu0 0.0
        %1002 = vmatprep.subr.mxu0 0.0
        %1003 = vmatpush1.msra.mxu0 0.0
        %1004 = vmatprep.subr.mxu0 0.0
        %1005 = vmatpush1.msra.mxu0 0.0
        %1006 = vmatprep.subr.mxu0 0.0
        %1007 = vmatpush1.msra.mxu0 0.0
        %1008 = vmatprep.subr.mxu0 0.0
        %1009 = vmatpush1.msra.mxu0 0.0
        %1010 = vmatprep.subr.mxu0 0.0
        %1011 = vmatpush1.msra.mxu0 0.0
        %1012 = vmatprep.subr.mxu0 0.0
        %1013 = vmatpush1.msra.mxu0 0.0
        %1014 = vmatprep.subr.mxu0 0.0
        %1015 = vmatpush1.msra.mxu0 0.0
        %1016 = vmatprep.subr.mxu0 0.0
        %1017 = vmatpush1.msra.mxu0 0.0
        %1018 = vmatprep.subr.mxu0 0.0
        %1019 = vmatpush1.msra.mxu0 0.0
        %1020 = vmatprep.subr.mxu0 0.0
        %1021 = vmatpush1.msra.mxu0 0.0
        %1022 = vmatprep.subr.mxu0 0.0
        %1023 = vmatpush1.msra.mxu0 0.0
        %1024 = vmatprep.subr.mxu0 0.0
        %1025 = vmatpush1.msra.mxu0 0.0
        %1026 = vmatprep.subr.mxu0 0.0
        %1027 = vmatpush1.msra.mxu0 0.0
        %1028 = vmatprep.subr.mxu0 0.0
        %1029 = vmatpush1.msra.mxu0 0.0
        %1030 = vmatprep.subr.mxu0 0.0
        %1031 = vmatpush1.msra.mxu0 0.0
        %1032 = vmatprep.subr.mxu0 0.0
        %1033 = vmatpush1.msra.mxu0 0.0
        %1034 = vmatprep.subr.mxu0 0.0
        %1035 = vmatpush1.msra.mxu0 0.0
        %1036 = vmatprep.subr.mxu0 0.0
        %1037 = vmatpush1.msra.mxu0 0.0
        %1038 = vmatprep.subr.mxu0 0.0
        %1039 = vmatpush1.msra.mxu0 0.0
        %1040 = vmatprep.subr.mxu0 0.0
        %1041 = vmatpush1.msra.mxu0 0.0
        %1042 = vmatprep.subr.mxu0 0.0
        %1043 = vmatpush1.msra.mxu0 0.0
        %1044 = vmatprep.subr.mxu0 0.0
        %1045 = vmatpush1.msra.mxu0 0.0
        %1046 = vmatprep.subr.mxu0 0.0
        %1047 = vmatpush1.msra.mxu0 0.0
        %1048 = vmatprep.mubr.f32.mxu0 0.0
        %1049 = vmatmul.mubr.f32.gmra.mrb[0].mxu0 %v951
        %v1050 = vpop.f32.mrb[0].mxu0
        %v1051 = vadd.f32 %v901, %v1050
        %v1052 = vpop.f32.mrb[0].mxu0
        %1053 = vmatprep.mubr.f32.mxu0 0.0
        %1054 = vmatmul.mubr.f32.gmra.mrb[0].mxu0 %v954
        %v1055 = vpop.f32.mrb[0].mxu0
        %v1056 = vadd.f32 %v906, %v1055
        %v1057 = vpop.f32.mrb[0].mxu0
        %1058 = vmatprep.mubr.f32.mxu0 0.0
        %1059 = vmatmul.mubr.f32.gmra.mrb[0].mxu0 %v957
        %v1060 = vpop.f32.mrb[0].mxu0
        %v1061 = vadd.f32 %v911, %v1060
        %v1062 = vpop.f32.mrb[0].mxu0
        %1063 = vmatprep.mubr.f32.mxu0 0.0
        %1064 = vmatmul.mubr.f32.gmra.mrb[0].mxu0 %v960
        %v1065 = vpop.f32.mrb[0].mxu0
        %v1066 = vadd.f32 %v916, %v1065
        %v1067 = vpop.f32.mrb[0].mxu0
        %1068 = vmatprep.mubr.f32.mxu0 0.0
        %1069 = vmatmul.mubr.f32.gmra.mrb[0].mxu0 %v963
        %v1070 = vpop.f32.mrb[0].mxu0
        %v1071 = vadd.f32 %v921, %v1070
        %v1072 = vpop.f32.mrb[0].mxu0
        %1073 = vmatprep.mubr.f32.mxu0 0.0
        %1074 = vmatmul.mubr.f32.gmra.mrb[0].mxu0 %v966
        %v1075 = vpop.f32.mrb[0].mxu0
        %v1076 = vadd.f32 %v926, %v1075
        %v1077 = vpop.f32.mrb[0].mxu0
        %1078 = vmatprep.mubr.f32.mxu0 0.0
        %1079 = vmatmul.mubr.f32.gmra.mrb[0].mxu0 %v969
        %v1080 = vpop.f32.mrb[0].mxu0
        %v1081 = vadd.f32 %v931, %v1080
        %v1082 = vpop.f32.mrb[0].mxu0
        %1083 = vmatprep.mubr.f32.mxu0 0.0
        %1084 = vmatmul.mubr.f32.gmra.mrb[0].mxu0 %v972
        %v1085 = vpop.f32.mrb[0].mxu0
        %v1086 = vadd.f32 %v936, %v1085
        %v1087 = vpop.f32.mrb[0].mxu0
        %1088 = vmatprep.mubr.f32.mxu0 0.0
        %1089 = vmatmul.mubr.f32.gmra.mrb[0].mxu0 %v975
        %v1090 = vpop.f32.mrb[0].mxu0
        %v1091 = vadd.f32 %v941, %v1090
        %v1092 = vpop.f32.mrb[0].mxu0
        %1093 = vmatprep.mubr.f32.mxu0 0.0
        %1094 = vmatmul.mubr.f32.gmra.mrb[0].mxu0 %v978
        %v1095 = vpop.f32.mrb[0].mxu0
        %v1096 = vadd.f32 %v946, %v1095
        %v1097 = vpop.f32.mrb[0].mxu0
        %1098 = vdwg.mxu0
        %v1099 = vld [vmem:[%s7] sm:$0x1]
        %v1101 = vlaneseq
        %v1102 = vshrl.u32 %v1101, 7
        %v1103 = vsub.s32 0, %v1102
        %v1104 = vrot.slane %v1099, %v1103
        %v1106 = vadd.f32 %v1051, %v1104
        %v1107 = vadd.f32 %v1056, %v1104
        %v1108 = vadd.f32 %v1061, %v1104
        %v1109 = vadd.f32 %v1066, %v1104
        %v1110 = vadd.f32 %v1071, %v1104
        %v1111 = vadd.f32 %v1076, %v1104
        %v1112 = vadd.f32 %v1081, %v1104
        %v1113 = vadd.f32 %v1086, %v1104
        %v1114 = vadd.f32 %v1091, %v1104
        %v1115 = vadd.f32 %v1096, %v1104
        %v1116 = vmax.f32 %v1106, 0.0
        %v1117 = vmax.f32 %v1107, 0.0
        %v1118 = vmax.f32 %v1108, 0.0
        %v1119 = vmax.f32 %v1109, 0.0
        %v1120 = vmax.f32 %v1110, 0.0
        %v1121 = vmax.f32 %v1111, 0.0
        %v1122 = vmax.f32 %v1112, 0.0
        %v1123 = vmax.f32 %v1113, 0.0
        %v1124 = vmax.f32 %v1114, 0.0
        %v1125 = vmax.f32 %v1115, 0.0
        %v1126 = vpack.c.bf16 %v1117, %v1116
        %v1127 = vpack.c.bf16 %v1119, %v1118
        %v1128 = vpack.c.bf16 %v1121, %v1120
        %v1129 = vpack.c.bf16 %v1123, %v1122
        %v1130 = vpack.c.bf16 %v1125, %v1124
        %v1131 = vld [vmem:[%s8] sm:$0xf]
        %v1132 = vld [vmem:[%s8 + $0x4] sm:$0xf]
        %v1133 = vld [vmem:[%s8 + $0x8] sm:$0xf]
        %v1134 = vld [vmem:[%s8 + $0xc] sm:$0xf]
        %v1135 = vld [vmem:[%s8 + $0x10] sm:$0xf]
        %v1136 = vld [vmem:[%s8 + $0x14] sm:$0xf]
        %v1137 = vld [vmem:[%s8 + $0x18] sm:$0xf]
        %v1138 = vld [vmem:[%s8 + $0x1c] sm:$0xf]
        %v1139 = vld [vmem:[%s8 + $0x20] sm:$0xf]
        %v1140 = vld [vmem:[%s8 + $0x24] sm:$0xf]
        %v1141 = vld [vmem:[%s8 + $0x28] sm:$0xf]
        %v1142 = vld [vmem:[%s8 + $0x2c] sm:$0xf]
        %v1143 = vld [vmem:[%s8 + $0x30] sm:$0xf]
        %v1144 = vld [vmem:[%s8 + $0x34] sm:$0xf]
        %v1145 = vld [vmem:[%s8 + $0x38] sm:$0xf]
        %v1146 = vld [vmem:[%s8 + $0x3c] sm:$0xf]
        %v1147 = vld [vmem:[%s9] sm:$0x1]
        %v1149 = vlaneseq
        %v1150 = vshrl.u32 %v1149, 7
        %v1151 = vsub.s32 0, %v1150
        %v1152 = vrot.slane %v1147, %v1151
        %v1170 = vunpack.c.l.b16 %v1131
        %v1171 = vunpack.c.l.b16 %v1132
        %v1172 = vunpack.c.l.b16 %v1133
        %v1173 = vunpack.c.l.b16 %v1134
        %v1174 = vunpack.c.l.b16 %v1135
        %v1175 = vunpack.c.l.b16 %v1136
        %v1176 = vunpack.c.l.b16 %v1137
        %v1177 = vunpack.c.l.b16 %v1138
        %v1178 = vunpack.c.l.b16 %v1139
        %v1179 = vunpack.c.l.b16 %v1140
        %v1180 = vunpack.c.l.b16 %v1141
        %v1181 = vunpack.c.l.b16 %v1142
        %v1182 = vunpack.c.l.b16 %v1143
        %v1183 = vunpack.c.l.b16 %v1144
        %v1184 = vunpack.c.l.b16 %v1145
        %v1185 = vunpack.c.l.b16 %v1146
        %v1186 = vpack.c.b16 %v1171, %v1170
        %v1187 = vpack.c.b16 %v1173, %v1172
        %v1188 = vpack.c.b16 %v1175, %v1174
        %v1189 = vpack.c.b16 %v1177, %v1176
        %v1190 = vpack.c.b16 %v1179, %v1178
        %v1191 = vpack.c.b16 %v1181, %v1180
        %v1192 = vpack.c.b16 %v1183, %v1182
        %v1193 = vpack.c.b16 %v1185, %v1184
        %1202 = vmatprep.subr.bf16.mxu0 0
        %1203 = vmatpush1.bf16.msra.mxu0 %v1186
        %1204 = vmatprep.subr.bf16.mxu0 0
        %1205 = vmatpush1.bf16.msra.mxu0 %v1187
        %1206 = vmatprep.subr.bf16.mxu0 0
        %1207 = vmatpush1.bf16.msra.mxu0 %v1188
        %1208 = vmatprep.subr.bf16.mxu0 0
        %1209 = vmatpush1.bf16.msra.mxu0 %v1189
        %1210 = vmatprep.subr.bf16.mxu0 0
        %1211 = vmatpush1.bf16.msra.mxu0 %v1190
        %1212 = vmatprep.subr.bf16.mxu0 0
        %1213 = vmatpush1.bf16.msra.mxu0 %v1191
        %1214 = vmatprep.subr.bf16.mxu0 0
        %1215 = vmatpush1.bf16.msra.mxu0 %v1192
        %1216 = vmatprep.subr.bf16.mxu0 0
        %1217 = vmatpush1.bf16.msra.mxu0 %v1193
        %1218 = vmatprep.subr.bf16.mxu0 0
        %1219 = vmatpush1.bf16.msra.mxu0 0
        %1220 = vmatprep.subr.bf16.mxu0 0
        %1221 = vmatpush1.bf16.msra.mxu0 0
        %1222 = vmatprep.subr.bf16.mxu0 0
        %1223 = vmatpush1.bf16.msra.mxu0 0
        %1224 = vmatprep.subr.bf16.mxu0 0
        %1225 = vmatpush1.bf16.msra.mxu0 0
        %1226 = vmatprep.subr.bf16.mxu0 0
        %1227 = vmatpush1.bf16.msra.mxu0 0
        %1228 = vmatprep.subr.bf16.mxu0 0
        %1229 = vmatpush1.bf16.msra.mxu0 0
        %1230 = vmatprep.subr.bf16.mxu0 0
        %1231 = vmatpush1.bf16.msra.mxu0 0
        %1232 = vmatprep.subr.bf16.mxu0 0
        %1233 = vmatpush1.bf16.msra.mxu0 0
        %1234 = vmatprep.mubr.bf16.mxu0 0
        %1235 = vmatmul.mubr.bf16.gmra.mrb[0].mxu0 %v1126
        %v1236 = vpop.f32.mrb[0].mxu0
        %v1237 = vadd.f32 %v1152, %v1236
        %v1238 = vpop.f32.mrb[0].mxu0
        %v1239 = vpop.f32.mrb[0].mxu0
        %v1240 = vadd.f32 %v1152, %v1239
        %v1241 = vpop.f32.mrb[0].mxu0
        %1242 = vmatprep.mubr.bf16.mxu0 0
        %1243 = vmatmul.mubr.bf16.gmra.mrb[0].mxu0 %v1127
        %v1244 = vpop.f32.mrb[0].mxu0
        %v1245 = vadd.f32 %v1152, %v1244
        %v1246 = vpop.f32.mrb[0].mxu0
        %v1247 = vpop.f32.mrb[0].mxu0
        %v1248 = vadd.f32 %v1152, %v1247
        %v1249 = vpop.f32.mrb[0].mxu0
        %1250 = vmatprep.mubr.bf16.mxu0 0
        %1251 = vmatmul.mubr.bf16.gmra.mrb[0].mxu0 %v1128
        %v1252 = vpop.f32.mrb[0].mxu0
        %v1253 = vadd.f32 %v1152, %v1252
        %v1254 = vpop.f32.mrb[0].mxu0
        %v1255 = vpop.f32.mrb[0].mxu0
        %v1256 = vadd.f32 %v1152, %v1255
        %v1257 = vpop.f32.mrb[0].mxu0
        %1258 = vmatprep.mubr.bf16.mxu0 0
        %1259 = vmatmul.mubr.bf16.gmra.mrb[0].mxu0 %v1129
        %v1260 = vpop.f32.mrb[0].mxu0
        %v1261 = vadd.f32 %v1152, %v1260
        %v1262 = vpop.f32.mrb[0].mxu0
        %v1263 = vpop.f32.mrb[0].mxu0
        %v1264 = vadd.f32 %v1152, %v1263
        %v1265 = vpop.f32.mrb[0].mxu0
        %1266 = vmatprep.mubr.bf16.mxu0 0
        %1267 = vmatmul.mubr.bf16.gmra.mrb[0].mxu0 %v1130
        %v1268 = vpop.f32.mrb[0].mxu0
        %v1269 = vadd.f32 %v1152, %v1268
        %v1270 = vpop.f32.mrb[0].mxu0
        %v1271 = vpop.f32.mrb[0].mxu0
        %v1272 = vadd.f32 %v1152, %v1271
        %v1273 = vpop.f32.mrb[0].mxu0
        %1274 = vdwg.mxu0
        %v1275 = vmax.f32 %v1237, 0.0
        %v1276 = vmax.f32 %v1240, 0.0
        %v1277 = vmax.f32 %v1245, 0.0
        %v1278 = vmax.f32 %v1248, 0.0
        %v1279 = vmax.f32 %v1253, 0.0
        %v1280 = vmax.f32 %v1256, 0.0
        %v1281 = vmax.f32 %v1261, 0.0
        %v1282 = vmax.f32 %v1264, 0.0
        %v1283 = vmax.f32 %v1269, 0.0
        %v1284 = vmax.f32 %v1272, 0.0
        %v1285 = vpack.c.bf16 %v1276, %v1275
        %v1286 = vpack.c.bf16 %v1278, %v1277
        %v1287 = vpack.c.bf16 %v1280, %v1279
        %v1288 = vpack.c.bf16 %v1282, %v1281
        %v1289 = vpack.c.bf16 %v1284, %v1283
        %s1290 = scalar_lea.vmem %s8, 64
        %v1291 = vld [vmem:[%s1290] sm:$0xf]
        %v1292 = vld [vmem:[%s1290 + $0x4] sm:$0xf]
        %v1293 = vld [vmem:[%s1290 + $0x8] sm:$0xf]
        %v1294 = vld [vmem:[%s1290 + $0xc] sm:$0xf]
        %v1295 = vld [vmem:[%s1290 + $0x10] sm:$0xf]
        %v1296 = vld [vmem:[%s1290 + $0x14] sm:$0xf]
        %v1297 = vld [vmem:[%s1290 + $0x18] sm:$0xf]
        %v1298 = vld [vmem:[%s1290 + $0x1c] sm:$0xf]
        %v1299 = vld [vmem:[%s1290 + $0x20] sm:$0xf]
        %v1300 = vld [vmem:[%s1290 + $0x24] sm:$0xf]
        %v1301 = vld [vmem:[%s1290 + $0x28] sm:$0xf]
        %v1302 = vld [vmem:[%s1290 + $0x2c] sm:$0xf]
        %v1303 = vld [vmem:[%s1290 + $0x30] sm:$0xf]
        %v1304 = vld [vmem:[%s1290 + $0x34] sm:$0xf]
        %v1305 = vld [vmem:[%s1290 + $0x38] sm:$0xf]
        %v1306 = vld [vmem:[%s1290 + $0x3c] sm:$0xf]
        %s1307 = scalar_lea.vmem %s9, 1
        %v1308 = vld [vmem:[%s1307] sm:$0x1]
        %v1310 = vlaneseq
        %v1311 = vshrl.u32 %v1310, 7
        %v1312 = vsub.s32 0, %v1311
        %v1313 = vrot.slane %v1308, %v1312
        %v1331 = vunpack.c.l.b16 %v1291
        %v1332 = vunpack.c.l.b16 %v1292
        %v1333 = vunpack.c.l.b16 %v1293
        %v1334 = vunpack.c.l.b16 %v1294
        %v1335 = vunpack.c.l.b16 %v1295
        %v1336 = vunpack.c.l.b16 %v1296
        %v1337 = vunpack.c.l.b16 %v1297
        %v1338 = vunpack.c.l.b16 %v1298
        %v1339 = vunpack.c.l.b16 %v1299
        %v1340 = vunpack.c.l.b16 %v1300
        %v1341 = vunpack.c.l.b16 %v1301
        %v1342 = vunpack.c.l.b16 %v1302
        %v1343 = vunpack.c.l.b16 %v1303
        %v1344 = vunpack.c.l.b16 %v1304
        %v1345 = vunpack.c.l.b16 %v1305
        %v1346 = vunpack.c.l.b16 %v1306
        %v1347 = vpack.c.b16 %v1332, %v1331
        %v1348 = vpack.c.b16 %v1334, %v1333
        %v1349 = vpack.c.b16 %v1336, %v1335
        %v1350 = vpack.c.b16 %v1338, %v1337
        %v1351 = vpack.c.b16 %v1340, %v1339
        %v1352 = vpack.c.b16 %v1342, %v1341
        %v1353 = vpack.c.b16 %v1344, %v1343
        %v1354 = vpack.c.b16 %v1346, %v1345
        %1363 = vmatprep.subr.bf16.mxu0 0
        %1364 = vmatpush1.bf16.msra.mxu0 %v1347
        %1365 = vmatprep.subr.bf16.mxu0 0
        %1366 = vmatpush1.bf16.msra.mxu0 %v1348
        %1367 = vmatprep.subr.bf16.mxu0 0
        %1368 = vmatpush1.bf16.msra.mxu0 %v1349
        %1369 = vmatprep.subr.bf16.mxu0 0
        %1370 = vmatpush1.bf16.msra.mxu0 %v1350
        %1371 = vmatprep.subr.bf16.mxu0 0
        %1372 = vmatpush1.bf16.msra.mxu0 %v1351
        %1373 = vmatprep.subr.bf16.mxu0 0
        %1374 = vmatpush1.bf16.msra.mxu0 %v1352
        %1375 = vmatprep.subr.bf16.mxu0 0
        %1376 = vmatpush1.bf16.msra.mxu0 %v1353
        %1377 = vmatprep.subr.bf16.mxu0 0
        %1378 = vmatpush1.bf16.msra.mxu0 %v1354
        %1379 = vmatprep.subr.bf16.mxu0 0
        %1380 = vmatpush1.bf16.msra.mxu0 0
        %1381 = vmatprep.subr.bf16.mxu0 0
        %1382 = vmatpush1.bf16.msra.mxu0 0
        %1383 = vmatprep.subr.bf16.mxu0 0
        %1384 = vmatpush1.bf16.msra.mxu0 0
        %1385 = vmatprep.subr.bf16.mxu0 0
        %1386 = vmatpush1.bf16.msra.mxu0 0
        %1387 = vmatprep.subr.bf16.mxu0 0
        %1388 = vmatpush1.bf16.msra.mxu0 0
        %1389 = vmatprep.subr.bf16.mxu0 0
        %1390 = vmatpush1.bf16.msra.mxu0 0
        %1391 = vmatprep.subr.bf16.mxu0 0
        %1392 = vmatpush1.bf16.msra.mxu0 0
        %1393 = vmatprep.subr.bf16.mxu0 0
        %1394 = vmatpush1.bf16.msra.mxu0 0
        %1395 = vmatprep.mubr.bf16.mxu0 0
        %1396 = vmatmul.mubr.bf16.gmra.mrb[0].mxu0 %v1285
        %v1397 = vpop.f32.mrb[0].mxu0
        %v1398 = vadd.f32 %v1313, %v1397
        %v1399 = vpop.f32.mrb[0].mxu0
        %v1400 = vpop.f32.mrb[0].mxu0
        %v1401 = vadd.f32 %v1313, %v1400
        %v1402 = vpop.f32.mrb[0].mxu0
        %1403 = vmatprep.mubr.bf16.mxu0 0
        %1404 = vmatmul.mubr.bf16.gmra.mrb[0].mxu0 %v1286
        %v1405 = vpop.f32.mrb[0].mxu0
        %v1406 = vadd.f32 %v1313, %v1405
        %v1407 = vpop.f32.mrb[0].mxu0
        %v1408 = vpop.f32.mrb[0].mxu0
        %v1409 = vadd.f32 %v1313, %v1408
        %v1410 = vpop.f32.mrb[0].mxu0
        %1411 = vmatprep.mubr.bf16.mxu0 0
        %1412 = vmatmul.mubr.bf16.gmra.mrb[0].mxu0 %v1287
        %v1413 = vpop.f32.mrb[0].mxu0
        %v1414 = vadd.f32 %v1313, %v1413
        %v1415 = vpop.f32.mrb[0].mxu0
        %v1416 = vpop.f32.mrb[0].mxu0
        %v1417 = vadd.f32 %v1313, %v1416
        %v1418 = vpop.f32.mrb[0].mxu0
        %1419 = vmatprep.mubr.bf16.mxu0 0
        %1420 = vmatmul.mubr.bf16.gmra.mrb[0].mxu0 %v1288
        %v1421 = vpop.f32.mrb[0].mxu0
        %v1422 = vadd.f32 %v1313, %v1421
        %v1423 = vpop.f32.mrb[0].mxu0
        %v1424 = vpop.f32.mrb[0].mxu0
        %v1425 = vadd.f32 %v1313, %v1424
        %v1426 = vpop.f32.mrb[0].mxu0
        %1427 = vmatprep.mubr.bf16.mxu0 0
        %1428 = vmatmul.mubr.bf16.gmra.mrb[0].mxu0 %v1289
        %v1429 = vpop.f32.mrb[0].mxu0
        %v1430 = vadd.f32 %v1313, %v1429
        %v1431 = vpop.f32.mrb[0].mxu0
        %v1432 = vpop.f32.mrb[0].mxu0
        %v1433 = vadd.f32 %v1313, %v1432
        %v1434 = vpop.f32.mrb[0].mxu0
        %1435 = vdwg.mxu0
        %v1436 = vmax.f32 %v1398, 0.0
        %v1437 = vmax.f32 %v1401, 0.0
        %v1438 = vmax.f32 %v1406, 0.0
        %v1439 = vmax.f32 %v1409, 0.0
        %v1440 = vmax.f32 %v1414, 0.0
        %v1441 = vmax.f32 %v1417, 0.0
        %v1442 = vmax.f32 %v1422, 0.0
        %v1443 = vmax.f32 %v1425, 0.0
        %v1444 = vmax.f32 %v1430, 0.0
        %v1445 = vmax.f32 %v1433, 0.0
        %v1446 = vpack.c.bf16 %v1437, %v1436
        %v1447 = vpack.c.bf16 %v1439, %v1438
        %v1448 = vpack.c.bf16 %v1441, %v1440
        %v1449 = vpack.c.bf16 %v1443, %v1442
        %v1450 = vpack.c.bf16 %v1445, %v1444
        %s1451 = scalar_lea.vmem %s8, 128
        %v1452 = vld [vmem:[%s1451] sm:$0xf]
        %v1453 = vld [vmem:[%s1451 + $0x4] sm:$0xf]
        %v1454 = vld [vmem:[%s1451 + $0x8] sm:$0xf]
        %v1455 = vld [vmem:[%s1451 + $0xc] sm:$0xf]
        %v1456 = vld [vmem:[%s1451 + $0x10] sm:$0xf]
        %v1457 = vld [vmem:[%s1451 + $0x14] sm:$0xf]
        %v1458 = vld [vmem:[%s1451 + $0x18] sm:$0xf]
        %v1459 = vld [vmem:[%s1451 + $0x1c] sm:$0xf]
        %v1460 = vld [vmem:[%s1451 + $0x20] sm:$0xf]
        %v1461 = vld [vmem:[%s1451 + $0x24] sm:$0xf]
        %v1462 = vld [vmem:[%s1451 + $0x28] sm:$0xf]
        %v1463 = vld [vmem:[%s1451 + $0x2c] sm:$0xf]
        %v1464 = vld [vmem:[%s1451 + $0x30] sm:$0xf]
        %v1465 = vld [vmem:[%s1451 + $0x34] sm:$0xf]
        %v1466 = vld [vmem:[%s1451 + $0x38] sm:$0xf]
        %v1467 = vld [vmem:[%s1451 + $0x3c] sm:$0xf]
        %s1468 = scalar_lea.vmem %s9, 2
        %v1469 = vld [vmem:[%s1468] sm:$0x1]
        %v1471 = vlaneseq
        %v1472 = vshrl.u32 %v1471, 7
        %v1473 = vsub.s32 0, %v1472
        %v1474 = vrot.slane %v1469, %v1473
        %v1492 = vunpack.c.l.b16 %v1452
        %v1493 = vunpack.c.l.b16 %v1453
        %v1494 = vunpack.c.l.b16 %v1454
        %v1495 = vunpack.c.l.b16 %v1455
        %v1496 = vunpack.c.l.b16 %v1456
        %v1497 = vunpack.c.l.b16 %v1457
        %v1498 = vunpack.c.l.b16 %v1458
        %v1499 = vunpack.c.l.b16 %v1459
        %v1500 = vunpack.c.l.b16 %v1460
        %v1501 = vunpack.c.l.b16 %v1461
        %v1502 = vunpack.c.l.b16 %v1462
        %v1503 = vunpack.c.l.b16 %v1463
        %v1504 = vunpack.c.l.b16 %v1464
        %v1505 = vunpack.c.l.b16 %v1465
        %v1506 = vunpack.c.l.b16 %v1466
        %v1507 = vunpack.c.l.b16 %v1467
        %v1508 = vpack.c.b16 %v1493, %v1492
        %v1509 = vpack.c.b16 %v1495, %v1494
        %v1510 = vpack.c.b16 %v1497, %v1496
        %v1511 = vpack.c.b16 %v1499, %v1498
        %v1512 = vpack.c.b16 %v1501, %v1500
        %v1513 = vpack.c.b16 %v1503, %v1502
        %v1514 = vpack.c.b16 %v1505, %v1504
        %v1515 = vpack.c.b16 %v1507, %v1506
        %1524 = vmatprep.subr.bf16.mxu0 0
        %1525 = vmatpush1.bf16.msra.mxu0 %v1508
        %1526 = vmatprep.subr.bf16.mxu0 0
        %1527 = vmatpush1.bf16.msra.mxu0 %v1509
        %1528 = vmatprep.subr.bf16.mxu0 0
        %1529 = vmatpush1.bf16.msra.mxu0 %v1510
        %1530 = vmatprep.subr.bf16.mxu0 0
        %1531 = vmatpush1.bf16.msra.mxu0 %v1511
        %1532 = vmatprep.subr.bf16.mxu0 0
        %1533 = vmatpush1.bf16.msra.mxu0 %v1512
        %1534 = vmatprep.subr.bf16.mxu0 0
        %1535 = vmatpush1.bf16.msra.mxu0 %v1513
        %1536 = vmatprep.subr.bf16.mxu0 0
        %1537 = vmatpush1.bf16.msra.mxu0 %v1514
        %1538 = vmatprep.subr.bf16.mxu0 0
        %1539 = vmatpush1.bf16.msra.mxu0 %v1515
        %1540 = vmatprep.subr.bf16.mxu0 0
        %1541 = vmatpush1.bf16.msra.mxu0 0
        %1542 = vmatprep.subr.bf16.mxu0 0
        %1543 = vmatpush1.bf16.msra.mxu0 0
        %1544 = vmatprep.subr.bf16.mxu0 0
        %1545 = vmatpush1.bf16.msra.mxu0 0
        %1546 = vmatprep.subr.bf16.mxu0 0
        %1547 = vmatpush1.bf16.msra.mxu0 0
        %1548 = vmatprep.subr.bf16.mxu0 0
        %1549 = vmatpush1.bf16.msra.mxu0 0
        %1550 = vmatprep.subr.bf16.mxu0 0
        %1551 = vmatpush1.bf16.msra.mxu0 0
        %1552 = vmatprep.subr.bf16.mxu0 0
        %1553 = vmatpush1.bf16.msra.mxu0 0
        %1554 = vmatprep.subr.bf16.mxu0 0
        %1555 = vmatpush1.bf16.msra.mxu0 0
        %1556 = vmatprep.mubr.bf16.mxu0 0
        %1557 = vmatmul.mubr.bf16.gmra.mrb[0].mxu0 %v1446
        %v1558 = vpop.f32.mrb[0].mxu0
        %v1559 = vadd.f32 %v1474, %v1558
        %v1560 = vpop.f32.mrb[0].mxu0
        %v1561 = vpop.f32.mrb[0].mxu0
        %v1562 = vadd.f32 %v1474, %v1561
        %v1563 = vpop.f32.mrb[0].mxu0
        %1564 = vmatprep.mubr.bf16.mxu0 0
        %1565 = vmatmul.mubr.bf16.gmra.mrb[0].mxu0 %v1447
        %v1566 = vpop.f32.mrb[0].mxu0
        %v1567 = vadd.f32 %v1474, %v1566
        %v1568 = vpop.f32.mrb[0].mxu0
        %v1569 = vpop.f32.mrb[0].mxu0
        %v1570 = vadd.f32 %v1474, %v1569
        %v1571 = vpop.f32.mrb[0].mxu0
        %1572 = vmatprep.mubr.bf16.mxu0 0
        %1573 = vmatmul.mubr.bf16.gmra.mrb[0].mxu0 %v1448
        %v1574 = vpop.f32.mrb[0].mxu0
        %v1575 = vadd.f32 %v1474, %v1574
        %v1576 = vpop.f32.mrb[0].mxu0
        %v1577 = vpop.f32.mrb[0].mxu0
        %v1578 = vadd.f32 %v1474, %v1577
        %v1579 = vpop.f32.mrb[0].mxu0
        %1580 = vmatprep.mubr.bf16.mxu0 0
        %1581 = vmatmul.mubr.bf16.gmra.mrb[0].mxu0 %v1449
        %v1582 = vpop.f32.mrb[0].mxu0
        %v1583 = vadd.f32 %v1474, %v1582
        %v1584 = vpop.f32.mrb[0].mxu0
        %v1585 = vpop.f32.mrb[0].mxu0
        %v1586 = vadd.f32 %v1474, %v1585
        %v1587 = vpop.f32.mrb[0].mxu0
        %1588 = vmatprep.mubr.bf16.mxu0 0
        %1589 = vmatmul.mubr.bf16.gmra.mrb[0].mxu0 %v1450
        %v1590 = vpop.f32.mrb[0].mxu0
        %v1591 = vadd.f32 %v1474, %v1590
        %v1592 = vpop.f32.mrb[0].mxu0
        %v1593 = vpop.f32.mrb[0].mxu0
        %v1594 = vadd.f32 %v1474, %v1593
        %v1595 = vpop.f32.mrb[0].mxu0
        %1596 = vdwg.mxu0
        %v1597 = vmax.f32 %v1559, 0.0
        %v1598 = vmax.f32 %v1562, 0.0
        %v1599 = vmax.f32 %v1567, 0.0
        %v1600 = vmax.f32 %v1570, 0.0
        %v1601 = vmax.f32 %v1575, 0.0
        %v1602 = vmax.f32 %v1578, 0.0
        %v1603 = vmax.f32 %v1583, 0.0
        %v1604 = vmax.f32 %v1586, 0.0
        %v1605 = vmax.f32 %v1591, 0.0
        %v1606 = vmax.f32 %v1594, 0.0
        %v1607 = vpack.c.bf16 %v1598, %v1597
        %v1608 = vpack.c.bf16 %v1600, %v1599
        %v1609 = vpack.c.bf16 %v1602, %v1601
        %v1610 = vpack.c.bf16 %v1604, %v1603
        %v1611 = vpack.c.bf16 %v1606, %v1605
        %v1612 = vld [vmem:[%s10] sm:$0xff]
        %v1613 = vld [vmem:[%s10 + $0x8] sm:$0xff]
        %v1614 = vld [vmem:[%s10 + $0x10] sm:$0xff]
        %v1615 = vld [vmem:[%s10 + $0x18] sm:$0xff]
        %v1616 = vld [vmem:[%s10 + $0x20] sm:$0xff]
        %v1617 = vld [vmem:[%s10 + $0x28] sm:$0xff]
        %v1618 = vld [vmem:[%s10 + $0x30] sm:$0xff]
        %v1619 = vld [vmem:[%s10 + $0x38] sm:$0xff]
        %v1620 = vld [vmem:[%s10 + $0x40] sm:$0xff]
        %v1621 = vld [vmem:[%s10 + $0x48] sm:$0xff]
        %v1622 = vld [vmem:[%s10 + $0x50] sm:$0xff]
        %v1623 = vld [vmem:[%s10 + $0x58] sm:$0xff]
        %v1624 = vld [vmem:[%s10 + $0x60] sm:$0xff]
        %v1625 = vld [vmem:[%s10 + $0x68] sm:$0xff]
        %v1626 = vld [vmem:[%s10 + $0x70] sm:$0xff]
        %v1627 = vld [vmem:[%s10 + $0x78] sm:$0xff]
        %v1628 = vld [vmem:[%s10 + $0x80] sm:$0xff]
        %v1629 = vld [vmem:[%s10 + $0x88] sm:$0xff]
        %v1630 = vld [vmem:[%s10 + $0x90] sm:$0xff]
        %v1631 = vld [vmem:[%s10 + $0x98] sm:$0xff]
        %v1632 = vld [vmem:[%s10 + $0xa0] sm:$0xff]
        %v1633 = vld [vmem:[%s10 + $0xa8] sm:$0xff]
        %v1634 = vld [vmem:[%s10 + $0xb0] sm:$0xff]
        %v1635 = vld [vmem:[%s10 + $0xb8] sm:$0xff]
        %v1636 = vld [vmem:[%s10 + $0xc0] sm:$0xff]
        %v1637 = vld [vmem:[%s10 + $0xc8] sm:$0xff]
        %v1638 = vld [vmem:[%s10 + $0xd0] sm:$0xff]
        %v1639 = vld [vmem:[%s10 + $0xd8] sm:$0xff]
        %v1640 = vld [vmem:[%s10 + $0xe0] sm:$0xff]
        %v1641 = vld [vmem:[%s10 + $0xe8] sm:$0xff]
        %v1642 = vld [vmem:[%s10 + $0xf0] sm:$0xff]
        %v1643 = vld [vmem:[%s10 + $0xf8] sm:$0xff]
        %v1644 = vld [vmem:[%s11] sm:$0xf]
        %v1646 = vlaneseq
        %v1647 = vshrl.u32 %v1646, 7
        %v1648 = vsub.s32 0, %v1647
        %v1649 = vrot.slane %v1644, %v1648
        %v1650 = vlaneseq
        %v1651 = vshrl.u32 %v1650, 7
        %v1652 = vsub.s32 1, %v1651
        %v1653 = vrot.slane %v1644, %v1652
        %v1654 = vlaneseq
        %v1655 = vshrl.u32 %v1654, 7
        %v1656 = vsub.s32 2, %v1655
        %v1657 = vrot.slane %v1644, %v1656
        %v1658 = vlaneseq
        %v1659 = vshrl.u32 %v1658, 7
        %v1660 = vsub.s32 3, %v1659
        %v1661 = vrot.slane %v1644, %v1660
        %v1698 = vunpack.c.l.b16 %v1612
        %v1699 = vunpack.c.h.b16 %v1612
        %v1700 = vunpack.c.l.b16 %v1613
        %v1701 = vunpack.c.h.b16 %v1613
        %v1702 = vunpack.c.l.b16 %v1614
        %v1703 = vunpack.c.h.b16 %v1614
        %v1704 = vunpack.c.l.b16 %v1615
        %v1705 = vunpack.c.h.b16 %v1615
        %v1706 = vunpack.c.l.b16 %v1616
        %v1707 = vunpack.c.h.b16 %v1616
        %v1708 = vunpack.c.l.b16 %v1617
        %v1709 = vunpack.c.h.b16 %v1617
        %v1710 = vunpack.c.l.b16 %v1618
        %v1711 = vunpack.c.h.b16 %v1618
        %v1712 = vunpack.c.l.b16 %v1619
        %v1713 = vunpack.c.h.b16 %v1619
        %v1714 = vunpack.c.l.b16 %v1620
        %v1715 = vunpack.c.h.b16 %v1620
        %v1716 = vunpack.c.l.b16 %v1621
        %v1717 = vunpack.c.h.b16 %v1621
        %v1718 = vunpack.c.l.b16 %v1622
        %v1719 = vunpack.c.h.b16 %v1622
        %v1720 = vunpack.c.l.b16 %v1623
        %v1721 = vunpack.c.h.b16 %v1623
        %v1722 = vunpack.c.l.b16 %v1624
        %v1723 = vunpack.c.h.b16 %v1624
        %v1724 = vunpack.c.l.b16 %v1625
        %v1725 = vunpack.c.h.b16 %v1625
        %v1726 = vunpack.c.l.b16 %v1626
        %v1727 = vunpack.c.h.b16 %v1626
        %v1728 = vunpack.c.l.b16 %v1627
        %v1729 = vunpack.c.h.b16 %v1627
        %v1730 = vunpack.c.l.b16 %v1628
        %v1731 = vunpack.c.h.b16 %v1628
        %v1732 = vunpack.c.l.b16 %v1629
        %v1733 = vunpack.c.h.b16 %v1629
        %v1734 = vunpack.c.l.b16 %v1630
        %v1735 = vunpack.c.h.b16 %v1630
        %v1736 = vunpack.c.l.b16 %v1631
        %v1737 = vunpack.c.h.b16 %v1631
        %v1738 = vunpack.c.l.b16 %v1632
        %v1739 = vunpack.c.h.b16 %v1632
        %v1740 = vunpack.c.l.b16 %v1633
        %v1741 = vunpack.c.h.b16 %v1633
        %v1742 = vunpack.c.l.b16 %v1634
        %v1743 = vunpack.c.h.b16 %v1634
        %v1744 = vunpack.c.l.b16 %v1635
        %v1745 = vunpack.c.h.b16 %v1635
        %v1746 = vunpack.c.l.b16 %v1636
        %v1747 = vunpack.c.h.b16 %v1636
        %v1748 = vunpack.c.l.b16 %v1637
        %v1749 = vunpack.c.h.b16 %v1637
        %v1750 = vunpack.c.l.b16 %v1638
        %v1751 = vunpack.c.h.b16 %v1638
        %v1752 = vunpack.c.l.b16 %v1639
        %v1753 = vunpack.c.h.b16 %v1639
        %v1754 = vunpack.c.l.b16 %v1640
        %v1755 = vunpack.c.h.b16 %v1640
        %v1756 = vunpack.c.l.b16 %v1641
        %v1757 = vunpack.c.h.b16 %v1641
        %v1758 = vunpack.c.l.b16 %v1642
        %v1759 = vunpack.c.h.b16 %v1642
        %v1760 = vunpack.c.l.b16 %v1643
        %v1761 = vunpack.c.h.b16 %v1643
        %v1762 = vpack.c.b16 %v1702, %v1698
        %v1763 = vpack.c.b16 %v1703, %v1699
        %v1764 = vpack.c.b16 %v1704, %v1700
        %v1765 = vpack.c.b16 %v1705, %v1701
        %v1766 = vpack.c.b16 %v1710, %v1706
        %v1767 = vpack.c.b16 %v1711, %v1707
        %v1768 = vpack.c.b16 %v1712, %v1708
        %v1769 = vpack.c.b16 %v1713, %v1709
        %v1770 = vpack.c.b16 %v1718, %v1714
        %v1771 = vpack.c.b16 %v1719, %v1715
        %v1772 = vpack.c.b16 %v1720, %v1716
        %v1773 = vpack.c.b16 %v1721, %v1717
        %v1774 = vpack.c.b16 %v1726, %v1722
        %v1775 = vpack.c.b16 %v1727, %v1723
        %v1776 = vpack.c.b16 %v1728, %v1724
        %v1777 = vpack.c.b16 %v1729, %v1725
        %v1778 = vpack.c.b16 %v1734, %v1730
        %v1779 = vpack.c.b16 %v1735, %v1731
        %v1780 = vpack.c.b16 %v1736, %v1732
        %v1781 = vpack.c.b16 %v1737, %v1733
        %v1782 = vpack.c.b16 %v1742, %v1738
        %v1783 = vpack.c.b16 %v1743, %v1739
        %v1784 = vpack.c.b16 %v1744, %v1740
        %v1785 = vpack.c.b16 %v1745, %v1741
        %v1786 = vpack.c.b16 %v1750, %v1746
        %v1787 = vpack.c.b16 %v1751, %v1747
        %v1788 = vpack.c.b16 %v1752, %v1748
        %v1789 = vpack.c.b16 %v1753, %v1749
        %v1790 = vpack.c.b16 %v1758, %v1754
        %v1791 = vpack.c.b16 %v1759, %v1755
        %v1792 = vpack.c.b16 %v1760, %v1756
        %v1793 = vpack.c.b16 %v1761, %v1757
        %1826 = vmatprep.subr.bf16.mxu0 %v1763
        %1827 = vmatpush1.bf16.msra.mxu0 %v1762
        %1828 = vmatprep.subr.bf16.mxu0 %v1767
        %1829 = vmatpush1.bf16.msra.mxu0 %v1766
        %1830 = vmatprep.subr.bf16.mxu0 %v1771
        %1831 = vmatpush1.bf16.msra.mxu0 %v1770
        %1832 = vmatprep.subr.bf16.mxu0 %v1775
        %1833 = vmatpush1.bf16.msra.mxu0 %v1774
        %1834 = vmatprep.subr.bf16.mxu0 %v1779
        %1835 = vmatpush1.bf16.msra.mxu0 %v1778
        %1836 = vmatprep.subr.bf16.mxu0 %v1783
        %1837 = vmatpush1.bf16.msra.mxu0 %v1782
        %1838 = vmatprep.subr.bf16.mxu0 %v1787
        %1839 = vmatpush1.bf16.msra.mxu0 %v1786
        %1840 = vmatprep.subr.bf16.mxu0 %v1791
        %1841 = vmatpush1.bf16.msra.mxu0 %v1790
        %1842 = vmatprep.subr.bf16.mxu0 0
        %1843 = vmatpush1.bf16.msra.mxu0 0
        %1844 = vmatprep.subr.bf16.mxu0 0
        %1845 = vmatpush1.bf16.msra.mxu0 0
        %1846 = vmatprep.subr.bf16.mxu0 0
        %1847 = vmatpush1.bf16.msra.mxu0 0
        %1848 = vmatprep.subr.bf16.mxu0 0
        %1849 = vmatpush1.bf16.msra.mxu0 0
        %1850 = vmatprep.subr.bf16.mxu0 0
        %1851 = vmatpush1.bf16.msra.mxu0 0
        %1852 = vmatprep.subr.bf16.mxu0 0
        %1853 = vmatpush1.bf16.msra.mxu0 0
        %1854 = vmatprep.subr.bf16.mxu0 0
        %1855 = vmatpush1.bf16.msra.mxu0 0
        %1856 = vmatprep.subr.bf16.mxu0 0
        %1857 = vmatpush1.bf16.msra.mxu0 0
        %1858 = vmatprep.mubr.bf16.mxu0 0
        %1859 = vmatmul.mubr.bf16.gmra.mrb[0].mxu0 %v1607
        %v1860 = vpop.f32.mrb[0].mxu0
        %v1861 = vadd.f32 %v1649, %v1860
        %v1862 = vpop.f32.mrb[0].mxu0
        %v1863 = vadd.f32 %v1653, %v1862
        %v1864 = vpop.f32.mrb[0].mxu0
        %v1865 = vadd.f32 %v1649, %v1864
        %v1866 = vpop.f32.mrb[0].mxu0
        %v1867 = vadd.f32 %v1653, %v1866
        %1868 = vmatprep.mubr.bf16.mxu0 0
        %1869 = vmatmul.mubr.bf16.gmra.mrb[0].mxu0 %v1608
        %v1870 = vpop.f32.mrb[0].mxu0
        %v1871 = vadd.f32 %v1649, %v1870
        %v1872 = vpop.f32.mrb[0].mxu0
        %v1873 = vadd.f32 %v1653, %v1872
        %v1874 = vpop.f32.mrb[0].mxu0
        %v1875 = vadd.f32 %v1649, %v1874
        %v1876 = vpop.f32.mrb[0].mxu0
        %v1877 = vadd.f32 %v1653, %v1876
        %1878 = vmatprep.mubr.bf16.mxu0 0
        %1879 = vmatmul.mubr.bf16.gmra.mrb[0].mxu0 %v1609
        %v1880 = vpop.f32.mrb[0].mxu0
        %v1881 = vadd.f32 %v1649, %v1880
        %v1882 = vpop.f32.mrb[0].mxu0
        %v1883 = vadd.f32 %v1653, %v1882
        %v1884 = vpop.f32.mrb[0].mxu0
        %v1885 = vadd.f32 %v1649, %v1884
        %v1886 = vpop.f32.mrb[0].mxu0
        %v1887 = vadd.f32 %v1653, %v1886
        %1888 = vmatprep.mubr.bf16.mxu0 0
        %1889 = vmatmul.mubr.bf16.gmra.mrb[0].mxu0 %v1610
        %v1890 = vpop.f32.mrb[0].mxu0
        %v1891 = vadd.f32 %v1649, %v1890
        %v1892 = vpop.f32.mrb[0].mxu0
        %v1893 = vadd.f32 %v1653, %v1892
        %v1894 = vpop.f32.mrb[0].mxu0
        %v1895 = vadd.f32 %v1649, %v1894
        %v1896 = vpop.f32.mrb[0].mxu0
        %v1897 = vadd.f32 %v1653, %v1896
        %1898 = vmatprep.mubr.bf16.mxu0 0
        %1899 = vmatmul.mubr.bf16.gmra.mrb[0].mxu0 %v1611
        %v1900 = vpop.f32.mrb[0].mxu0
        %v1901 = vadd.f32 %v1649, %v1900
        %v1902 = vpop.f32.mrb[0].mxu0
        %v1903 = vadd.f32 %v1653, %v1902
        %v1904 = vpop.f32.mrb[0].mxu0
        %v1905 = vadd.f32 %v1649, %v1904
        %v1906 = vpop.f32.mrb[0].mxu0
        %v1907 = vadd.f32 %v1653, %v1906
        %1908 = vdwg.mxu0
        %1909 = vmatprep.subr.bf16.mxu0 %v1765
        %1910 = vmatpush1.bf16.msra.mxu0 %v1764
        %1911 = vmatprep.subr.bf16.mxu0 %v1769
        %1912 = vmatpush1.bf16.msra.mxu0 %v1768
        %1913 = vmatprep.subr.bf16.mxu0 %v1773
        %1914 = vmatpush1.bf16.msra.mxu0 %v1772
        %1915 = vmatprep.subr.bf16.mxu0 %v1777
        %1916 = vmatpush1.bf16.msra.mxu0 %v1776
        %1917 = vmatprep.subr.bf16.mxu0 %v1781
        %1918 = vmatpush1.bf16.msra.mxu0 %v1780
        %1919 = vmatprep.subr.bf16.mxu0 %v1785
        %1920 = vmatpush1.bf16.msra.mxu0 %v1784
        %1921 = vmatprep.subr.bf16.mxu0 %v1789
        %1922 = vmatpush1.bf16.msra.mxu0 %v1788
        %1923 = vmatprep.subr.bf16.mxu0 %v1793
        %1924 = vmatpush1.bf16.msra.mxu0 %v1792
        %1925 = vmatprep.subr.bf16.mxu0 0
        %1926 = vmatpush1.bf16.msra.mxu0 0
        %1927 = vmatprep.subr.bf16.mxu0 0
        %1928 = vmatpush1.bf16.msra.mxu0 0
        %1929 = vmatprep.subr.bf16.mxu0 0
        %1930 = vmatpush1.bf16.msra.mxu0 0
        %1931 = vmatprep.subr.bf16.mxu0 0
        %1932 = vmatpush1.bf16.msra.mxu0 0
        %1933 = vmatprep.subr.bf16.mxu0 0
        %1934 = vmatpush1.bf16.msra.mxu0 0
        %1935 = vmatprep.subr.bf16.mxu0 0
        %1936 = vmatpush1.bf16.msra.mxu0 0
        %1937 = vmatprep.subr.bf16.mxu0 0
        %1938 = vmatpush1.bf16.msra.mxu0 0
        %1939 = vmatprep.subr.bf16.mxu0 0
        %1940 = vmatpush1.bf16.msra.mxu0 0
        %1941 = vmatprep.mubr.bf16.mxu0 0
        %1942 = vmatmul.mubr.bf16.gmra.mrb[0].mxu0 %v1607
        %v1943 = vpop.f32.mrb[0].mxu0
        %v1944 = vadd.f32 %v1657, %v1943
        %v1945 = vpop.f32.mrb[0].mxu0
        %v1946 = vadd.f32 %v1661, %v1945
        %v1947 = vpop.f32.mrb[0].mxu0
        %v1948 = vadd.f32 %v1657, %v1947
        %v1949 = vpop.f32.mrb[0].mxu0
        %v1950 = vadd.f32 %v1661, %v1949
        %1951 = vmatprep.mubr.bf16.mxu0 0
        %1952 = vmatmul.mubr.bf16.gmra.mrb[0].mxu0 %v1608
        %v1953 = vpop.f32.mrb[0].mxu0
        %v1954 = vadd.f32 %v1657, %v1953
        %v1955 = vpop.f32.mrb[0].mxu0
        %v1956 = vadd.f32 %v1661, %v1955
        %v1957 = vpop.f32.mrb[0].mxu0
        %v1958 = vadd.f32 %v1657, %v1957
        %v1959 = vpop.f32.mrb[0].mxu0
        %v1960 = vadd.f32 %v1661, %v1959
        %1961 = vmatprep.mubr.bf16.mxu0 0
        %1962 = vmatmul.mubr.bf16.gmra.mrb[0].mxu0 %v1609
        %v1963 = vpop.f32.mrb[0].mxu0
        %v1964 = vadd.f32 %v1657, %v1963
        %v1965 = vpop.f32.mrb[0].mxu0
        %v1966 = vadd.f32 %v1661, %v1965
        %v1967 = vpop.f32.mrb[0].mxu0
        %v1968 = vadd.f32 %v1657, %v1967
        %v1969 = vpop.f32.mrb[0].mxu0
        %v1970 = vadd.f32 %v1661, %v1969
        %1971 = vmatprep.mubr.bf16.mxu0 0
        %1972 = vmatmul.mubr.bf16.gmra.mrb[0].mxu0 %v1610
        %v1973 = vpop.f32.mrb[0].mxu0
        %v1974 = vadd.f32 %v1657, %v1973
        %v1975 = vpop.f32.mrb[0].mxu0
        %v1976 = vadd.f32 %v1661, %v1975
        %v1977 = vpop.f32.mrb[0].mxu0
        %v1978 = vadd.f32 %v1657, %v1977
        %v1979 = vpop.f32.mrb[0].mxu0
        %v1980 = vadd.f32 %v1661, %v1979
        %1981 = vmatprep.mubr.bf16.mxu0 0
        %1982 = vmatmul.mubr.bf16.gmra.mrb[0].mxu0 %v1611
        %v1983 = vpop.f32.mrb[0].mxu0
        %v1984 = vadd.f32 %v1657, %v1983
        %v1985 = vpop.f32.mrb[0].mxu0
        %v1986 = vadd.f32 %v1661, %v1985
        %v1987 = vpop.f32.mrb[0].mxu0
        %v1988 = vadd.f32 %v1657, %v1987
        %v1989 = vpop.f32.mrb[0].mxu0
        %v1990 = vadd.f32 %v1661, %v1989
        %1991 = vdwg.mxu0
        %v1992 = vmax.f32 %v1861, 0.0
        %v1993 = vmax.f32 %v1863, 0.0
        %v1994 = vmax.f32 %v1944, 0.0
        %v1995 = vmax.f32 %v1946, 0.0
        %v1996 = vmax.f32 %v1865, 0.0
        %v1997 = vmax.f32 %v1867, 0.0
        %v1998 = vmax.f32 %v1948, 0.0
        %v1999 = vmax.f32 %v1950, 0.0
        %v2000 = vmax.f32 %v1871, 0.0
        %v2001 = vmax.f32 %v1873, 0.0
        %v2002 = vmax.f32 %v1954, 0.0
        %v2003 = vmax.f32 %v1956, 0.0
        %v2004 = vmax.f32 %v1875, 0.0
        %v2005 = vmax.f32 %v1877, 0.0
        %v2006 = vmax.f32 %v1958, 0.0
        %v2007 = vmax.f32 %v1960, 0.0
        %v2008 = vmax.f32 %v1881, 0.0
        %v2009 = vmax.f32 %v1883, 0.0
        %v2010 = vmax.f32 %v1964, 0.0
        %v2011 = vmax.f32 %v1966, 0.0
        %v2012 = vmax.f32 %v1885, 0.0
        %v2013 = vmax.f32 %v1887, 0.0
        %v2014 = vmax.f32 %v1968, 0.0
        %v2015 = vmax.f32 %v1970, 0.0
        %v2016 = vmax.f32 %v1891, 0.0
        %v2017 = vmax.f32 %v1893, 0.0
        %v2018 = vmax.f32 %v1974, 0.0
        %v2019 = vmax.f32 %v1976, 0.0
        %v2020 = vmax.f32 %v1895, 0.0
        %v2021 = vmax.f32 %v1897, 0.0
        %v2022 = vmax.f32 %v1978, 0.0
        %v2023 = vmax.f32 %v1980, 0.0
        %v2024 = vmax.f32 %v1901, 0.0
        %v2025 = vmax.f32 %v1903, 0.0
        %v2026 = vmax.f32 %v1984, 0.0
        %v2027 = vmax.f32 %v1986, 0.0
        %v2028 = vmax.f32 %v1905, 0.0
        %v2029 = vmax.f32 %v1907, 0.0
        %v2030 = vmax.f32 %v1988, 0.0
        %v2031 = vmax.f32 %v1990, 0.0
        %v2032 = vpack.c.bf16 %v1996, %v1992
        %v2033 = vpack.c.bf16 %v1997, %v1993
        %v2034 = vpack.c.bf16 %v1998, %v1994
        %v2035 = vpack.c.bf16 %v1999, %v1995
        %v2036 = vpack.c.bf16 %v2004, %v2000
        %v2037 = vpack.c.bf16 %v2005, %v2001
        %v2038 = vpack.c.bf16 %v2006, %v2002
        %v2039 = vpack.c.bf16 %v2007, %v2003
        %v2040 = vpack.c.bf16 %v2012, %v2008
        %v2041 = vpack.c.bf16 %v2013, %v2009
        %v2042 = vpack.c.bf16 %v2014, %v2010
        %v2043 = vpack.c.bf16 %v2015, %v2011
        %v2044 = vpack.c.bf16 %v2020, %v2016
        %v2045 = vpack.c.bf16 %v2021, %v2017
        %v2046 = vpack.c.bf16 %v2022, %v2018
        %v2047 = vpack.c.bf16 %v2023, %v2019
        %v2048 = vpack.c.bf16 %v2028, %v2024
        %v2049 = vpack.c.bf16 %v2029, %v2025
        %v2050 = vpack.c.bf16 %v2030, %v2026
        %v2051 = vpack.c.bf16 %v2031, %v2027
        %v2052 = vld [vmem:[%s12] sm:$0xf]
        %v2053 = vld [vmem:[%s12 + $0x4] sm:$0xf]
        %v2054 = vld [vmem:[%s12 + $0x8] sm:$0xf]
        %v2055 = vld [vmem:[%s12 + $0xc] sm:$0xf]
        %v2056 = vld [vmem:[%s12 + $0x10] sm:$0xf]
        %v2057 = vld [vmem:[%s12 + $0x14] sm:$0xf]
        %v2058 = vld [vmem:[%s12 + $0x18] sm:$0xf]
        %v2059 = vld [vmem:[%s12 + $0x1c] sm:$0xf]
        %v2060 = vld [vmem:[%s12 + $0x20] sm:$0xf]
        %v2061 = vld [vmem:[%s12 + $0x24] sm:$0xf]
        %v2062 = vld [vmem:[%s12 + $0x28] sm:$0xf]
        %v2063 = vld [vmem:[%s12 + $0x2c] sm:$0xf]
        %v2064 = vld [vmem:[%s12 + $0x30] sm:$0xf]
        %v2065 = vld [vmem:[%s12 + $0x34] sm:$0xf]
        %v2066 = vld [vmem:[%s12 + $0x38] sm:$0xf]
        %v2067 = vld [vmem:[%s12 + $0x3c] sm:$0xf]
        %v2068 = vld [vmem:[%s12 + $0x40] sm:$0xf]
        %v2069 = vld [vmem:[%s12 + $0x44] sm:$0xf]
        %v2070 = vld [vmem:[%s12 + $0x48] sm:$0xf]
        %v2071 = vld [vmem:[%s12 + $0x4c] sm:$0xf]
        %v2072 = vld [vmem:[%s12 + $0x50] sm:$0xf]
        %v2073 = vld [vmem:[%s12 + $0x54] sm:$0xf]
        %v2074 = vld [vmem:[%s12 + $0x58] sm:$0xf]
        %v2075 = vld [vmem:[%s12 + $0x5c] sm:$0xf]
        %v2076 = vld [vmem:[%s12 + $0x60] sm:$0xf]
        %v2077 = vld [vmem:[%s12 + $0x64] sm:$0xf]
        %v2078 = vld [vmem:[%s12 + $0x68] sm:$0xf]
        %v2079 = vld [vmem:[%s12 + $0x6c] sm:$0xf]
        %v2080 = vld [vmem:[%s12 + $0x70] sm:$0xf]
        %v2081 = vld [vmem:[%s12 + $0x74] sm:$0xf]
        %v2082 = vld [vmem:[%s12 + $0x78] sm:$0xf]
        %v2083 = vld [vmem:[%s12 + $0x7c] sm:$0xf]
        %v2084 = vld [vmem:[%s12 + $0x80] sm:$0xf]
        %v2085 = vld [vmem:[%s12 + $0x84] sm:$0xf]
        %v2086 = vld [vmem:[%s12 + $0x88] sm:$0xf]
        %v2087 = vld [vmem:[%s12 + $0x8c] sm:$0xf]
        %v2088 = vld [vmem:[%s12 + $0x90] sm:$0xf]
        %v2089 = vld [vmem:[%s12 + $0x94] sm:$0xf]
        %v2090 = vld [vmem:[%s12 + $0x98] sm:$0xf]
        %v2091 = vld [vmem:[%s12 + $0x9c] sm:$0xf]
        %v2092 = vld [vmem:[%s12 + $0xa0] sm:$0xf]
        %v2093 = vld [vmem:[%s12 + $0xa4] sm:$0xf]
        %v2094 = vld [vmem:[%s12 + $0xa8] sm:$0xf]
        %v2095 = vld [vmem:[%s12 + $0xac] sm:$0xf]
        %v2096 = vld [vmem:[%s12 + $0xb0] sm:$0xf]
        %v2097 = vld [vmem:[%s12 + $0xb4] sm:$0xf]
        %v2098 = vld [vmem:[%s12 + $0xb8] sm:$0xf]
        %v2099 = vld [vmem:[%s12 + $0xbc] sm:$0xf]
        %v2100 = vld [vmem:[%s12 + $0xc0] sm:$0xf]
        %v2101 = vld [vmem:[%s12 + $0xc4] sm:$0xf]
        %v2102 = vld [vmem:[%s12 + $0xc8] sm:$0xf]
        %v2103 = vld [vmem:[%s12 + $0xcc] sm:$0xf]
        %v2104 = vld [vmem:[%s12 + $0xd0] sm:$0xf]
        %v2105 = vld [vmem:[%s12 + $0xd4] sm:$0xf]
        %v2106 = vld [vmem:[%s12 + $0xd8] sm:$0xf]
        %v2107 = vld [vmem:[%s12 + $0xdc] sm:$0xf]
        %v2108 = vld [vmem:[%s12 + $0xe0] sm:$0xf]
        %v2109 = vld [vmem:[%s12 + $0xe4] sm:$0xf]
        %v2110 = vld [vmem:[%s12 + $0xe8] sm:$0xf]
        %v2111 = vld [vmem:[%s12 + $0xec] sm:$0xf]
        %v2112 = vld [vmem:[%s12 + $0xf0] sm:$0xf]
        %v2113 = vld [vmem:[%s12 + $0xf4] sm:$0xf]
        %v2114 = vld [vmem:[%s12 + $0xf8] sm:$0xf]
        %v2115 = vld [vmem:[%s12 + $0xfc] sm:$0xf]
        %v2116 = vld [vmem:[%s13] sm:$0x1]
        %v2118 = vlaneseq
        %v2119 = vshrl.u32 %v2118, 7
        %v2120 = vsub.s32 0, %v2119
        %v2121 = vrot.slane %v2116, %v2120
        %v2187 = vunpack.c.l.b16 %v2052
        %v2188 = vunpack.c.l.b16 %v2053
        %v2189 = vunpack.c.l.b16 %v2054
        %v2190 = vunpack.c.l.b16 %v2055
        %v2191 = vunpack.c.l.b16 %v2056
        %v2192 = vunpack.c.l.b16 %v2057
        %v2193 = vunpack.c.l.b16 %v2058
        %v2194 = vunpack.c.l.b16 %v2059
        %v2195 = vunpack.c.l.b16 %v2060
        %v2196 = vunpack.c.l.b16 %v2061
        %v2197 = vunpack.c.l.b16 %v2062
        %v2198 = vunpack.c.l.b16 %v2063
        %v2199 = vunpack.c.l.b16 %v2064
        %v2200 = vunpack.c.l.b16 %v2065
        %v2201 = vunpack.c.l.b16 %v2066
        %v2202 = vunpack.c.l.b16 %v2067
        %v2203 = vunpack.c.l.b16 %v2068
        %v2204 = vunpack.c.l.b16 %v2069
        %v2205 = vunpack.c.l.b16 %v2070
        %v2206 = vunpack.c.l.b16 %v2071
        %v2207 = vunpack.c.l.b16 %v2072
        %v2208 = vunpack.c.l.b16 %v2073
        %v2209 = vunpack.c.l.b16 %v2074
        %v2210 = vunpack.c.l.b16 %v2075
        %v2211 = vunpack.c.l.b16 %v2076
        %v2212 = vunpack.c.l.b16 %v2077
        %v2213 = vunpack.c.l.b16 %v2078
        %v2214 = vunpack.c.l.b16 %v2079
        %v2215 = vunpack.c.l.b16 %v2080
        %v2216 = vunpack.c.l.b16 %v2081
        %v2217 = vunpack.c.l.b16 %v2082
        %v2218 = vunpack.c.l.b16 %v2083
        %v2219 = vunpack.c.l.b16 %v2084
        %v2220 = vunpack.c.l.b16 %v2085
        %v2221 = vunpack.c.l.b16 %v2086
        %v2222 = vunpack.c.l.b16 %v2087
        %v2223 = vunpack.c.l.b16 %v2088
        %v2224 = vunpack.c.l.b16 %v2089
        %v2225 = vunpack.c.l.b16 %v2090
        %v2226 = vunpack.c.l.b16 %v2091
        %v2227 = vunpack.c.l.b16 %v2092
        %v2228 = vunpack.c.l.b16 %v2093
        %v2229 = vunpack.c.l.b16 %v2094
        %v2230 = vunpack.c.l.b16 %v2095
        %v2231 = vunpack.c.l.b16 %v2096
        %v2232 = vunpack.c.l.b16 %v2097
        %v2233 = vunpack.c.l.b16 %v2098
        %v2234 = vunpack.c.l.b16 %v2099
        %v2235 = vunpack.c.l.b16 %v2100
        %v2236 = vunpack.c.l.b16 %v2101
        %v2237 = vunpack.c.l.b16 %v2102
        %v2238 = vunpack.c.l.b16 %v2103
        %v2239 = vunpack.c.l.b16 %v2104
        %v2240 = vunpack.c.l.b16 %v2105
        %v2241 = vunpack.c.l.b16 %v2106
        %v2242 = vunpack.c.l.b16 %v2107
        %v2243 = vunpack.c.l.b16 %v2108
        %v2244 = vunpack.c.l.b16 %v2109
        %v2245 = vunpack.c.l.b16 %v2110
        %v2246 = vunpack.c.l.b16 %v2111
        %v2247 = vunpack.c.l.b16 %v2112
        %v2248 = vunpack.c.l.b16 %v2113
        %v2249 = vunpack.c.l.b16 %v2114
        %v2250 = vunpack.c.l.b16 %v2115
        %v2251 = vpack.c.b16 %v2188, %v2187
        %v2252 = vpack.c.b16 %v2190, %v2189
        %v2253 = vpack.c.b16 %v2192, %v2191
        %v2254 = vpack.c.b16 %v2194, %v2193
        %v2255 = vpack.c.b16 %v2196, %v2195
        %v2256 = vpack.c.b16 %v2198, %v2197
        %v2257 = vpack.c.b16 %v2200, %v2199
        %v2258 = vpack.c.b16 %v2202, %v2201
        %v2259 = vpack.c.b16 %v2204, %v2203
        %v2260 = vpack.c.b16 %v2206, %v2205
        %v2261 = vpack.c.b16 %v2208, %v2207
        %v2262 = vpack.c.b16 %v2210, %v2209
        %v2263 = vpack.c.b16 %v2212, %v2211
        %v2264 = vpack.c.b16 %v2214, %v2213
        %v2265 = vpack.c.b16 %v2216, %v2215
        %v2266 = vpack.c.b16 %v2218, %v2217
        %v2267 = vpack.c.b16 %v2220, %v2219
        %v2268 = vpack.c.b16 %v2222, %v2221
        %v2269 = vpack.c.b16 %v2224, %v2223
        %v2270 = vpack.c.b16 %v2226, %v2225
        %v2271 = vpack.c.b16 %v2228, %v2227
        %v2272 = vpack.c.b16 %v2230, %v2229
        %v2273 = vpack.c.b16 %v2232, %v2231
        %v2274 = vpack.c.b16 %v2234, %v2233
        %v2275 = vpack.c.b16 %v2236, %v2235
        %v2276 = vpack.c.b16 %v2238, %v2237
        %v2277 = vpack.c.b16 %v2240, %v2239
        %v2278 = vpack.c.b16 %v2242, %v2241
        %v2279 = vpack.c.b16 %v2244, %v2243
        %v2280 = vpack.c.b16 %v2246, %v2245
        %v2281 = vpack.c.b16 %v2248, %v2247
        %v2282 = vpack.c.b16 %v2250, %v2249
        %2315 = vmatprep.subr.bf16.mxu0 0
        %2316 = vmatpush1.bf16.msra.mxu0 %v2251
        %2317 = vmatprep.subr.bf16.mxu0 0
        %2318 = vmatpush1.bf16.msra.mxu0 %v2252
        %2319 = vmatprep.subr.bf16.mxu0 0
        %2320 = vmatpush1.bf16.msra.mxu0 %v2253
        %2321 = vmatprep.subr.bf16.mxu0 0
        %2322 = vmatpush1.bf16.msra.mxu0 %v2254
        %2323 = vmatprep.subr.bf16.mxu0 0
        %2324 = vmatpush1.bf16.msra.mxu0 %v2255
        %2325 = vmatprep.subr.bf16.mxu0 0
        %2326 = vmatpush1.bf16.msra.mxu0 %v2256
        %2327 = vmatprep.subr.bf16.mxu0 0
        %2328 = vmatpush1.bf16.msra.mxu0 %v2257
        %2329 = vmatprep.subr.bf16.mxu0 0
        %2330 = vmatpush1.bf16.msra.mxu0 %v2258
        %2331 = vmatprep.subr.bf16.mxu0 0
        %2332 = vmatpush1.bf16.msra.mxu0 %v2259
        %2333 = vmatprep.subr.bf16.mxu0 0
        %2334 = vmatpush1.bf16.msra.mxu0 %v2260
        %2335 = vmatprep.subr.bf16.mxu0 0
        %2336 = vmatpush1.bf16.msra.mxu0 %v2261
        %2337 = vmatprep.subr.bf16.mxu0 0
        %2338 = vmatpush1.bf16.msra.mxu0 %v2262
        %2339 = vmatprep.subr.bf16.mxu0 0
        %2340 = vmatpush1.bf16.msra.mxu0 %v2263
        %2341 = vmatprep.subr.bf16.mxu0 0
        %2342 = vmatpush1.bf16.msra.mxu0 %v2264
        %2343 = vmatprep.subr.bf16.mxu0 0
        %2344 = vmatpush1.bf16.msra.mxu0 %v2265
        %2345 = vmatprep.subr.bf16.mxu0 0
        %2346 = vmatpush1.bf16.msra.mxu0 %v2266
        %2347 = vmatprep.mubr.bf16.mxu0 %v2033
        %2348 = vmatmul.mubr.bf16.gmra.mrb[0].mxu0 %v2032
        %v2349 = vpop.f32.mrb[0].mxu0
        %v2350 = vadd.f32 %v2121, %v2349
        %v2351 = vpop.f32.mrb[0].mxu0
        %v2352 = vpop.f32.mrb[0].mxu0
        %v2353 = vadd.f32 %v2121, %v2352
        %v2354 = vpop.f32.mrb[0].mxu0
        %2355 = vmatprep.mubr.bf16.mxu0 %v2037
        %2356 = vmatmul.mubr.bf16.gmra.mrb[0].mxu0 %v2036
        %v2357 = vpop.f32.mrb[0].mxu0
        %v2358 = vadd.f32 %v2121, %v2357
        %v2359 = vpop.f32.mrb[0].mxu0
        %v2360 = vpop.f32.mrb[0].mxu0
        %v2361 = vadd.f32 %v2121, %v2360
        %v2362 = vpop.f32.mrb[0].mxu0
        %2363 = vmatprep.mubr.bf16.mxu0 %v2041
        %2364 = vmatmul.mubr.bf16.gmra.mrb[0].mxu0 %v2040
        %v2365 = vpop.f32.mrb[0].mxu0
        %v2366 = vadd.f32 %v2121, %v2365
        %v2367 = vpop.f32.mrb[0].mxu0
        %v2368 = vpop.f32.mrb[0].mxu0
        %v2369 = vadd.f32 %v2121, %v2368
        %v2370 = vpop.f32.mrb[0].mxu0
        %2371 = vmatprep.mubr.bf16.mxu0 %v2045
        %2372 = vmatmul.mubr.bf16.gmra.mrb[0].mxu0 %v2044
        %v2373 = vpop.f32.mrb[0].mxu0
        %v2374 = vadd.f32 %v2121, %v2373
        %v2375 = vpop.f32.mrb[0].mxu0
        %v2376 = vpop.f32.mrb[0].mxu0
        %v2377 = vadd.f32 %v2121, %v2376
        %v2378 = vpop.f32.mrb[0].mxu0
        %2379 = vmatprep.mubr.bf16.mxu0 %v2049
        %2380 = vmatmul.mubr.bf16.gmra.mrb[0].mxu0 %v2048
        %v2381 = vpop.f32.mrb[0].mxu0
        %v2382 = vadd.f32 %v2121, %v2381
        %v2383 = vpop.f32.mrb[0].mxu0
        %v2384 = vpop.f32.mrb[0].mxu0
        %v2385 = vadd.f32 %v2121, %v2384
        %v2386 = vpop.f32.mrb[0].mxu0
        %2387 = vdwg.mxu0
        %2388 = vmatprep.subr.bf16.mxu0 0
        %2389 = vmatpush1.bf16.msra.mxu0 %v2267
        %2390 = vmatprep.subr.bf16.mxu0 0
        %2391 = vmatpush1.bf16.msra.mxu0 %v2268
        %2392 = vmatprep.subr.bf16.mxu0 0
        %2393 = vmatpush1.bf16.msra.mxu0 %v2269
        %2394 = vmatprep.subr.bf16.mxu0 0
        %2395 = vmatpush1.bf16.msra.mxu0 %v2270
        %2396 = vmatprep.subr.bf16.mxu0 0
        %2397 = vmatpush1.bf16.msra.mxu0 %v2271
        %2398 = vmatprep.subr.bf16.mxu0 0
        %2399 = vmatpush1.bf16.msra.mxu0 %v2272
        %2400 = vmatprep.subr.bf16.mxu0 0
        %2401 = vmatpush1.bf16.msra.mxu0 %v2273
        %2402 = vmatprep.subr.bf16.mxu0 0
        %2403 = vmatpush1.bf16.msra.mxu0 %v2274
        %2404 = vmatprep.subr.bf16.mxu0 0
        %2405 = vmatpush1.bf16.msra.mxu0 %v2275
        %2406 = vmatprep.subr.bf16.mxu0 0
        %2407 = vmatpush1.bf16.msra.mxu0 %v2276
        %2408 = vmatprep.subr.bf16.mxu0 0
        %2409 = vmatpush1.bf16.msra.mxu0 %v2277
        %2410 = vmatprep.subr.bf16.mxu0 0
        %2411 = vmatpush1.bf16.msra.mxu0 %v2278
        %2412 = vmatprep.subr.bf16.mxu0 0
        %2413 = vmatpush1.bf16.msra.mxu0 %v2279
        %2414 = vmatprep.subr.bf16.mxu0 0
        %2415 = vmatpush1.bf16.msra.mxu0 %v2280
        %2416 = vmatprep.subr.bf16.mxu0 0
        %2417 = vmatpush1.bf16.msra.mxu0 %v2281
        %2418 = vmatprep.subr.bf16.mxu0 0
        %2419 = vmatpush1.bf16.msra.mxu0 %v2282
        %2420 = vmatprep.mubr.bf16.mxu0 %v2035
        %2421 = vmatmul.mubr.bf16.gmra.mrb[0].mxu0 %v2034
        %v2422 = vpop.f32.mrb[0].mxu0
        %v2423 = vadd.f32 %v2350, %v2422
        %v2424 = vpop.f32.mrb[0].mxu0
        %v2425 = vpop.f32.mrb[0].mxu0
        %v2426 = vadd.f32 %v2353, %v2425
        %v2427 = vpop.f32.mrb[0].mxu0
        %2428 = vmatprep.mubr.bf16.mxu0 %v2039
        %2429 = vmatmul.mubr.bf16.gmra.mrb[0].mxu0 %v2038
        %v2430 = vpop.f32.mrb[0].mxu0
        %v2431 = vadd.f32 %v2358, %v2430
        %v2432 = vpop.f32.mrb[0].mxu0
        %v2433 = vpop.f32.mrb[0].mxu0
        %v2434 = vadd.f32 %v2361, %v2433
        %v2435 = vpop.f32.mrb[0].mxu0
        %2436 = vmatprep.mubr.bf16.mxu0 %v2043
        %2437 = vmatmul.mubr.bf16.gmra.mrb[0].mxu0 %v2042
        %v2438 = vpop.f32.mrb[0].mxu0
        %v2439 = vadd.f32 %v2366, %v2438
        %v2440 = vpop.f32.mrb[0].mxu0
        %v2441 = vpop.f32.mrb[0].mxu0
        %v2442 = vadd.f32 %v2369, %v2441
        %v2443 = vpop.f32.mrb[0].mxu0
        %2444 = vmatprep.mubr.bf16.mxu0 %v2047
        %2445 = vmatmul.mubr.bf16.gmra.mrb[0].mxu0 %v2046
        %v2446 = vpop.f32.mrb[0].mxu0
        %v2447 = vadd.f32 %v2374, %v2446
        %v2448 = vpop.f32.mrb[0].mxu0
        %v2449 = vpop.f32.mrb[0].mxu0
        %v2450 = vadd.f32 %v2377, %v2449
        %v2451 = vpop.f32.mrb[0].mxu0
        %2452 = vmatprep.mubr.bf16.mxu0 %v2051
        %2453 = vmatmul.mubr.bf16.gmra.mrb[0].mxu0 %v2050
        %v2454 = vpop.f32.mrb[0].mxu0
        %v2455 = vadd.f32 %v2382, %v2454
        %v2456 = vpop.f32.mrb[0].mxu0
        %v2457 = vpop.f32.mrb[0].mxu0
        %v2458 = vadd.f32 %v2385, %v2457
        %v2459 = vpop.f32.mrb[0].mxu0
        %2460 = vdwg.mxu0
        %v2461 = vadd.f32 %v773, %v2423
        %v2462 = vadd.f32 %v774, %v2426
        %v2463 = vadd.f32 %v775, %v2431
        %v2464 = vadd.f32 %v776, %v2434
        %v2465 = vadd.f32 %v777, %v2439
        %v2466 = vadd.f32 %v778, %v2442
        %v2467 = vadd.f32 %v779, %v2447
        %v2468 = vadd.f32 %v780, %v2450
        %v2469 = vadd.f32 %v781, %v2455
        %v2470 = vadd.f32 %v782, %v2458
        %vm2471 = vcmask 23552
        %2472 = vst.msk [vmem:[%s663] sm:$0xff] %vm2471, %v2461
        %2473 = vst.msk [vmem:[%s663 + $0x8] sm:$0xff] %vm2471, %v2462
        %2474 = vst.msk [vmem:[%s663 + $0x10] sm:$0xff] %vm2471, %v2463
        %2475 = vst.msk [vmem:[%s663 + $0x18] sm:$0xff] %vm2471, %v2464
        %2476 = vst.msk [vmem:[%s663 + $0x20] sm:$0xff] %vm2471, %v2465
        %2477 = vst.msk [vmem:[%s663 + $0x28] sm:$0xff] %vm2471, %v2466
        %2478 = vst.msk [vmem:[%s663 + $0x30] sm:$0xff] %vm2471, %v2467
        %2479 = vst.msk [vmem:[%s663 + $0x38] sm:$0xff] %vm2471, %v2468
        %2480 = vst.msk [vmem:[%s663 + $0x40] sm:$0xff] %vm2471, %v2469
        %2481 = vst.msk [vmem:[%s663 + $0x48] sm:$0xff] %vm2471, %v2470
        %v2482 = vld [vmem:[%s704] sm:$0xff]
        %v2483 = vld [vmem:[%s704 + $0x8] sm:$0xff]
        %v2484 = vld [vmem:[%s704 + $0x10] sm:$0xff]
        %v2485 = vld [vmem:[%s704 + $0x18] sm:$0xff]
        %v2486 = vld [vmem:[%s704 + $0x20] sm:$0xff]
        %v2487 = vld [vmem:[%s704 + $0x28] sm:$0xff]
        %v2488 = vld [vmem:[%s704 + $0x30] sm:$0xff]
        %v2489 = vld [vmem:[%s704 + $0x38] sm:$0xff]
        %v2490 = vld [vmem:[%s704 + $0x40] sm:$0xff]
        %v2491 = vld [vmem:[%s704 + $0x48] sm:$0xff]
        %2502 = vrot.lane.b32.xlu0 %v2423, 125
        %v2503 = vpop.permute.xlu0 %2502
        %2504 = vrot.lane.b32.xlu0 %v2426, 125
        %v2505 = vpop.permute.xlu0 %2504
        %2506 = vrot.lane.b32.xlu0 %v2431, 125
        %v2507 = vpop.permute.xlu0 %2506
        %2508 = vrot.lane.b32.xlu0 %v2434, 125
        %v2509 = vpop.permute.xlu0 %2508
        %2510 = vrot.lane.b32.xlu0 %v2439, 125
        %v2511 = vpop.permute.xlu0 %2510
        %2512 = vrot.lane.b32.xlu0 %v2442, 125
        %v2513 = vpop.permute.xlu0 %2512
        %2514 = vrot.lane.b32.xlu0 %v2447, 125
        %v2515 = vpop.permute.xlu0 %2514
        %2516 = vrot.lane.b32.xlu0 %v2450, 125
        %v2517 = vpop.permute.xlu0 %2516
        %2518 = vrot.lane.b32.xlu0 %v2455, 125
        %v2519 = vpop.permute.xlu0 %2518
        %2520 = vrot.lane.b32.xlu0 %v2458, 125
        %v2521 = vpop.permute.xlu0 %2520
        %v2532 = vadd.f32 %v2482, %v2503
        %v2533 = vadd.f32 %v2483, %v2505
        %v2534 = vadd.f32 %v2484, %v2507
        %v2535 = vadd.f32 %v2485, %v2509
        %v2536 = vadd.f32 %v2486, %v2511
        %v2537 = vadd.f32 %v2487, %v2513
        %v2538 = vadd.f32 %v2488, %v2515
        %v2539 = vadd.f32 %v2489, %v2517
        %v2540 = vadd.f32 %v2490, %v2519
        %v2541 = vadd.f32 %v2491, %v2521
        %2542 = vst.msk [vmem:[%s669] sm:$0xff] %vm2471, %v2532
        %2543 = vst.msk [vmem:[%s669 + $0x8] sm:$0xff] %vm2471, %v2533
        %2544 = vst.msk [vmem:[%s669 + $0x10] sm:$0xff] %vm2471, %v2534
        %2545 = vst.msk [vmem:[%s669 + $0x18] sm:$0xff] %vm2471, %v2535
        %2546 = vst.msk [vmem:[%s669 + $0x20] sm:$0xff] %vm2471, %v2536
        %2547 = vst.msk [vmem:[%s669 + $0x28] sm:$0xff] %vm2471, %v2537
        %2548 = vst.msk [vmem:[%s669 + $0x30] sm:$0xff] %vm2471, %v2538
        %2549 = vst.msk [vmem:[%s669 + $0x38] sm:$0xff] %vm2471, %v2539
        %2550 = vst.msk [vmem:[%s669 + $0x40] sm:$0xff] %vm2471, %v2540
        %2551 = vst.msk [vmem:[%s669 + $0x48] sm:$0xff] %vm2471, %v2541
        %v2552 = vld [vmem:[%s718] sm:$0xff]
        %v2553 = vld [vmem:[%s718 + $0x8] sm:$0xff]
        %v2554 = vld [vmem:[%s718 + $0x10] sm:$0xff]
        %v2555 = vld [vmem:[%s718 + $0x18] sm:$0xff]
        %v2556 = vld [vmem:[%s718 + $0x20] sm:$0xff]
        %v2557 = vld [vmem:[%s718 + $0x28] sm:$0xff]
        %v2558 = vld [vmem:[%s718 + $0x30] sm:$0xff]
        %v2559 = vld [vmem:[%s718 + $0x38] sm:$0xff]
        %v2560 = vld [vmem:[%s718 + $0x40] sm:$0xff]
        %v2561 = vld [vmem:[%s718 + $0x48] sm:$0xff]
        %2562 = vrot.lane.b32.xlu0 %v2423, 122
        %v2563 = vpop.permute.xlu0 %2562
        %2564 = vrot.lane.b32.xlu0 %v2426, 122
        %v2565 = vpop.permute.xlu0 %2564
        %2566 = vrot.lane.b32.xlu0 %v2431, 122
        %v2567 = vpop.permute.xlu0 %2566
        %2568 = vrot.lane.b32.xlu0 %v2434, 122
        %v2569 = vpop.permute.xlu0 %2568
        %2570 = vrot.lane.b32.xlu0 %v2439, 122
        %v2571 = vpop.permute.xlu0 %2570
        %2572 = vrot.lane.b32.xlu0 %v2442, 122
        %v2573 = vpop.permute.xlu0 %2572
        %2574 = vrot.lane.b32.xlu0 %v2447, 122
        %v2575 = vpop.permute.xlu0 %2574
        %2576 = vrot.lane.b32.xlu0 %v2450, 122
        %v2577 = vpop.permute.xlu0 %2576
        %2578 = vrot.lane.b32.xlu0 %v2455, 122
        %v2579 = vpop.permute.xlu0 %2578
        %2580 = vrot.lane.b32.xlu0 %v2458, 122
        %v2581 = vpop.permute.xlu0 %2580
        %v2592 = vadd.f32 %v2552, %v2563
        %v2593 = vadd.f32 %v2553, %v2565
        %v2594 = vadd.f32 %v2554, %v2567
        %v2595 = vadd.f32 %v2555, %v2569
        %v2596 = vadd.f32 %v2556, %v2571
        %v2597 = vadd.f32 %v2557, %v2573
        %v2598 = vadd.f32 %v2558, %v2575
        %v2599 = vadd.f32 %v2559, %v2577
        %v2600 = vadd.f32 %v2560, %v2579
        %v2601 = vadd.f32 %v2561, %v2581
        %vm2602 = vcmask 31744
        %2603 = vst.msk [vmem:[%s675] sm:$0xff] %vm2602, %v2592
        %2604 = vst.msk [vmem:[%s675 + $0x8] sm:$0xff] %vm2602, %v2593
        %2605 = vst.msk [vmem:[%s675 + $0x10] sm:$0xff] %vm2602, %v2594
        %2606 = vst.msk [vmem:[%s675 + $0x18] sm:$0xff] %vm2602, %v2595
        %2607 = vst.msk [vmem:[%s675 + $0x20] sm:$0xff] %vm2602, %v2596
        %2608 = vst.msk [vmem:[%s675 + $0x28] sm:$0xff] %vm2602, %v2597
        %2609 = vst.msk [vmem:[%s675 + $0x30] sm:$0xff] %vm2602, %v2598
        %2610 = vst.msk [vmem:[%s675 + $0x38] sm:$0xff] %vm2602, %v2599
        %2611 = vst.msk [vmem:[%s675 + $0x40] sm:$0xff] %vm2602, %v2600
        %2612 = vst.msk [vmem:[%s675 + $0x48] sm:$0xff] %vm2602, %v2601
        %v2613 = vld [vmem:[%s732] sm:$0xff]
        %v2614 = vld [vmem:[%s732 + $0x8] sm:$0xff]
        %v2615 = vld [vmem:[%s732 + $0x10] sm:$0xff]
        %v2616 = vld [vmem:[%s732 + $0x18] sm:$0xff]
        %v2617 = vld [vmem:[%s732 + $0x20] sm:$0xff]
        %v2618 = vld [vmem:[%s732 + $0x28] sm:$0xff]
        %v2619 = vld [vmem:[%s732 + $0x30] sm:$0xff]
        %v2620 = vld [vmem:[%s732 + $0x38] sm:$0xff]
        %v2621 = vld [vmem:[%s732 + $0x40] sm:$0xff]
        %v2622 = vld [vmem:[%s732 + $0x48] sm:$0xff]
        %2623 = vrot.lane.b32.xlu0 %v2423, 118
        %v2624 = vpop.permute.xlu0 %2623
        %2625 = vrot.lane.b32.xlu0 %v2426, 118
        %v2626 = vpop.permute.xlu0 %2625
        %2627 = vrot.lane.b32.xlu0 %v2431, 118
        %v2628 = vpop.permute.xlu0 %2627
        %2629 = vrot.lane.b32.xlu0 %v2434, 118
        %v2630 = vpop.permute.xlu0 %2629
        %2631 = vrot.lane.b32.xlu0 %v2439, 118
        %v2632 = vpop.permute.xlu0 %2631
        %2633 = vrot.lane.b32.xlu0 %v2442, 118
        %v2634 = vpop.permute.xlu0 %2633
        %2635 = vrot.lane.b32.xlu0 %v2447, 118
        %v2636 = vpop.permute.xlu0 %2635
        %2637 = vrot.lane.b32.xlu0 %v2450, 118
        %v2638 = vpop.permute.xlu0 %2637
        %2639 = vrot.lane.b32.xlu0 %v2455, 118
        %v2640 = vpop.permute.xlu0 %2639
        %2641 = vrot.lane.b32.xlu0 %v2458, 118
        %v2642 = vpop.permute.xlu0 %2641
        %v2653 = vadd.f32 %v2613, %v2624
        %v2654 = vadd.f32 %v2614, %v2626
        %v2655 = vadd.f32 %v2615, %v2628
        %v2656 = vadd.f32 %v2616, %v2630
        %v2657 = vadd.f32 %v2617, %v2632
        %v2658 = vadd.f32 %v2618, %v2634
        %v2659 = vadd.f32 %v2619, %v2636
        %v2660 = vadd.f32 %v2620, %v2638
        %v2661 = vadd.f32 %v2621, %v2640
        %v2662 = vadd.f32 %v2622, %v2642
        %vm2663 = vcmask 7168
        %2664 = vst.msk [vmem:[%s681] sm:$0xff] %vm2663, %v2653
        %2665 = vst.msk [vmem:[%s681 + $0x8] sm:$0xff] %vm2663, %v2654
        %2666 = vst.msk [vmem:[%s681 + $0x10] sm:$0xff] %vm2663, %v2655
        %2667 = vst.msk [vmem:[%s681 + $0x18] sm:$0xff] %vm2663, %v2656
        %2668 = vst.msk [vmem:[%s681 + $0x20] sm:$0xff] %vm2663, %v2657
        %2669 = vst.msk [vmem:[%s681 + $0x28] sm:$0xff] %vm2663, %v2658
        %2670 = vst.msk [vmem:[%s681 + $0x30] sm:$0xff] %vm2663, %v2659
        %2671 = vst.msk [vmem:[%s681 + $0x38] sm:$0xff] %vm2663, %v2660
        %2672 = vst.msk [vmem:[%s681 + $0x40] sm:$0xff] %vm2663, %v2661
        %2673 = vst.msk [vmem:[%s681 + $0x48] sm:$0xff] %vm2663, %v2662
        %s2674 = sand.u32 %s356, 1
        %s2675 = sand.u32 %s356, 1
        %s2676 = smul.addr %s2675, 80
        %s2677 = scalar_lea.vmem [#allocation2], %s2676
        %s2678 = sand.u32 %s382, 1
        %s2679 = sand.u32 %s382, 1
        %s2680 = smul.addr %s2679, 80
        %s2681 = scalar_lea.vmem [#allocation3], %s2680
        %s2682 = sand.u32 %s408, 1
        %s2683 = sand.u32 %s408, 1
        %s2684 = smul.addr %s2683, 80
        %s2685 = scalar_lea.vmem [#allocation4], %s2684
        %s2686 = sand.u32 %s434, 1
        %s2687 = sand.u32 %s434, 1
        %s2688 = smul.addr %s2687, 80
        %s2689 = scalar_lea.vmem [#allocation5], %s2688
        // Predicated region
        $region77: #{tpu_custom_call.1} parent=75 // pred_check
          %p2690 = pneg %p366
        $region78: #{tpu_custom_call.1} parent=75 // pred_check_branch
          %2692 = sbr.rel (%p2690) target = $region80
        $region79: #{tpu_custom_call.1} parent=75 // pred_region
          %s2693 = smul.u32 10, %s29
          %s2694 = ssub.s32 38, %s2693
          %p2695 = scmp.lt.s32.totalorder %s2694, 10
          %s2696 = scalar_select %p2695, %s2694, 10
          %s2697 = smul.u32 128, %s2696
          %p2698 = scmp.ne.s32.totalorder 0, %s2697
          %s2699 = smul.addr %s2693, 8
          %s2700 = scalar_lea.vmem %s14, %s2699
          // Predicated region
          $region81: #{tpu_custom_call.1} parent=79 // pred_check
            %p2701 = pneg %p2698
          $region82: #{tpu_custom_call.1} parent=79 // pred_check_branch
            %2703 = sbr.rel (%p2701) target = $region84
          $region83: #{tpu_custom_call.1} parent=79 // pred_region
            // Predicated region
            $region85: #{tpu_custom_call.1} parent=83 // pred_check
              _
            $region86: #{tpu_custom_call.1} parent=83 // pred_check_branch
              %2705 = sbr.rel (0) target = $region88
            $region87: #{tpu_custom_call.1} parent=83 // pred_region
              // Predicated region
              $region107: #{tpu_custom_call.1} parent=87 // pred_check
                _
              $region108: #{tpu_custom_call.1} parent=87 // pred_check_branch
                %2773 = sbr.rel (0) target = $region110
              $region109: #{tpu_custom_call.1} parent=87 // pred_region
                %s2774 = sdiv.u32.pop %s2696, 10
                %s2775 = srem.u32.pop %s2696, 10
                // While loop
                $region111: #{tpu_custom_call.1} parent=109 // loop_pre_header
                  _
                $region112: #{tpu_custom_call.1} parent=109 // loop_header
                  %s2777 = sphi 0, %s2779
                  %p2778 = scmp.ge.s32.totalorder %s2777, %s2774
                  %s2782 = sphi 0, %s2807
                  %s2783 = sphi %s2677, %s2810
                  %s2784 = sphi %s2700, %s2811
                $region113: #{tpu_custom_call.1} parent=109 // loop_header_branch
                  %2781 = sbr.rel (%p2778) target = $region117
                $region114: #{tpu_custom_call.1} parent=109 // loop_body
                  %v2785 = vld [vmem:[%s2783] sm:$0xff]
                  %2786 = vst [vmem:[%s2784] sm:$0xff] %v2785
                  %v2787 = vld [vmem:[%s2783 + $0x8] sm:$0xff]
                  %2788 = vst [vmem:[%s2784 + $0x8] sm:$0xff] %v2787
                  %v2789 = vld [vmem:[%s2783 + $0x10] sm:$0xff]
                  %2790 = vst [vmem:[%s2784 + $0x10] sm:$0xff] %v2789
                  %v2791 = vld [vmem:[%s2783 + $0x18] sm:$0xff]
                  %2792 = vst [vmem:[%s2784 + $0x18] sm:$0xff] %v2791
                  %v2793 = vld [vmem:[%s2783 + $0x20] sm:$0xff]
                  %2794 = vst [vmem:[%s2784 + $0x20] sm:$0xff] %v2793
                  %v2795 = vld [vmem:[%s2783 + $0x28] sm:$0xff]
                  %2796 = vst [vmem:[%s2784 + $0x28] sm:$0xff] %v2795
                  %v2797 = vld [vmem:[%s2783 + $0x30] sm:$0xff]
                  %2798 = vst [vmem:[%s2784 + $0x30] sm:$0xff] %v2797
                  %v2799 = vld [vmem:[%s2783 + $0x38] sm:$0xff]
                  %2800 = vst [vmem:[%s2784 + $0x38] sm:$0xff] %v2799
                  %v2801 = vld [vmem:[%s2783 + $0x40] sm:$0xff]
                  %2802 = vst [vmem:[%s2784 + $0x40] sm:$0xff] %v2801
                  %v2803 = vld [vmem:[%s2783 + $0x48] sm:$0xff]
                  %2804 = vst [vmem:[%s2784 + $0x48] sm:$0xff] %v2803
                  %s2805 = sadd.s32 1, %s2782
                  %p2806 = scmp.ge.s32.totalorder %s2805, %s2774
                  %s2807 = scalar_select %p2806, 0, %s2805
                  %s2808 = smul.u32 %s2807, 80
                  %s2809 = smul.u32 %s2807, 80
                  %s2810 = scalar_lea.vmem %s2677, %s2808 [#allocation2]
                  %s2811 = scalar_lea.vmem %s2700, %s2809
                $region115: #{tpu_custom_call.1} parent=109 // loop_footer
                  %s2779 = sadd.s32 %s2777, 1
                $region116: #{tpu_custom_call.1} parent=109 // loop_footer_branch
                  %2776 = sbr.rel target = $region112
                $region117: #{tpu_custom_call.1} parent=109 // loop_exit
                  _
                %s2812 = sdiv.u32.pop %s2696, 10
                %s2813 = srem.u32.pop %s2696, 10
                %s2814 = smul.u32 %s2812, 10
                %s2815 = smul.u32 8, %s2814
                %s2816 = scalar_lea.vmem %s2677, %s2815 [#allocation2]
                %s2817 = smul.u32 8, %s2814
                %s2818 = scalar_lea.vmem %s2700, %s2817
                // While loop
                $region118: #{tpu_custom_call.1} parent=109 // loop_pre_header
                  _
                $region119: #{tpu_custom_call.1} parent=109 // loop_header
                  %s2820 = sphi 0, %s2822
                  %p2821 = scmp.ge.s32.totalorder %s2820, %s2813
                  %s2825 = sphi 0, %s2832
                  %s2826 = sphi %s2816, %s2835
                  %s2827 = sphi %s2818, %s2836
                $region120: #{tpu_custom_call.1} parent=109 // loop_header_branch
                  %2824 = sbr.rel (%p2821) target = $region124
                $region121: #{tpu_custom_call.1} parent=109 // loop_body
                  %v2828 = vld [vmem:[%s2826] sm:$0xff]
                  %2829 = vst [vmem:[%s2827] sm:$0xff] %v2828
                  %s2830 = sadd.s32 1, %s2825
                  %p2831 = scmp.ge.s32.totalorder %s2830, %s2813
                  %s2832 = scalar_select %p2831, 0, %s2830
                  %s2833 = smul.u32 %s2832, 8
                  %s2834 = smul.u32 %s2832, 8
                  %s2835 = scalar_lea.vmem %s2816, %s2833 [#allocation2]
                  %s2836 = scalar_lea.vmem %s2818, %s2834
                $region122: #{tpu_custom_call.1} parent=109 // loop_footer
                  %s2822 = sadd.s32 %s2820, 1
                $region123: #{tpu_custom_call.1} parent=109 // loop_footer_branch
                  %2819 = sbr.rel target = $region119
                $region124: #{tpu_custom_call.1} parent=109 // loop_exit
                  _
              $region110: #{tpu_custom_call.1} parent=87 // pred_fallthru
                _
              // Predicated region
              $region125: #{tpu_custom_call.1} parent=87 // pred_check
                _
              $region126: #{tpu_custom_call.1} parent=87 // pred_check_branch
                %2838 = sbr.rel target = $region128
              $region127: #{tpu_custom_call.1} parent=87 // pred_region
                _
              $region128: #{tpu_custom_call.1} parent=87 // pred_fallthru
                _
            $region88: #{tpu_custom_call.1} parent=83 // pred_fallthru
              _
            // Predicated region
            $region89: #{tpu_custom_call.1} parent=83 // pred_check
              _
            $region90: #{tpu_custom_call.1} parent=83 // pred_check_branch
              %2707 = sbr.rel target = $region92
            $region91: #{tpu_custom_call.1} parent=83 // pred_region
              %s2709 = sdiv.u32.pop %s2696, 10
              %s2710 = srem.u32.pop %s2696, 10
              // While loop
              $region93: #{tpu_custom_call.1} parent=91 // loop_pre_header
                _
              $region94: #{tpu_custom_call.1} parent=91 // loop_header
                %s2712 = sphi 0, %s2714
                %p2713 = scmp.ge.s32.totalorder %s2712, %s2709
                %s2717 = sphi 0, %s2742
                %s2718 = sphi %s2677, %s2745
                %s2719 = sphi %s2700, %s2746
              $region95: #{tpu_custom_call.1} parent=91 // loop_header_branch
                %2716 = sbr.rel (%p2713) target = $region99
              $region96: #{tpu_custom_call.1} parent=91 // loop_body
                %v2720 = vld [vmem:[%s2718] sm:$0xff]
                %2721 = vst [vmem:[%s2719] sm:$0xff] %v2720
                %v2722 = vld [vmem:[%s2718 + $0x8] sm:$0xff]
                %2723 = vst [vmem:[%s2719 + $0x8] sm:$0xff] %v2722
                %v2724 = vld [vmem:[%s2718 + $0x10] sm:$0xff]
                %2725 = vst [vmem:[%s2719 + $0x10] sm:$0xff] %v2724
                %v2726 = vld [vmem:[%s2718 + $0x18] sm:$0xff]
                %2727 = vst [vmem:[%s2719 + $0x18] sm:$0xff] %v2726
                %v2728 = vld [vmem:[%s2718 + $0x20] sm:$0xff]
                %2729 = vst [vmem:[%s2719 + $0x20] sm:$0xff] %v2728
                %v2730 = vld [vmem:[%s2718 + $0x28] sm:$0xff]
                %2731 = vst [vmem:[%s2719 + $0x28] sm:$0xff] %v2730
                %v2732 = vld [vmem:[%s2718 + $0x30] sm:$0xff]
                %2733 = vst [vmem:[%s2719 + $0x30] sm:$0xff] %v2732
                %v2734 = vld [vmem:[%s2718 + $0x38] sm:$0xff]
                %2735 = vst [vmem:[%s2719 + $0x38] sm:$0xff] %v2734
                %v2736 = vld [vmem:[%s2718 + $0x40] sm:$0xff]
                %2737 = vst [vmem:[%s2719 + $0x40] sm:$0xff] %v2736
                %v2738 = vld [vmem:[%s2718 + $0x48] sm:$0xff]
                %2739 = vst [vmem:[%s2719 + $0x48] sm:$0xff] %v2738
                %s2740 = sadd.s32 1, %s2717
                %p2741 = scmp.ge.s32.totalorder %s2740, %s2709
                %s2742 = scalar_select %p2741, 0, %s2740
                %s2743 = smul.u32 %s2742, 80
                %s2744 = smul.u32 %s2742, 80
                %s2745 = scalar_lea.vmem %s2677, %s2743 [#allocation2]
                %s2746 = scalar_lea.vmem %s2700, %s2744
              $region97: #{tpu_custom_call.1} parent=91 // loop_footer
                %s2714 = sadd.s32 %s2712, 1
              $region98: #{tpu_custom_call.1} parent=91 // loop_footer_branch
                %2711 = sbr.rel target = $region94
              $region99: #{tpu_custom_call.1} parent=91 // loop_exit
                _
              %s2747 = sdiv.u32.pop %s2696, 10
              %s2748 = srem.u32.pop %s2696, 10
              %s2749 = smul.u32 %s2747, 10
              %s2750 = smul.u32 8, %s2749
              %s2751 = scalar_lea.vmem %s2677, %s2750 [#allocation2]
              %s2752 = smul.u32 8, %s2749
              %s2753 = scalar_lea.vmem %s2700, %s2752
              // While loop
              $region100: #{tpu_custom_call.1} parent=91 // loop_pre_header
                _
              $region101: #{tpu_custom_call.1} parent=91 // loop_header
                %s2755 = sphi 0, %s2757
                %p2756 = scmp.ge.s32.totalorder %s2755, %s2748
                %s2760 = sphi 0, %s2767
                %s2761 = sphi %s2751, %s2770
                %s2762 = sphi %s2753, %s2771
              $region102: #{tpu_custom_call.1} parent=91 // loop_header_branch
                %2759 = sbr.rel (%p2756) target = $region106
              $region103: #{tpu_custom_call.1} parent=91 // loop_body
                %v2763 = vld [vmem:[%s2761] sm:$0xff]
                %2764 = vst [vmem:[%s2762] sm:$0xff] %v2763
                %s2765 = sadd.s32 1, %s2760
                %p2766 = scmp.ge.s32.totalorder %s2765, %s2748
                %s2767 = scalar_select %p2766, 0, %s2765
                %s2768 = smul.u32 %s2767, 8
                %s2769 = smul.u32 %s2767, 8
                %s2770 = scalar_lea.vmem %s2751, %s2768 [#allocation2]
                %s2771 = scalar_lea.vmem %s2753, %s2769
              $region104: #{tpu_custom_call.1} parent=91 // loop_footer
                %s2757 = sadd.s32 %s2755, 1
              $region105: #{tpu_custom_call.1} parent=91 // loop_footer_branch
                %2754 = sbr.rel target = $region101
              $region106: #{tpu_custom_call.1} parent=91 // loop_exit
                _
            $region92: #{tpu_custom_call.1} parent=83 // pred_fallthru
              _
          $region84: #{tpu_custom_call.1} parent=79 // pred_fallthru
            _
          %2839 = vnop
        $region80: #{tpu_custom_call.1} parent=75 // pred_fallthru
          _
        // Predicated region
        $region129: #{tpu_custom_call.1} parent=75 // pred_check
          %p2840 = pneg %p392
        $region130: #{tpu_custom_call.1} parent=75 // pred_check_branch
          %2842 = sbr.rel (%p2840) target = $region132
        $region131: #{tpu_custom_call.1} parent=75 // pred_region
          %s2843 = smul.u32 10, %s29
          %s2844 = ssub.s32 38, %s2843
          %p2845 = scmp.lt.s32.totalorder %s2844, 10
          %s2846 = scalar_select %p2845, %s2844, 10
          %s2847 = smul.u32 128, %s2846
          %p2848 = scmp.ne.s32.totalorder 0, %s2847
          %s2849 = smul.addr %s2843, 8
          %s2850 = scalar_lea.vmem %s15, %s2849
          // Predicated region
          $region133: #{tpu_custom_call.1} parent=131 // pred_check
            %p2851 = pneg %p2848
          $region134: #{tpu_custom_call.1} parent=131 // pred_check_branch
            %2853 = sbr.rel (%p2851) target = $region136
          $region135: #{tpu_custom_call.1} parent=131 // pred_region
            // Predicated region
            $region137: #{tpu_custom_call.1} parent=135 // pred_check
              _
            $region138: #{tpu_custom_call.1} parent=135 // pred_check_branch
              %2855 = sbr.rel (0) target = $region140
            $region139: #{tpu_custom_call.1} parent=135 // pred_region
              // Predicated region
              $region159: #{tpu_custom_call.1} parent=139 // pred_check
                _
              $region160: #{tpu_custom_call.1} parent=139 // pred_check_branch
                %2923 = sbr.rel (0) target = $region162
              $region161: #{tpu_custom_call.1} parent=139 // pred_region
                %s2924 = sdiv.u32.pop %s2846, 10
                %s2925 = srem.u32.pop %s2846, 10
                // While loop
                $region163: #{tpu_custom_call.1} parent=161 // loop_pre_header
                  _
                $region164: #{tpu_custom_call.1} parent=161 // loop_header
                  %s2927 = sphi 0, %s2929
                  %p2928 = scmp.ge.s32.totalorder %s2927, %s2924
                  %s2932 = sphi 0, %s2957
                  %s2933 = sphi %s2681, %s2960
                  %s2934 = sphi %s2850, %s2961
                $region165: #{tpu_custom_call.1} parent=161 // loop_header_branch
                  %2931 = sbr.rel (%p2928) target = $region169
                $region166: #{tpu_custom_call.1} parent=161 // loop_body
                  %v2935 = vld [vmem:[%s2933] sm:$0xff]
                  %2936 = vst [vmem:[%s2934] sm:$0xff] %v2935
                  %v2937 = vld [vmem:[%s2933 + $0x8] sm:$0xff]
                  %2938 = vst [vmem:[%s2934 + $0x8] sm:$0xff] %v2937
                  %v2939 = vld [vmem:[%s2933 + $0x10] sm:$0xff]
                  %2940 = vst [vmem:[%s2934 + $0x10] sm:$0xff] %v2939
                  %v2941 = vld [vmem:[%s2933 + $0x18] sm:$0xff]
                  %2942 = vst [vmem:[%s2934 + $0x18] sm:$0xff] %v2941
                  %v2943 = vld [vmem:[%s2933 + $0x20] sm:$0xff]
                  %2944 = vst [vmem:[%s2934 + $0x20] sm:$0xff] %v2943
                  %v2945 = vld [vmem:[%s2933 + $0x28] sm:$0xff]
                  %2946 = vst [vmem:[%s2934 + $0x28] sm:$0xff] %v2945
                  %v2947 = vld [vmem:[%s2933 + $0x30] sm:$0xff]
                  %2948 = vst [vmem:[%s2934 + $0x30] sm:$0xff] %v2947
                  %v2949 = vld [vmem:[%s2933 + $0x38] sm:$0xff]
                  %2950 = vst [vmem:[%s2934 + $0x38] sm:$0xff] %v2949
                  %v2951 = vld [vmem:[%s2933 + $0x40] sm:$0xff]
                  %2952 = vst [vmem:[%s2934 + $0x40] sm:$0xff] %v2951
                  %v2953 = vld [vmem:[%s2933 + $0x48] sm:$0xff]
                  %2954 = vst [vmem:[%s2934 + $0x48] sm:$0xff] %v2953
                  %s2955 = sadd.s32 1, %s2932
                  %p2956 = scmp.ge.s32.totalorder %s2955, %s2924
                  %s2957 = scalar_select %p2956, 0, %s2955
                  %s2958 = smul.u32 %s2957, 80
                  %s2959 = smul.u32 %s2957, 80
                  %s2960 = scalar_lea.vmem %s2681, %s2958 [#allocation3]
                  %s2961 = scalar_lea.vmem %s2850, %s2959
                $region167: #{tpu_custom_call.1} parent=161 // loop_footer
                  %s2929 = sadd.s32 %s2927, 1
                $region168: #{tpu_custom_call.1} parent=161 // loop_footer_branch
                  %2926 = sbr.rel target = $region164
                $region169: #{tpu_custom_call.1} parent=161 // loop_exit
                  _
                %s2962 = sdiv.u32.pop %s2846, 10
                %s2963 = srem.u32.pop %s2846, 10
                %s2964 = smul.u32 %s2962, 10
                %s2965 = smul.u32 8, %s2964
                %s2966 = scalar_lea.vmem %s2681, %s2965 [#allocation3]
                %s2967 = smul.u32 8, %s2964
                %s2968 = scalar_lea.vmem %s2850, %s2967
                // While loop
                $region170: #{tpu_custom_call.1} parent=161 // loop_pre_header
                  _
                $region171: #{tpu_custom_call.1} parent=161 // loop_header
                  %s2970 = sphi 0, %s2972
                  %p2971 = scmp.ge.s32.totalorder %s2970, %s2963
                  %s2975 = sphi 0, %s2982
                  %s2976 = sphi %s2966, %s2985
                  %s2977 = sphi %s2968, %s2986
                $region172: #{tpu_custom_call.1} parent=161 // loop_header_branch
                  %2974 = sbr.rel (%p2971) target = $region176
                $region173: #{tpu_custom_call.1} parent=161 // loop_body
                  %v2978 = vld [vmem:[%s2976] sm:$0xff]
                  %2979 = vst [vmem:[%s2977] sm:$0xff] %v2978
                  %s2980 = sadd.s32 1, %s2975
                  %p2981 = scmp.ge.s32.totalorder %s2980, %s2963
                  %s2982 = scalar_select %p2981, 0, %s2980
                  %s2983 = smul.u32 %s2982, 8
                  %s2984 = smul.u32 %s2982, 8
                  %s2985 = scalar_lea.vmem %s2966, %s2983 [#allocation3]
                  %s2986 = scalar_lea.vmem %s2968, %s2984
                $region174: #{tpu_custom_call.1} parent=161 // loop_footer
                  %s2972 = sadd.s32 %s2970, 1
                $region175: #{tpu_custom_call.1} parent=161 // loop_footer_branch
                  %2969 = sbr.rel target = $region171
                $region176: #{tpu_custom_call.1} parent=161 // loop_exit
                  _
              $region162: #{tpu_custom_call.1} parent=139 // pred_fallthru
                _
              // Predicated region
              $region177: #{tpu_custom_call.1} parent=139 // pred_check
                _
              $region178: #{tpu_custom_call.1} parent=139 // pred_check_branch
                %2988 = sbr.rel target = $region180
              $region179: #{tpu_custom_call.1} parent=139 // pred_region
                _
              $region180: #{tpu_custom_call.1} parent=139 // pred_fallthru
                _
            $region140: #{tpu_custom_call.1} parent=135 // pred_fallthru
              _
            // Predicated region
            $region141: #{tpu_custom_call.1} parent=135 // pred_check
              _
            $region142: #{tpu_custom_call.1} parent=135 // pred_check_branch
              %2857 = sbr.rel target = $region144
            $region143: #{tpu_custom_call.1} parent=135 // pred_region
              %s2859 = sdiv.u32.pop %s2846, 10
              %s2860 = srem.u32.pop %s2846, 10
              // While loop
              $region145: #{tpu_custom_call.1} parent=143 // loop_pre_header
                _
              $region146: #{tpu_custom_call.1} parent=143 // loop_header
                %s2862 = sphi 0, %s2864
                %p2863 = scmp.ge.s32.totalorder %s2862, %s2859
                %s2867 = sphi 0, %s2892
                %s2868 = sphi %s2681, %s2895
                %s2869 = sphi %s2850, %s2896
              $region147: #{tpu_custom_call.1} parent=143 // loop_header_branch
                %2866 = sbr.rel (%p2863) target = $region151
              $region148: #{tpu_custom_call.1} parent=143 // loop_body
                %v2870 = vld [vmem:[%s2868] sm:$0xff]
                %2871 = vst [vmem:[%s2869] sm:$0xff] %v2870
                %v2872 = vld [vmem:[%s2868 + $0x8] sm:$0xff]
                %2873 = vst [vmem:[%s2869 + $0x8] sm:$0xff] %v2872
                %v2874 = vld [vmem:[%s2868 + $0x10] sm:$0xff]
                %2875 = vst [vmem:[%s2869 + $0x10] sm:$0xff] %v2874
                %v2876 = vld [vmem:[%s2868 + $0x18] sm:$0xff]
                %2877 = vst [vmem:[%s2869 + $0x18] sm:$0xff] %v2876
                %v2878 = vld [vmem:[%s2868 + $0x20] sm:$0xff]
                %2879 = vst [vmem:[%s2869 + $0x20] sm:$0xff] %v2878
                %v2880 = vld [vmem:[%s2868 + $0x28] sm:$0xff]
                %2881 = vst [vmem:[%s2869 + $0x28] sm:$0xff] %v2880
                %v2882 = vld [vmem:[%s2868 + $0x30] sm:$0xff]
                %2883 = vst [vmem:[%s2869 + $0x30] sm:$0xff] %v2882
                %v2884 = vld [vmem:[%s2868 + $0x38] sm:$0xff]
                %2885 = vst [vmem:[%s2869 + $0x38] sm:$0xff] %v2884
                %v2886 = vld [vmem:[%s2868 + $0x40] sm:$0xff]
                %2887 = vst [vmem:[%s2869 + $0x40] sm:$0xff] %v2886
                %v2888 = vld [vmem:[%s2868 + $0x48] sm:$0xff]
                %2889 = vst [vmem:[%s2869 + $0x48] sm:$0xff] %v2888
                %s2890 = sadd.s32 1, %s2867
                %p2891 = scmp.ge.s32.totalorder %s2890, %s2859
                %s2892 = scalar_select %p2891, 0, %s2890
                %s2893 = smul.u32 %s2892, 80
                %s2894 = smul.u32 %s2892, 80
                %s2895 = scalar_lea.vmem %s2681, %s2893 [#allocation3]
                %s2896 = scalar_lea.vmem %s2850, %s2894
              $region149: #{tpu_custom_call.1} parent=143 // loop_footer
                %s2864 = sadd.s32 %s2862, 1
              $region150: #{tpu_custom_call.1} parent=143 // loop_footer_branch
                %2861 = sbr.rel target = $region146
              $region151: #{tpu_custom_call.1} parent=143 // loop_exit
                _
              %s2897 = sdiv.u32.pop %s2846, 10
              %s2898 = srem.u32.pop %s2846, 10
              %s2899 = smul.u32 %s2897, 10
              %s2900 = smul.u32 8, %s2899
              %s2901 = scalar_lea.vmem %s2681, %s2900 [#allocation3]
              %s2902 = smul.u32 8, %s2899
              %s2903 = scalar_lea.vmem %s2850, %s2902
              // While loop
              $region152: #{tpu_custom_call.1} parent=143 // loop_pre_header
                _
              $region153: #{tpu_custom_call.1} parent=143 // loop_header
                %s2905 = sphi 0, %s2907
                %p2906 = scmp.ge.s32.totalorder %s2905, %s2898
                %s2910 = sphi 0, %s2917
                %s2911 = sphi %s2901, %s2920
                %s2912 = sphi %s2903, %s2921
              $region154: #{tpu_custom_call.1} parent=143 // loop_header_branch
                %2909 = sbr.rel (%p2906) target = $region158
              $region155: #{tpu_custom_call.1} parent=143 // loop_body
                %v2913 = vld [vmem:[%s2911] sm:$0xff]
                %2914 = vst [vmem:[%s2912] sm:$0xff] %v2913
                %s2915 = sadd.s32 1, %s2910
                %p2916 = scmp.ge.s32.totalorder %s2915, %s2898
                %s2917 = scalar_select %p2916, 0, %s2915
                %s2918 = smul.u32 %s2917, 8
                %s2919 = smul.u32 %s2917, 8
                %s2920 = scalar_lea.vmem %s2901, %s2918 [#allocation3]
                %s2921 = scalar_lea.vmem %s2903, %s2919
              $region156: #{tpu_custom_call.1} parent=143 // loop_footer
                %s2907 = sadd.s32 %s2905, 1
              $region157: #{tpu_custom_call.1} parent=143 // loop_footer_branch
                %2904 = sbr.rel target = $region153
              $region158: #{tpu_custom_call.1} parent=143 // loop_exit
                _
            $region144: #{tpu_custom_call.1} parent=135 // pred_fallthru
              _
          $region136: #{tpu_custom_call.1} parent=131 // pred_fallthru
            _
          %2989 = vnop
        $region132: #{tpu_custom_call.1} parent=75 // pred_fallthru
          _
        // Predicated region
        $region181: #{tpu_custom_call.1} parent=75 // pred_check
          %p2990 = pneg %p418
        $region182: #{tpu_custom_call.1} parent=75 // pred_check_branch
          %2992 = sbr.rel (%p2990) target = $region184
        $region183: #{tpu_custom_call.1} parent=75 // pred_region
          %s2993 = smul.u32 10, %s29
          %s2994 = ssub.s32 38, %s2993
          %p2995 = scmp.lt.s32.totalorder %s2994, 10
          %s2996 = scalar_select %p2995, %s2994, 10
          %s2997 = smul.u32 128, %s2996
          %p2998 = scmp.ne.s32.totalorder 0, %s2997
          %s2999 = smul.addr %s2993, 8
          %s3000 = scalar_lea.vmem %s16, %s2999
          // Predicated region
          $region185: #{tpu_custom_call.1} parent=183 // pred_check
            %p3001 = pneg %p2998
          $region186: #{tpu_custom_call.1} parent=183 // pred_check_branch
            %3003 = sbr.rel (%p3001) target = $region188
          $region187: #{tpu_custom_call.1} parent=183 // pred_region
            // Predicated region
            $region189: #{tpu_custom_call.1} parent=187 // pred_check
              _
            $region190: #{tpu_custom_call.1} parent=187 // pred_check_branch
              %3005 = sbr.rel (0) target = $region192
            $region191: #{tpu_custom_call.1} parent=187 // pred_region
              // Predicated region
              $region211: #{tpu_custom_call.1} parent=191 // pred_check
                _
              $region212: #{tpu_custom_call.1} parent=191 // pred_check_branch
                %3073 = sbr.rel (0) target = $region214
              $region213: #{tpu_custom_call.1} parent=191 // pred_region
                %s3074 = sdiv.u32.pop %s2996, 10
                %s3075 = srem.u32.pop %s2996, 10
                // While loop
                $region215: #{tpu_custom_call.1} parent=213 // loop_pre_header
                  _
                $region216: #{tpu_custom_call.1} parent=213 // loop_header
                  %s3077 = sphi 0, %s3079
                  %p3078 = scmp.ge.s32.totalorder %s3077, %s3074
                  %s3082 = sphi 0, %s3107
                  %s3083 = sphi %s2685, %s3110
                  %s3084 = sphi %s3000, %s3111
                $region217: #{tpu_custom_call.1} parent=213 // loop_header_branch
                  %3081 = sbr.rel (%p3078) target = $region221
                $region218: #{tpu_custom_call.1} parent=213 // loop_body
                  %v3085 = vld [vmem:[%s3083] sm:$0xff]
                  %3086 = vst [vmem:[%s3084] sm:$0xff] %v3085
                  %v3087 = vld [vmem:[%s3083 + $0x8] sm:$0xff]
                  %3088 = vst [vmem:[%s3084 + $0x8] sm:$0xff] %v3087
                  %v3089 = vld [vmem:[%s3083 + $0x10] sm:$0xff]
                  %3090 = vst [vmem:[%s3084 + $0x10] sm:$0xff] %v3089
                  %v3091 = vld [vmem:[%s3083 + $0x18] sm:$0xff]
                  %3092 = vst [vmem:[%s3084 + $0x18] sm:$0xff] %v3091
                  %v3093 = vld [vmem:[%s3083 + $0x20] sm:$0xff]
                  %3094 = vst [vmem:[%s3084 + $0x20] sm:$0xff] %v3093
                  %v3095 = vld [vmem:[%s3083 + $0x28] sm:$0xff]
                  %3096 = vst [vmem:[%s3084 + $0x28] sm:$0xff] %v3095
                  %v3097 = vld [vmem:[%s3083 + $0x30] sm:$0xff]
                  %3098 = vst [vmem:[%s3084 + $0x30] sm:$0xff] %v3097
                  %v3099 = vld [vmem:[%s3083 + $0x38] sm:$0xff]
                  %3100 = vst [vmem:[%s3084 + $0x38] sm:$0xff] %v3099
                  %v3101 = vld [vmem:[%s3083 + $0x40] sm:$0xff]
                  %3102 = vst [vmem:[%s3084 + $0x40] sm:$0xff] %v3101
                  %v3103 = vld [vmem:[%s3083 + $0x48] sm:$0xff]
                  %3104 = vst [vmem:[%s3084 + $0x48] sm:$0xff] %v3103
                  %s3105 = sadd.s32 1, %s3082
                  %p3106 = scmp.ge.s32.totalorder %s3105, %s3074
                  %s3107 = scalar_select %p3106, 0, %s3105
                  %s3108 = smul.u32 %s3107, 80
                  %s3109 = smul.u32 %s3107, 80
                  %s3110 = scalar_lea.vmem %s2685, %s3108 [#allocation4]
                  %s3111 = scalar_lea.vmem %s3000, %s3109
                $region219: #{tpu_custom_call.1} parent=213 // loop_footer
                  %s3079 = sadd.s32 %s3077, 1
                $region220: #{tpu_custom_call.1} parent=213 // loop_footer_branch
                  %3076 = sbr.rel target = $region216
                $region221: #{tpu_custom_call.1} parent=213 // loop_exit
                  _
                %s3112 = sdiv.u32.pop %s2996, 10
                %s3113 = srem.u32.pop %s2996, 10
                %s3114 = smul.u32 %s3112, 10
                %s3115 = smul.u32 8, %s3114
                %s3116 = scalar_lea.vmem %s2685, %s3115 [#allocation4]
                %s3117 = smul.u32 8, %s3114
                %s3118 = scalar_lea.vmem %s3000, %s3117
                // While loop
                $region222: #{tpu_custom_call.1} parent=213 // loop_pre_header
                  _
                $region223: #{tpu_custom_call.1} parent=213 // loop_header
                  %s3120 = sphi 0, %s3122
                  %p3121 = scmp.ge.s32.totalorder %s3120, %s3113
                  %s3125 = sphi 0, %s3132
                  %s3126 = sphi %s3116, %s3135
                  %s3127 = sphi %s3118, %s3136
                $region224: #{tpu_custom_call.1} parent=213 // loop_header_branch
                  %3124 = sbr.rel (%p3121) target = $region228
                $region225: #{tpu_custom_call.1} parent=213 // loop_body
                  %v3128 = vld [vmem:[%s3126] sm:$0xff]
                  %3129 = vst [vmem:[%s3127] sm:$0xff] %v3128
                  %s3130 = sadd.s32 1, %s3125
                  %p3131 = scmp.ge.s32.totalorder %s3130, %s3113
                  %s3132 = scalar_select %p3131, 0, %s3130
                  %s3133 = smul.u32 %s3132, 8
                  %s3134 = smul.u32 %s3132, 8
                  %s3135 = scalar_lea.vmem %s3116, %s3133 [#allocation4]
                  %s3136 = scalar_lea.vmem %s3118, %s3134
                $region226: #{tpu_custom_call.1} parent=213 // loop_footer
                  %s3122 = sadd.s32 %s3120, 1
                $region227: #{tpu_custom_call.1} parent=213 // loop_footer_branch
                  %3119 = sbr.rel target = $region223
                $region228: #{tpu_custom_call.1} parent=213 // loop_exit
                  _
              $region214: #{tpu_custom_call.1} parent=191 // pred_fallthru
                _
              // Predicated region
              $region229: #{tpu_custom_call.1} parent=191 // pred_check
                _
              $region230: #{tpu_custom_call.1} parent=191 // pred_check_branch
                %3138 = sbr.rel target = $region232
              $region231: #{tpu_custom_call.1} parent=191 // pred_region
                _
              $region232: #{tpu_custom_call.1} parent=191 // pred_fallthru
                _
            $region192: #{tpu_custom_call.1} parent=187 // pred_fallthru
              _
            // Predicated region
            $region193: #{tpu_custom_call.1} parent=187 // pred_check
              _
            $region194: #{tpu_custom_call.1} parent=187 // pred_check_branch
              %3007 = sbr.rel target = $region196
            $region195: #{tpu_custom_call.1} parent=187 // pred_region
              %s3009 = sdiv.u32.pop %s2996, 10
              %s3010 = srem.u32.pop %s2996, 10
              // While loop
              $region197: #{tpu_custom_call.1} parent=195 // loop_pre_header
                _
              $region198: #{tpu_custom_call.1} parent=195 // loop_header
                %s3012 = sphi 0, %s3014
                %p3013 = scmp.ge.s32.totalorder %s3012, %s3009
                %s3017 = sphi 0, %s3042
                %s3018 = sphi %s2685, %s3045
                %s3019 = sphi %s3000, %s3046
              $region199: #{tpu_custom_call.1} parent=195 // loop_header_branch
                %3016 = sbr.rel (%p3013) target = $region203
              $region200: #{tpu_custom_call.1} parent=195 // loop_body
                %v3020 = vld [vmem:[%s3018] sm:$0xff]
                %3021 = vst [vmem:[%s3019] sm:$0xff] %v3020
                %v3022 = vld [vmem:[%s3018 + $0x8] sm:$0xff]
                %3023 = vst [vmem:[%s3019 + $0x8] sm:$0xff] %v3022
                %v3024 = vld [vmem:[%s3018 + $0x10] sm:$0xff]
                %3025 = vst [vmem:[%s3019 + $0x10] sm:$0xff] %v3024
                %v3026 = vld [vmem:[%s3018 + $0x18] sm:$0xff]
                %3027 = vst [vmem:[%s3019 + $0x18] sm:$0xff] %v3026
                %v3028 = vld [vmem:[%s3018 + $0x20] sm:$0xff]
                %3029 = vst [vmem:[%s3019 + $0x20] sm:$0xff] %v3028
                %v3030 = vld [vmem:[%s3018 + $0x28] sm:$0xff]
                %3031 = vst [vmem:[%s3019 + $0x28] sm:$0xff] %v3030
                %v3032 = vld [vmem:[%s3018 + $0x30] sm:$0xff]
                %3033 = vst [vmem:[%s3019 + $0x30] sm:$0xff] %v3032
                %v3034 = vld [vmem:[%s3018 + $0x38] sm:$0xff]
                %3035 = vst [vmem:[%s3019 + $0x38] sm:$0xff] %v3034
                %v3036 = vld [vmem:[%s3018 + $0x40] sm:$0xff]
                %3037 = vst [vmem:[%s3019 + $0x40] sm:$0xff] %v3036
                %v3038 = vld [vmem:[%s3018 + $0x48] sm:$0xff]
                %3039 = vst [vmem:[%s3019 + $0x48] sm:$0xff] %v3038
                %s3040 = sadd.s32 1, %s3017
                %p3041 = scmp.ge.s32.totalorder %s3040, %s3009
                %s3042 = scalar_select %p3041, 0, %s3040
                %s3043 = smul.u32 %s3042, 80
                %s3044 = smul.u32 %s3042, 80
                %s3045 = scalar_lea.vmem %s2685, %s3043 [#allocation4]
                %s3046 = scalar_lea.vmem %s3000, %s3044
              $region201: #{tpu_custom_call.1} parent=195 // loop_footer
                %s3014 = sadd.s32 %s3012, 1
              $region202: #{tpu_custom_call.1} parent=195 // loop_footer_branch
                %3011 = sbr.rel target = $region198
              $region203: #{tpu_custom_call.1} parent=195 // loop_exit
                _
              %s3047 = sdiv.u32.pop %s2996, 10
              %s3048 = srem.u32.pop %s2996, 10
              %s3049 = smul.u32 %s3047, 10
              %s3050 = smul.u32 8, %s3049
              %s3051 = scalar_lea.vmem %s2685, %s3050 [#allocation4]
              %s3052 = smul.u32 8, %s3049
              %s3053 = scalar_lea.vmem %s3000, %s3052
              // While loop
              $region204: #{tpu_custom_call.1} parent=195 // loop_pre_header
                _
              $region205: #{tpu_custom_call.1} parent=195 // loop_header
                %s3055 = sphi 0, %s3057
                %p3056 = scmp.ge.s32.totalorder %s3055, %s3048
                %s3060 = sphi 0, %s3067
                %s3061 = sphi %s3051, %s3070
                %s3062 = sphi %s3053, %s3071
              $region206: #{tpu_custom_call.1} parent=195 // loop_header_branch
                %3059 = sbr.rel (%p3056) target = $region210
              $region207: #{tpu_custom_call.1} parent=195 // loop_body
                %v3063 = vld [vmem:[%s3061] sm:$0xff]
                %3064 = vst [vmem:[%s3062] sm:$0xff] %v3063
                %s3065 = sadd.s32 1, %s3060
                %p3066 = scmp.ge.s32.totalorder %s3065, %s3048
                %s3067 = scalar_select %p3066, 0, %s3065
                %s3068 = smul.u32 %s3067, 8
                %s3069 = smul.u32 %s3067, 8
                %s3070 = scalar_lea.vmem %s3051, %s3068 [#allocation4]
                %s3071 = scalar_lea.vmem %s3053, %s3069
              $region208: #{tpu_custom_call.1} parent=195 // loop_footer
                %s3057 = sadd.s32 %s3055, 1
              $region209: #{tpu_custom_call.1} parent=195 // loop_footer_branch
                %3054 = sbr.rel target = $region205
              $region210: #{tpu_custom_call.1} parent=195 // loop_exit
                _
            $region196: #{tpu_custom_call.1} parent=187 // pred_fallthru
              _
          $region188: #{tpu_custom_call.1} parent=183 // pred_fallthru
            _
          %3139 = vnop
        $region184: #{tpu_custom_call.1} parent=75 // pred_fallthru
          _
        // Predicated region
        $region233: #{tpu_custom_call.1} parent=75 // pred_check
          %p3140 = pneg %p444
        $region234: #{tpu_custom_call.1} parent=75 // pred_check_branch
          %3142 = sbr.rel (%p3140) target = $region236
        $region235: #{tpu_custom_call.1} parent=75 // pred_region
          %s3143 = smul.u32 10, %s29
          %s3144 = ssub.s32 38, %s3143
          %p3145 = scmp.lt.s32.totalorder %s3144, 10
          %s3146 = scalar_select %p3145, %s3144, 10
          %s3147 = smul.u32 128, %s3146
          %p3148 = scmp.ne.s32.totalorder 0, %s3147
          %s3149 = smul.addr %s3143, 8
          %s3150 = scalar_lea.vmem %s17, %s3149
          // Predicated region
          $region237: #{tpu_custom_call.1} parent=235 // pred_check
            %p3151 = pneg %p3148
          $region238: #{tpu_custom_call.1} parent=235 // pred_check_branch
            %3153 = sbr.rel (%p3151) target = $region240
          $region239: #{tpu_custom_call.1} parent=235 // pred_region
            // Predicated region
            $region241: #{tpu_custom_call.1} parent=239 // pred_check
              _
            $region242: #{tpu_custom_call.1} parent=239 // pred_check_branch
              %3155 = sbr.rel (0) target = $region244
            $region243: #{tpu_custom_call.1} parent=239 // pred_region
              // Predicated region
              $region263: #{tpu_custom_call.1} parent=243 // pred_check
                _
              $region264: #{tpu_custom_call.1} parent=243 // pred_check_branch
                %3223 = sbr.rel (0) target = $region266
              $region265: #{tpu_custom_call.1} parent=243 // pred_region
                %s3224 = sdiv.u32.pop %s3146, 10
                %s3225 = srem.u32.pop %s3146, 10
                // While loop
                $region267: #{tpu_custom_call.1} parent=265 // loop_pre_header
                  _
                $region268: #{tpu_custom_call.1} parent=265 // loop_header
                  %s3227 = sphi 0, %s3229
                  %p3228 = scmp.ge.s32.totalorder %s3227, %s3224
                  %s3232 = sphi 0, %s3257
                  %s3233 = sphi %s2689, %s3260
                  %s3234 = sphi %s3150, %s3261
                $region269: #{tpu_custom_call.1} parent=265 // loop_header_branch
                  %3231 = sbr.rel (%p3228) target = $region273
                $region270: #{tpu_custom_call.1} parent=265 // loop_body
                  %v3235 = vld [vmem:[%s3233] sm:$0xff]
                  %3236 = vst [vmem:[%s3234] sm:$0xff] %v3235
                  %v3237 = vld [vmem:[%s3233 + $0x8] sm:$0xff]
                  %3238 = vst [vmem:[%s3234 + $0x8] sm:$0xff] %v3237
                  %v3239 = vld [vmem:[%s3233 + $0x10] sm:$0xff]
                  %3240 = vst [vmem:[%s3234 + $0x10] sm:$0xff] %v3239
                  %v3241 = vld [vmem:[%s3233 + $0x18] sm:$0xff]
                  %3242 = vst [vmem:[%s3234 + $0x18] sm:$0xff] %v3241
                  %v3243 = vld [vmem:[%s3233 + $0x20] sm:$0xff]
                  %3244 = vst [vmem:[%s3234 + $0x20] sm:$0xff] %v3243
                  %v3245 = vld [vmem:[%s3233 + $0x28] sm:$0xff]
                  %3246 = vst [vmem:[%s3234 + $0x28] sm:$0xff] %v3245
                  %v3247 = vld [vmem:[%s3233 + $0x30] sm:$0xff]
                  %3248 = vst [vmem:[%s3234 + $0x30] sm:$0xff] %v3247
                  %v3249 = vld [vmem:[%s3233 + $0x38] sm:$0xff]
                  %3250 = vst [vmem:[%s3234 + $0x38] sm:$0xff] %v3249
                  %v3251 = vld [vmem:[%s3233 + $0x40] sm:$0xff]
                  %3252 = vst [vmem:[%s3234 + $0x40] sm:$0xff] %v3251
                  %v3253 = vld [vmem:[%s3233 + $0x48] sm:$0xff]
                  %3254 = vst [vmem:[%s3234 + $0x48] sm:$0xff] %v3253
                  %s3255 = sadd.s32 1, %s3232
                  %p3256 = scmp.ge.s32.totalorder %s3255, %s3224
                  %s3257 = scalar_select %p3256, 0, %s3255
                  %s3258 = smul.u32 %s3257, 80
                  %s3259 = smul.u32 %s3257, 80
                  %s3260 = scalar_lea.vmem %s2689, %s3258 [#allocation5]
                  %s3261 = scalar_lea.vmem %s3150, %s3259
                $region271: #{tpu_custom_call.1} parent=265 // loop_footer
                  %s3229 = sadd.s32 %s3227, 1
                $region272: #{tpu_custom_call.1} parent=265 // loop_footer_branch
                  %3226 = sbr.rel target = $region268
                $region273: #{tpu_custom_call.1} parent=265 // loop_exit
                  _
                %s3262 = sdiv.u32.pop %s3146, 10
                %s3263 = srem.u32.pop %s3146, 10
                %s3264 = smul.u32 %s3262, 10
                %s3265 = smul.u32 8, %s3264
                %s3266 = scalar_lea.vmem %s2689, %s3265 [#allocation5]
                %s3267 = smul.u32 8, %s3264
                %s3268 = scalar_lea.vmem %s3150, %s3267
                // While loop
                $region274: #{tpu_custom_call.1} parent=265 // loop_pre_header
                  _
                $region275: #{tpu_custom_call.1} parent=265 // loop_header
                  %s3270 = sphi 0, %s3272
                  %p3271 = scmp.ge.s32.totalorder %s3270, %s3263
                  %s3275 = sphi 0, %s3282
                  %s3276 = sphi %s3266, %s3285
                  %s3277 = sphi %s3268, %s3286
                $region276: #{tpu_custom_call.1} parent=265 // loop_header_branch
                  %3274 = sbr.rel (%p3271) target = $region280
                $region277: #{tpu_custom_call.1} parent=265 // loop_body
                  %v3278 = vld [vmem:[%s3276] sm:$0xff]
                  %3279 = vst [vmem:[%s3277] sm:$0xff] %v3278
                  %s3280 = sadd.s32 1, %s3275
                  %p3281 = scmp.ge.s32.totalorder %s3280, %s3263
                  %s3282 = scalar_select %p3281, 0, %s3280
                  %s3283 = smul.u32 %s3282, 8
                  %s3284 = smul.u32 %s3282, 8
                  %s3285 = scalar_lea.vmem %s3266, %s3283 [#allocation5]
                  %s3286 = scalar_lea.vmem %s3268, %s3284
                $region278: #{tpu_custom_call.1} parent=265 // loop_footer
                  %s3272 = sadd.s32 %s3270, 1
                $region279: #{tpu_custom_call.1} parent=265 // loop_footer_branch
                  %3269 = sbr.rel target = $region275
                $region280: #{tpu_custom_call.1} parent=265 // loop_exit
                  _
              $region266: #{tpu_custom_call.1} parent=243 // pred_fallthru
                _
              // Predicated region
              $region281: #{tpu_custom_call.1} parent=243 // pred_check
                _
              $region282: #{tpu_custom_call.1} parent=243 // pred_check_branch
                %3288 = sbr.rel target = $region284
              $region283: #{tpu_custom_call.1} parent=243 // pred_region
                _
              $region284: #{tpu_custom_call.1} parent=243 // pred_fallthru
                _
            $region244: #{tpu_custom_call.1} parent=239 // pred_fallthru
              _
            // Predicated region
            $region245: #{tpu_custom_call.1} parent=239 // pred_check
              _
            $region246: #{tpu_custom_call.1} parent=239 // pred_check_branch
              %3157 = sbr.rel target = $region248
            $region247: #{tpu_custom_call.1} parent=239 // pred_region
              %s3159 = sdiv.u32.pop %s3146, 10
              %s3160 = srem.u32.pop %s3146, 10
              // While loop
              $region249: #{tpu_custom_call.1} parent=247 // loop_pre_header
                _
              $region250: #{tpu_custom_call.1} parent=247 // loop_header
                %s3162 = sphi 0, %s3164
                %p3163 = scmp.ge.s32.totalorder %s3162, %s3159
                %s3167 = sphi 0, %s3192
                %s3168 = sphi %s2689, %s3195
                %s3169 = sphi %s3150, %s3196
              $region251: #{tpu_custom_call.1} parent=247 // loop_header_branch
                %3166 = sbr.rel (%p3163) target = $region255
              $region252: #{tpu_custom_call.1} parent=247 // loop_body
                %v3170 = vld [vmem:[%s3168] sm:$0xff]
                %3171 = vst [vmem:[%s3169] sm:$0xff] %v3170
                %v3172 = vld [vmem:[%s3168 + $0x8] sm:$0xff]
                %3173 = vst [vmem:[%s3169 + $0x8] sm:$0xff] %v3172
                %v3174 = vld [vmem:[%s3168 + $0x10] sm:$0xff]
                %3175 = vst [vmem:[%s3169 + $0x10] sm:$0xff] %v3174
                %v3176 = vld [vmem:[%s3168 + $0x18] sm:$0xff]
                %3177 = vst [vmem:[%s3169 + $0x18] sm:$0xff] %v3176
                %v3178 = vld [vmem:[%s3168 + $0x20] sm:$0xff]
                %3179 = vst [vmem:[%s3169 + $0x20] sm:$0xff] %v3178
                %v3180 = vld [vmem:[%s3168 + $0x28] sm:$0xff]
                %3181 = vst [vmem:[%s3169 + $0x28] sm:$0xff] %v3180
                %v3182 = vld [vmem:[%s3168 + $0x30] sm:$0xff]
                %3183 = vst [vmem:[%s3169 + $0x30] sm:$0xff] %v3182
                %v3184 = vld [vmem:[%s3168 + $0x38] sm:$0xff]
                %3185 = vst [vmem:[%s3169 + $0x38] sm:$0xff] %v3184
                %v3186 = vld [vmem:[%s3168 + $0x40] sm:$0xff]
                %3187 = vst [vmem:[%s3169 + $0x40] sm:$0xff] %v3186
                %v3188 = vld [vmem:[%s3168 + $0x48] sm:$0xff]
                %3189 = vst [vmem:[%s3169 + $0x48] sm:$0xff] %v3188
                %s3190 = sadd.s32 1, %s3167
                %p3191 = scmp.ge.s32.totalorder %s3190, %s3159
                %s3192 = scalar_select %p3191, 0, %s3190
                %s3193 = smul.u32 %s3192, 80
                %s3194 = smul.u32 %s3192, 80
                %s3195 = scalar_lea.vmem %s2689, %s3193 [#allocation5]
                %s3196 = scalar_lea.vmem %s3150, %s3194
              $region253: #{tpu_custom_call.1} parent=247 // loop_footer
                %s3164 = sadd.s32 %s3162, 1
              $region254: #{tpu_custom_call.1} parent=247 // loop_footer_branch
                %3161 = sbr.rel target = $region250
              $region255: #{tpu_custom_call.1} parent=247 // loop_exit
                _
              %s3197 = sdiv.u32.pop %s3146, 10
              %s3198 = srem.u32.pop %s3146, 10
              %s3199 = smul.u32 %s3197, 10
              %s3200 = smul.u32 8, %s3199
              %s3201 = scalar_lea.vmem %s2689, %s3200 [#allocation5]
              %s3202 = smul.u32 8, %s3199
              %s3203 = scalar_lea.vmem %s3150, %s3202
              // While loop
              $region256: #{tpu_custom_call.1} parent=247 // loop_pre_header
                _
              $region257: #{tpu_custom_call.1} parent=247 // loop_header
                %s3205 = sphi 0, %s3207
                %p3206 = scmp.ge.s32.totalorder %s3205, %s3198
                %s3210 = sphi 0, %s3217
                %s3211 = sphi %s3201, %s3220
                %s3212 = sphi %s3203, %s3221
              $region258: #{tpu_custom_call.1} parent=247 // loop_header_branch
                %3209 = sbr.rel (%p3206) target = $region262
              $region259: #{tpu_custom_call.1} parent=247 // loop_body
                %v3213 = vld [vmem:[%s3211] sm:$0xff]
                %3214 = vst [vmem:[%s3212] sm:$0xff] %v3213
                %s3215 = sadd.s32 1, %s3210
                %p3216 = scmp.ge.s32.totalorder %s3215, %s3198
                %s3217 = scalar_select %p3216, 0, %s3215
                %s3218 = smul.u32 %s3217, 8
                %s3219 = smul.u32 %s3217, 8
                %s3220 = scalar_lea.vmem %s3201, %s3218 [#allocation5]
                %s3221 = scalar_lea.vmem %s3203, %s3219
              $region260: #{tpu_custom_call.1} parent=247 // loop_footer
                %s3207 = sadd.s32 %s3205, 1
              $region261: #{tpu_custom_call.1} parent=247 // loop_footer_branch
                %3204 = sbr.rel target = $region257
              $region262: #{tpu_custom_call.1} parent=247 // loop_exit
                _
            $region248: #{tpu_custom_call.1} parent=239 // pred_fallthru
              _
          $region240: #{tpu_custom_call.1} parent=235 // pred_fallthru
            _
          %3289 = vnop
        $region236: #{tpu_custom_call.1} parent=75 // pred_fallthru
          _
      $region76: #{tpu_custom_call.1} parent=5 // pred_fallthru
        _
      %p3290 = scmp.le.s32.totalorder 2, %s24
      // Predicated region
      $region285: #{tpu_custom_call.1} parent=5 // pred_check
        %p3291 = pneg %p3290
      $region286: #{tpu_custom_call.1} parent=5 // pred_check_branch
        %3293 = sbr.rel (%p3291) target = $region288
      $region287: #{tpu_custom_call.1} parent=5 // pred_region
        %s3294 = ssub.s32 %s24, 2
        // Predicated region
        $region289: #{tpu_custom_call.1} parent=287 // pred_check
          %p3295 = pneg %p372
        $region290: #{tpu_custom_call.1} parent=287 // pred_check_branch
          %3297 = sbr.rel (%p3295) target = $region292
        $region291: #{tpu_custom_call.1} parent=287 // pred_region
          %s3298 = sand.u32 %s357, 1
          %s3299 = sand.u32 %s357, 1
          %s3300 = smul.addr %s3299, 80
          %s3301 = scalar_lea.vmem [#allocation2], %s3300
        $region292: #{tpu_custom_call.1} parent=287 // pred_fallthru
          _
        // Predicated region
        $region293: #{tpu_custom_call.1} parent=287 // pred_check
          %p3302 = pneg %p398
        $region294: #{tpu_custom_call.1} parent=287 // pred_check_branch
          %3304 = sbr.rel (%p3302) target = $region296
        $region295: #{tpu_custom_call.1} parent=287 // pred_region
          %s3305 = sand.u32 %s383, 1
          %s3306 = sand.u32 %s383, 1
          %s3307 = smul.addr %s3306, 80
          %s3308 = scalar_lea.vmem [#allocation3], %s3307
        $region296: #{tpu_custom_call.1} parent=287 // pred_fallthru
          _
        // Predicated region
        $region297: #{tpu_custom_call.1} parent=287 // pred_check
          %p3309 = pneg %p424
        $region298: #{tpu_custom_call.1} parent=287 // pred_check_branch
          %3311 = sbr.rel (%p3309) target = $region300
        $region299: #{tpu_custom_call.1} parent=287 // pred_region
          %s3312 = sand.u32 %s409, 1
          %s3313 = sand.u32 %s409, 1
          %s3314 = smul.addr %s3313, 80
          %s3315 = scalar_lea.vmem [#allocation4], %s3314
        $region300: #{tpu_custom_call.1} parent=287 // pred_fallthru
          _
        // Predicated region
        $region301: #{tpu_custom_call.1} parent=287 // pred_check
          %p3316 = pneg %p450
        $region302: #{tpu_custom_call.1} parent=287 // pred_check_branch
          %3318 = sbr.rel (%p3316) target = $region304
        $region303: #{tpu_custom_call.1} parent=287 // pred_region
          %s3319 = sand.u32 %s435, 1
          %s3320 = sand.u32 %s435, 1
          %s3321 = smul.addr %s3320, 80
          %s3322 = scalar_lea.vmem [#allocation5], %s3321
        $region304: #{tpu_custom_call.1} parent=287 // pred_fallthru
          _
      $region288: #{tpu_custom_call.1} parent=5 // pred_fallthru
        _
    $region6: #{tpu_custom_call.1} parent=1 // loop_footer
      %s28 = sadd.s32 1, %s24
    $region7: #{tpu_custom_call.1} parent=1 // loop_footer_branch
      %23 = sbr.rel target = $region3
    $region8: #{tpu_custom_call.1} parent=1 // loop_exit
      _

</llo_original>
